<compile_context>
chip_gen: v6e
topology: v6e:2x2x1
jax: 0.10.0
libtpu: 0.0.40
codegen_flags: <defaults>
</compile_context>

<pallas_src>
import functools

import jax
import jax.numpy as jnp
from jax import lax
from jax.experimental import pallas as pl
from jax.experimental.pallas import tpu as pltpu


def _tree(op, xs):
    """Pairwise (tree) reduction of a list of same-shaped arrays."""
    xs = list(xs)
    while len(xs) > 1:
        nxt = [op(xs[i], xs[i + 1]) for i in range(0, len(xs) - 1, 2)]
        if len(xs) & 1:
            nxt.append(xs[-1])
        xs = nxt
    return xs[0]


def _n3agg_kernel(x_ref, xe_ref, ye_ref, lt_ref, y_ref, out_ref, *,
                  C, E, HW, WW, PS, PR, WSH, K, PADX, HALO, TH, COFF, WL):
    """One height-tile of the fused search + NNN + weighted-patch-fold.

    x_ref  : (1, C, HT, WL)  database image window (tile rows +- HALO)
    xe_ref : (1, E, HT, WL)  database embedding window
    ye_ref : (1, E, HT, WL)  query embedding window
    lt_ref : (1, 1, HT, WL)  log-temperature window
    y_ref  : (1, C, HT, WL)  query image window
    out_ref: ((K+1)*C, TH, WL)  channels [y, (vid/zvid - y) per head]

    HT = TH + 2*HALO, HALO = PADX + PR, PADX = WSH + PR.  Working-image row g of
    tile t lives at window row g - t*TH + HALO; working column j at lane j+COFF.
    Everything outside the working image is zero-extension.
    """
    NEG = -1e30
    QR = TH + 2 * PR            # query rows per tile (output rows + fold halo)
    NR = QR + PS - 1            # rows feeding the separable box sums
    R0 = PADX - PR              # window row of patch-row 0 of query row ql = 0
    offs = [(di, dj) for di in range(-WSH, WSH + 1) for dj in range(-WSH, WSH + 1)]

    row0 = pl.program_id(0) * TH            # global (working) row of output row 0

    def shift_lanes(a, d):
        # out[:, j] = a[:, j + d]; roll wrap-garbage stays inside the >=PADX-wide
        # lane padding margins and never reaches a valid output lane.
        if d == 0:
            return a
        return pltpu.roll(a, shift=(-d) % WL, axis=1)

    def row_box(a, nout):
        # separable box sum, row pass: out[l, :] = sum_{b<PS} a[l + b, :]
        acc = None
        for b in range(PS):
            s = a[b:b + nout, :]
            acc = s if acc is None else acc + s
        return acc

    def col_box(a):
        # separable box sum, column pass (centered): out[:, j] = sum_b a[:, j+b-PR]
        acc = None
        for b in range(PS):
            s = shift_lanes(a, b - PR)
            acc = s if acc is None else acc + s
        return acc

    # ---- per-query inverse temperature (avg-pooled log_temp patch, bias=1) ----
    lt_box = col_box(row_box(lt_ref[0, 0, R0:R0 + NR, :], QR))
    neg_inv_temp = -jnp.exp(lt_box * (-1.0 / (PS * PS)))            # (QR, WL)

    # ---- patch-norm terms of the SSD (shared across all ws*ws offsets) ----
    yn = None
    for e in range(E):
        v = ye_ref[0, e, R0:R0 + NR, :]
        yn = v * v if yn is None else yn + v * v
    yn_box = col_box(row_box(yn, QR))                               # (QR, WL)

    xn = None
    for e in range(E):
        v = xe_ref[0, e, :, :]
        xn = v * v if xn is None else xn + v * v
    xn_box = col_box(row_box(xn, xn.shape[0] - PS + 1))             # (HT-PS+1, WL)

    # ---- query-position iotas / query-validity mask ----
    qi = row0 - PR + lax.broadcasted_iota(jnp.int32, (QR, WL), 0)   # global query row
    qj = lax.broadcasted_iota(jnp.int32, (QR, WL), 1) - COFF        # working query col
    qmask = ((qi >= 0) & (qi < HW) & (qj >= 0) & (qj < WW)).astype(jnp.float32)

    # ---- patch-L2 logits: dist = |ye|^2 + |xe|^2 - 2<ye,xe>, scaled by temp ----
    # TODO(synk): xe/ye could be fed in bf16 (f32 accumulate) on v6e/v7x; kept f32
    # here to stay portable to v5e and bit-close to the reference.
    logits = []
    for (di, dj) in offs:
        if di == 0 and dj == 0:
            # remove_self=True: the self match is dropped -> its weight is exactly 0
            logits.append(jnp.full((QR, WL), NEG, jnp.float32))
            continue
        cross = None
        for e in range(E):
            a = ye_ref[0, e, R0:R0 + NR, :]
            b = shift_lanes(xe_ref[0, e, R0 + di:R0 + di + NR, :], dj)
            cross = a * b if cross is None else cross + a * b
        dist = (yn_box
                + shift_lanes(xn_box[PADX + di - PR:PADX + di - PR + QR, :], dj)
                - 2.0 * col_box(row_box(cross, QR)))
        # TODO(synk): stnls `full_ws` shifts the search window at borders; here
        # out-of-bounds candidates are masked out (weight 0) instead.
        valid = ((qi + di >= 0) & (qi + di < HW) &
                 (qj + dj >= 0) & (qj + dj < WW))
        logits.append(jnp.where(valid, dist * neg_inv_temp, NEG))

    # ---- zvid (iFoldz): number of query patches covering each output pixel ----
    oi = row0 + lax.broadcasted_iota(jnp.int32, (TH, WL), 0)        # global out row
    oj = lax.broadcasted_iota(jnp.int32, (TH, WL), 1) - COFF        # working out col
    zr = jnp.minimum(oi + PR, PS - 1) - jnp.maximum(oi + PR - HW + 1, 0) + 1
    zc = jnp.minimum(oj + PR, PS - 1) - jnp.maximum(oj + PR - WW + 1, 0) + 1
    inv_z = 1.0 / jnp.maximum((zr * zc).astype(jnp.float32), 1.0)

    # ---- output channel block 0: the (padded) query image itself (fused cat) ----
    for c in range(C):
        out_ref[c, :, :] = y_ref[0, c, HALO:HALO + TH, :]

    # ---- NeuralNearestNeighbors heads, each fused with its fold (no scratch) ----
    cur = logits
    for r in range(K):
        m = _tree(jnp.maximum, cur)
        ex = [jnp.exp(c - m) for c in cur]
        s = _tree(jnp.add, ex)
        # NOTE: pl.reciprocal(s, approx=True) would move this divide to the EUP;
        # exact division kept to stay numerically close to the reference module.
        inv_s = 1.0 / s
        w = [e * inv_s for e in ex]
        if r + 1 < K:
            cur = [c + jnp.log(jnp.maximum(1.0 - wo, 1e-12))
                   for c, wo in zip(cur, w)]

        # fused WeightedPatchSumHeads + iFold (stride=1, adj=ps//2):
        #   vid[p] = sum_o x[p + off_o] * BoxSum_ps(qmask * w_o)[p]
        vid = [None] * C
        for o_idx, (di, dj) in enumerate(offs):
            if di == 0 and dj == 0:
                continue
            wf = col_box(row_box(qmask * w[o_idx], TH))             # (TH, WL)
            for c in range(C):
                xs = shift_lanes(x_ref[0, c, HALO + di:HALO + di + TH, :], dj)
                contrib = xs * wf
                vid[c] = contrib if vid[c] is None else vid[c] + contrib
        base = (r + 1) * C
        for c in range(C):
            out_ref[base + c, :, :] = (vid[c] * inv_z
                                       - y_ref[0, c, HALO:HALO + TH, :])


def n3_aggregation_2d(x, xe, ye=None, y=None, log_temp=None, *,
                      k=3, patchsize=3, ws=3, tile_h=64):
    """JAX/Pallas equivalent of N3Aggregation2D.forward (t == 1, wt == 0).

    x: (1,C,H,W), xe/ye: (1,E,H,W), log_temp: (1,1,H,W).  Returns (1, C+k*C, H, W).
    """
    if y is None:
        y = x
        ye = xe
    t, C, Hi, Wi = x.shape
    assert t == 1, "single frame (wt = 0) only"
    E = xe.shape[1]
    ps, pr = patchsize, patchsize // 2
    wsh = ws // 2
    padx = wsh + pr
    halo = padx + pr

    Hw, Ww = Hi + 2, Wi + 2                   # module's working (1-padded) size

    # Height tiling (multiple of 8 sublanes) + lane padding to a 128 multiple.
    TH = max(8, (int(tile_h) // 8) * 8)
    TH = min(TH, ((Hw + 7) // 8) * 8)
    NT = -(-Hw // TH)
    HP = NT * TH
    HT = TH + 2 * halo
    COFF = padx
    WL = ((Ww + 2 * padx + 127) // 128) * 128

    f32 = jnp.float32
    pad1 = lambda a: jnp.pad(a[0].astype(f32), ((0, 0), (1, 1), (1, 1)))
    xw, xew, yew, yw, ltw = (pad1(v) for v in (x, xe, ye, y, log_temp))

    def canvas(a):
        # zero-extended plane stack: data at rows [halo, halo+Hw), lanes
        # [COFF, COFF+Ww); everything else is the zero-extension.
        return jnp.pad(a, ((0, 0),
                           (halo, HP + halo - Hw),
                           (COFF, WL - COFF - Ww)))

    def windows(a):
        # Overlapping halo'd row windows, one per grid step (tiles independent).
        # TODO(synk): for very large images switch to memory_space=pl.ANY +
        # manual halo DMA to avoid duplicating halo rows in HBM.
        return jnp.stack([a[:, ti * TH:ti * TH + HT, :] for ti in range(NT)], 0)

    xs_, xes_, yes_, lts_, ys_ = (windows(canvas(a))
                                  for a in (xw, xew, yew, ltw, yw))

    kern = functools.partial(_n3agg_kernel, C=C, E=E, HW=Hw, WW=Ww, PS=ps, PR=pr,
                             WSH=wsh, K=k, PADX=padx, HALO=halo, TH=TH,
                             COFF=COFF, WL=WL)

    # Explicit VMEM budget: double-buffered in/out tiles + live compute planes.
    est = 4 * (2 * (2 * C + 2 * E + 1) * HT * WL
               + 2 * (k + 1) * C * TH * WL
               + (ws * ws + 16) * (TH + 2 * pr) * WL
               + 4 * C * TH * WL)
    vmem_limit = int(min(max(2 * est, 32 * 2 ** 20), 100 * 2 ** 20))

    out = pl.pallas_call(
        kern,
        out_shape=jax.ShapeDtypeStruct(((k + 1) * C, HP, WL), jnp.float32),
        grid=(NT,),
        in_specs=[
            pl.BlockSpec((1, C, HT, WL), lambda i: (i, 0, 0, 0)),
            pl.BlockSpec((1, E, HT, WL), lambda i: (i, 0, 0, 0)),
            pl.BlockSpec((1, E, HT, WL), lambda i: (i, 0, 0, 0)),
            pl.BlockSpec((1, 1, HT, WL), lambda i: (i, 0, 0, 0)),
            pl.BlockSpec((1, C, HT, WL), lambda i: (i, 0, 0, 0)),
        ],
        out_specs=pl.BlockSpec(((k + 1) * C, TH, WL), lambda i: (0, i, 0)),
        compiler_params=pltpu.CompilerParams(
            dimension_semantics=("parallel",),
            vmem_limit_bytes=vmem_limit),
    )(xs_, xes_, yes_, lts_, ys_)

    # Crop the module's 1-pixel pad and the tiling / lane padding.
    z = out[:, 1:1 + Hi, COFF + 1:COFF + 1 + Wi]
    return z[None]


if __name__ == "__main__":
    key = jax.random.PRNGKey(0)
    kx, ke, kt = jax.random.split(key, 3)
    t, C, E, Hi, Wi = 1, 4, 3, 16, 16
    x = jax.random.normal(kx, (t, C, Hi, Wi), jnp.float32)
    xe = jax.random.normal(ke, (t, E, Hi, Wi), jnp.float32)
    log_temp = 0.1 * jax.random.normal(kt, (t, 1, Hi, Wi), jnp.float32)

    # tile_h=8 => 3 height tiles (working height 18), exercising the halo'd grid.
    out = n3_aggregation_2d(x, xe, ye=None, y=None, log_temp=log_temp,
                            k=3, patchsize=3, ws=3, tile_h=8)
    out = jax.block_until_ready(out)
    assert out.shape == (1, C + 3 * C, Hi, Wi), out.shape
    assert not bool(jnp.any(jnp.isnan(out)))
    print("KERNEL_OK")
</pallas_src>

<mosaic_0001>
module attributes {stable_mosaic.version = 11 : i64} {
  func.func @_n3agg_kernel(%arg0: i32, %arg1: memref<1x4x14x128xf32, #tpu.memory_space<vmem>>, %arg2: memref<1x3x14x128xf32, #tpu.memory_space<vmem>>, %arg3: memref<1x3x14x128xf32, #tpu.memory_space<vmem>>, %arg4: memref<1x1x14x128xf32, #tpu.memory_space<vmem>>, %arg5: memref<1x4x14x128xf32, #tpu.memory_space<vmem>>, %arg6: memref<16x8x128xf32, #tpu.memory_space<vmem>>) attributes {dimension_semantics = [#tpu.dimension_semantics<parallel>], iteration_bounds = array<i64: 3>, scalar_prefetch = 0 : i64, scratch_operands = 0 : i64, tpu.core_type = #tpu.core_type<tc>, window_params = [{transform_indices = @transform_0, window_bounds = array<i64: 1, 4, 14, 128>}, {transform_indices = @transform_1, window_bounds = array<i64: 1, 3, 14, 128>}, {transform_indices = @transform_2, window_bounds = array<i64: 1, 3, 14, 128>}, {transform_indices = @transform_3, window_bounds = array<i64: 1, 1, 14, 128>}, {transform_indices = @transform_4, window_bounds = array<i64: 1, 4, 14, 128>}, {transform_indices = @transform_5, window_bounds = array<i64: 16, 8, 128>}]} {
    %c8_i32 = arith.constant 8 : i32
    %0 = arith.muli %arg0, %c8_i32 : i32
    %c0 = arith.constant 0 : index
    %c0_0 = arith.constant 0 : index
    %c1 = arith.constant 1 : index
    %c0_1 = arith.constant 0 : index
    %1 = vector.load %arg4[%c0, %c0_0, %c1, %c0_1] : memref<1x1x14x128xf32, #tpu.memory_space<vmem>>, vector<1x1x12x128xf32>
    %2 = vector.shape_cast %1 : vector<1x1x12x128xf32> to vector<12x128xf32>
    %3 = vector.extract_strided_slice %2 {offsets = [0, 0], sizes = [10, 128], strides = [1, 1]} : vector<12x128xf32> to vector<10x128xf32>
    %4 = vector.extract_strided_slice %2 {offsets = [1, 0], sizes = [10, 128], strides = [1, 1]} : vector<12x128xf32> to vector<10x128xf32>
    %5 = arith.addf %3, %4 : vector<10x128xf32>
    %6 = vector.extract_strided_slice %2 {offsets = [2, 0], sizes = [10, 128], strides = [1, 1]} : vector<12x128xf32> to vector<10x128xf32>
    %7 = arith.addf %5, %6 : vector<10x128xf32>
    %c1_i32 = arith.constant 1 : i32
    %8 = tpu.dynamic_rotate %7 by %c1_i32 dim 1 : vector<10x128xf32>, i32 -> vector<10x128xf32>
    %9 = arith.addf %8, %7 : vector<10x128xf32>
    %c127_i32 = arith.constant 127 : i32
    %10 = tpu.dynamic_rotate %7 by %c127_i32 dim 1 : vector<10x128xf32>, i32 -> vector<10x128xf32>
    %11 = arith.addf %9, %10 : vector<10x128xf32>
    %cst = arith.constant -0.111111112 : f32
    %12 = vector.broadcast %cst : f32 to vector<10x128xf32>
    %13 = arith.mulf %11, %12 : vector<10x128xf32>
    %14 = math.exp %13 : vector<10x128xf32>
    %cst_2 = arith.constant 0.000000e+00 : f32
    %15 = vector.broadcast %cst_2 : f32 to vector<10x128xf32>
    %16 = arith.subf %15, %14 : vector<10x128xf32>
    %c0_3 = arith.constant 0 : index
    %c0_4 = arith.constant 0 : index
    %c1_5 = arith.constant 1 : index
    %c0_6 = arith.constant 0 : index
    %17 = vector.load %arg3[%c0_3, %c0_4, %c1_5, %c0_6] : memref<1x3x14x128xf32, #tpu.memory_space<vmem>>, vector<1x1x12x128xf32>
    %18 = vector.shape_cast %17 : vector<1x1x12x128xf32> to vector<12x128xf32>
    %19 = arith.mulf %18, %18 : vector<12x128xf32>
    %c0_7 = arith.constant 0 : index
    %c1_8 = arith.constant 1 : index
    %c1_9 = arith.constant 1 : index
    %c0_10 = arith.constant 0 : index
    %20 = vector.load %arg3[%c0_7, %c1_8, %c1_9, %c0_10] : memref<1x3x14x128xf32, #tpu.memory_space<vmem>>, vector<1x1x12x128xf32>
    %21 = vector.shape_cast %20 : vector<1x1x12x128xf32> to vector<12x128xf32>
    %22 = arith.mulf %21, %21 : vector<12x128xf32>
    %23 = arith.addf %19, %22 : vector<12x128xf32>
    %c0_11 = arith.constant 0 : index
    %c2 = arith.constant 2 : index
    %c1_12 = arith.constant 1 : index
    %c0_13 = arith.constant 0 : index
    %24 = vector.load %arg3[%c0_11, %c2, %c1_12, %c0_13] : memref<1x3x14x128xf32, #tpu.memory_space<vmem>>, vector<1x1x12x128xf32>
    %25 = vector.shape_cast %24 : vector<1x1x12x128xf32> to vector<12x128xf32>
    %26 = arith.mulf %25, %25 : vector<12x128xf32>
    %27 = arith.addf %23, %26 : vector<12x128xf32>
    %28 = vector.extract_strided_slice %27 {offsets = [0, 0], sizes = [10, 128], strides = [1, 1]} : vector<12x128xf32> to vector<10x128xf32>
    %29 = vector.extract_strided_slice %27 {offsets = [1, 0], sizes = [10, 128], strides = [1, 1]} : vector<12x128xf32> to vector<10x128xf32>
    %30 = arith.addf %28, %29 : vector<10x128xf32>
    %31 = vector.extract_strided_slice %27 {offsets = [2, 0], sizes = [10, 128], strides = [1, 1]} : vector<12x128xf32> to vector<10x128xf32>
    %32 = arith.addf %30, %31 : vector<10x128xf32>
    %c1_i32_14 = arith.constant 1 : i32
    %33 = tpu.dynamic_rotate %32 by %c1_i32_14 dim 1 : vector<10x128xf32>, i32 -> vector<10x128xf32>
    %34 = arith.addf %33, %32 : vector<10x128xf32>
    %c127_i32_15 = arith.constant 127 : i32
    %35 = tpu.dynamic_rotate %32 by %c127_i32_15 dim 1 : vector<10x128xf32>, i32 -> vector<10x128xf32>
    %36 = arith.addf %34, %35 : vector<10x128xf32>
    %c0_16 = arith.constant 0 : index
    %c0_17 = arith.constant 0 : index
    %c0_18 = arith.constant 0 : index
    %c0_19 = arith.constant 0 : index
    %37 = vector.load %arg2[%c0_16, %c0_17, %c0_18, %c0_19] : memref<1x3x14x128xf32, #tpu.memory_space<vmem>>, vector<1x1x14x128xf32>
    %38 = vector.shape_cast %37 : vector<1x1x14x128xf32> to vector<14x128xf32>
    %39 = arith.mulf %38, %38 : vector<14x128xf32>
    %c0_20 = arith.constant 0 : index
    %c1_21 = arith.constant 1 : index
    %c0_22 = arith.constant 0 : index
    %c0_23 = arith.constant 0 : index
    %40 = vector.load %arg2[%c0_20, %c1_21, %c0_22, %c0_23] : memref<1x3x14x128xf32, #tpu.memory_space<vmem>>, vector<1x1x14x128xf32>
    %41 = vector.shape_cast %40 : vector<1x1x14x128xf32> to vector<14x128xf32>
    %42 = arith.mulf %41, %41 : vector<14x128xf32>
    %43 = arith.addf %39, %42 : vector<14x128xf32>
    %c0_24 = arith.constant 0 : index
    %c2_25 = arith.constant 2 : index
    %c0_26 = arith.constant 0 : index
    %c0_27 = arith.constant 0 : index
    %44 = vector.load %arg2[%c0_24, %c2_25, %c0_26, %c0_27] : memref<1x3x14x128xf32, #tpu.memory_space<vmem>>, vector<1x1x14x128xf32>
    %45 = vector.shape_cast %44 : vector<1x1x14x128xf32> to vector<14x128xf32>
    %46 = arith.mulf %45, %45 : vector<14x128xf32>
    %47 = arith.addf %43, %46 : vector<14x128xf32>
    %48 = vector.extract_strided_slice %47 {offsets = [0, 0], sizes = [12, 128], strides = [1, 1]} : vector<14x128xf32> to vector<12x128xf32>
    %49 = vector.extract_strided_slice %47 {offsets = [1, 0], sizes = [12, 128], strides = [1, 1]} : vector<14x128xf32> to vector<12x128xf32>
    %50 = arith.addf %48, %49 : vector<12x128xf32>
    %51 = vector.extract_strided_slice %47 {offsets = [2, 0], sizes = [12, 128], strides = [1, 1]} : vector<14x128xf32> to vector<12x128xf32>
    %52 = arith.addf %50, %51 : vector<12x128xf32>
    %c1_i32_28 = arith.constant 1 : i32
    %53 = tpu.dynamic_rotate %52 by %c1_i32_28 dim 1 : vector<12x128xf32>, i32 -> vector<12x128xf32>
    %54 = arith.addf %53, %52 : vector<12x128xf32>
    %c127_i32_29 = arith.constant 127 : i32
    %55 = tpu.dynamic_rotate %52 by %c127_i32_29 dim 1 : vector<12x128xf32>, i32 -> vector<12x128xf32>
    %56 = arith.addf %54, %55 : vector<12x128xf32>
    %c1_i32_30 = arith.constant 1 : i32
    %57 = arith.subi %0, %c1_i32_30 : i32
    %58 = tpu.iota {dimensions = array<i32: 0>} : vector<10x128xi32>
    %59 = vector.broadcast %57 : i32 to vector<10x128xi32>
    %60 = arith.addi %59, %58 : vector<10x128xi32>
    %61 = tpu.iota {dimensions = array<i32: 1>} : vector<10x128xi32>
    %c2_i32 = arith.constant 2 : i32
    %62 = vector.broadcast %c2_i32 : i32 to vector<10x128xi32>
    %63 = arith.subi %61, %62 : vector<10x128xi32>
    %c0_i32 = arith.constant 0 : i32
    %64 = vector.broadcast %c0_i32 : i32 to vector<10x128xi32>
    %65 = arith.cmpi sge, %60, %64 : vector<10x128xi32>
    %c18_i32 = arith.constant 18 : i32
    %66 = vector.broadcast %c18_i32 : i32 to vector<10x128xi32>
    %67 = arith.cmpi slt, %60, %66 : vector<10x128xi32>
    %68 = arith.andi %65, %67 : vector<10x128xi1>
    %c0_i32_31 = arith.constant 0 : i32
    %69 = vector.broadcast %c0_i32_31 : i32 to vector<10x128xi32>
    %70 = arith.cmpi sge, %63, %69 : vector<10x128xi32>
    %71 = arith.andi %68, %70 : vector<10x128xi1>
    %c18_i32_32 = arith.constant 18 : i32
    %72 = vector.broadcast %c18_i32_32 : i32 to vector<10x128xi32>
    %73 = arith.cmpi slt, %63, %72 : vector<10x128xi32>
    %74 = arith.andi %71, %73 : vector<10x128xi1>
    %75 = arith.extui %74 : vector<10x128xi1> to vector<10x128xi32>
    %76 = arith.sitofp %75 : vector<10x128xi32> to vector<10x128xf32>
    %c0_33 = arith.constant 0 : index
    %c0_34 = arith.constant 0 : index
    %c1_35 = arith.constant 1 : index
    %c0_36 = arith.constant 0 : index
    %77 = vector.load %arg3[%c0_33, %c0_34, %c1_35, %c0_36] : memref<1x3x14x128xf32, #tpu.memory_space<vmem>>, vector<1x1x12x128xf32>
    %78 = vector.shape_cast %77 : vector<1x1x12x128xf32> to vector<12x128xf32>
    %c0_37 = arith.constant 0 : index
    %c0_38 = arith.constant 0 : index
    %c0_39 = arith.constant 0 : index
    %c0_40 = arith.constant 0 : index
    %79 = vector.load %arg2[%c0_37, %c0_38, %c0_39, %c0_40] : memref<1x3x14x128xf32, #tpu.memory_space<vmem>>, vector<1x1x12x128xf32>
    %80 = vector.shape_cast %79 : vector<1x1x12x128xf32> to vector<12x128xf32>
    %c1_i32_41 = arith.constant 1 : i32
    %81 = tpu.dynamic_rotate %80 by %c1_i32_41 dim 1 : vector<12x128xf32>, i32 -> vector<12x128xf32>
    %82 = arith.mulf %78, %81 : vector<12x128xf32>
    %c0_42 = arith.constant 0 : index
    %c1_43 = arith.constant 1 : index
    %c1_44 = arith.constant 1 : index
    %c0_45 = arith.constant 0 : index
    %83 = vector.load %arg3[%c0_42, %c1_43, %c1_44, %c0_45] : memref<1x3x14x128xf32, #tpu.memory_space<vmem>>, vector<1x1x12x128xf32>
    %84 = vector.shape_cast %83 : vector<1x1x12x128xf32> to vector<12x128xf32>
    %c0_46 = arith.constant 0 : index
    %c1_47 = arith.constant 1 : index
    %c0_48 = arith.constant 0 : index
    %c0_49 = arith.constant 0 : index
    %85 = vector.load %arg2[%c0_46, %c1_47, %c0_48, %c0_49] : memref<1x3x14x128xf32, #tpu.memory_space<vmem>>, vector<1x1x12x128xf32>
    %86 = vector.shape_cast %85 : vector<1x1x12x128xf32> to vector<12x128xf32>
    %c1_i32_50 = arith.constant 1 : i32
    %87 = tpu.dynamic_rotate %86 by %c1_i32_50 dim 1 : vector<12x128xf32>, i32 -> vector<12x128xf32>
    %88 = arith.mulf %84, %87 : vector<12x128xf32>
    %89 = arith.addf %82, %88 : vector<12x128xf32>
    %c0_51 = arith.constant 0 : index
    %c2_52 = arith.constant 2 : index
    %c1_53 = arith.constant 1 : index
    %c0_54 = arith.constant 0 : index
    %90 = vector.load %arg3[%c0_51, %c2_52, %c1_53, %c0_54] : memref<1x3x14x128xf32, #tpu.memory_space<vmem>>, vector<1x1x12x128xf32>
    %91 = vector.shape_cast %90 : vector<1x1x12x128xf32> to vector<12x128xf32>
    %c0_55 = arith.constant 0 : index
    %c2_56 = arith.constant 2 : index
    %c0_57 = arith.constant 0 : index
    %c0_58 = arith.constant 0 : index
    %92 = vector.load %arg2[%c0_55, %c2_56, %c0_57, %c0_58] : memref<1x3x14x128xf32, #tpu.memory_space<vmem>>, vector<1x1x12x128xf32>
    %93 = vector.shape_cast %92 : vector<1x1x12x128xf32> to vector<12x128xf32>
    %c1_i32_59 = arith.constant 1 : i32
    %94 = tpu.dynamic_rotate %93 by %c1_i32_59 dim 1 : vector<12x128xf32>, i32 -> vector<12x128xf32>
    %95 = arith.mulf %91, %94 : vector<12x128xf32>
    %96 = arith.addf %89, %95 : vector<12x128xf32>
    %97 = vector.extract_strided_slice %56 {offsets = [0, 0], sizes = [10, 128], strides = [1, 1]} : vector<12x128xf32> to vector<10x128xf32>
    %c1_i32_60 = arith.constant 1 : i32
    %98 = tpu.dynamic_rotate %97 by %c1_i32_60 dim 1 : vector<10x128xf32>, i32 -> vector<10x128xf32>
    %99 = arith.addf %36, %98 : vector<10x128xf32>
    %100 = vector.extract_strided_slice %96 {offsets = [0, 0], sizes = [10, 128], strides = [1, 1]} : vector<12x128xf32> to vector<10x128xf32>
    %101 = vector.extract_strided_slice %96 {offsets = [1, 0], sizes = [10, 128], strides = [1, 1]} : vector<12x128xf32> to vector<10x128xf32>
    %102 = arith.addf %100, %101 : vector<10x128xf32>
    %103 = vector.extract_strided_slice %96 {offsets = [2, 0], sizes = [10, 128], strides = [1, 1]} : vector<12x128xf32> to vector<10x128xf32>
    %104 = arith.addf %102, %103 : vector<10x128xf32>
    %c1_i32_61 = arith.constant 1 : i32
    %105 = tpu.dynamic_rotate %104 by %c1_i32_61 dim 1 : vector<10x128xf32>, i32 -> vector<10x128xf32>
    %106 = arith.addf %105, %104 : vector<10x128xf32>
    %c127_i32_62 = arith.constant 127 : i32
    %107 = tpu.dynamic_rotate %104 by %c127_i32_62 dim 1 : vector<10x128xf32>, i32 -> vector<10x128xf32>
    %108 = arith.addf %106, %107 : vector<10x128xf32>
    %cst_63 = arith.constant 2.000000e+00 : f32
    %109 = vector.broadcast %cst_63 : f32 to vector<10x128xf32>
    %110 = arith.mulf %109, %108 : vector<10x128xf32>
    %111 = arith.subf %99, %110 : vector<10x128xf32>
    %c-1_i32 = arith.constant -1 : i32
    %112 = vector.broadcast %c-1_i32 : i32 to vector<10x128xi32>
    %113 = arith.addi %60, %112 : vector<10x128xi32>
    %c0_i32_64 = arith.constant 0 : i32
    %114 = vector.broadcast %c0_i32_64 : i32 to vector<10x128xi32>
    %115 = arith.cmpi sge, %113, %114 : vector<10x128xi32>
    %c-1_i32_65 = arith.constant -1 : i32
    %116 = vector.broadcast %c-1_i32_65 : i32 to vector<10x128xi32>
    %117 = arith.addi %60, %116 : vector<10x128xi32>
    %c18_i32_66 = arith.constant 18 : i32
    %118 = vector.broadcast %c18_i32_66 : i32 to vector<10x128xi32>
    %119 = arith.cmpi slt, %117, %118 : vector<10x128xi32>
    %120 = arith.andi %115, %119 : vector<10x128xi1>
    %c-1_i32_67 = arith.constant -1 : i32
    %121 = vector.broadcast %c-1_i32_67 : i32 to vector<10x128xi32>
    %122 = arith.addi %63, %121 : vector<10x128xi32>
    %c0_i32_68 = arith.constant 0 : i32
    %123 = vector.broadcast %c0_i32_68 : i32 to vector<10x128xi32>
    %124 = arith.cmpi sge, %122, %123 : vector<10x128xi32>
    %125 = arith.andi %120, %124 : vector<10x128xi1>
    %c-1_i32_69 = arith.constant -1 : i32
    %126 = vector.broadcast %c-1_i32_69 : i32 to vector<10x128xi32>
    %127 = arith.addi %63, %126 : vector<10x128xi32>
    %c18_i32_70 = arith.constant 18 : i32
    %128 = vector.broadcast %c18_i32_70 : i32 to vector<10x128xi32>
    %129 = arith.cmpi slt, %127, %128 : vector<10x128xi32>
    %130 = arith.andi %125, %129 : vector<10x128xi1>
    %131 = arith.mulf %111, %16 : vector<10x128xf32>
    %cst_71 = arith.constant -1.000000e+30 : f32
    %132 = vector.broadcast %cst_71 : f32 to vector<10x128xf32>
    %133 = arith.select %130, %131, %132 : vector<10x128xi1>, vector<10x128xf32>
    %c0_72 = arith.constant 0 : index
    %c0_73 = arith.constant 0 : index
    %c1_74 = arith.constant 1 : index
    %c0_75 = arith.constant 0 : index
    %134 = vector.load %arg3[%c0_72, %c0_73, %c1_74, %c0_75] : memref<1x3x14x128xf32, #tpu.memory_space<vmem>>, vector<1x1x12x128xf32>
    %135 = vector.shape_cast %134 : vector<1x1x12x128xf32> to vector<12x128xf32>
    %c0_76 = arith.constant 0 : index
    %c0_77 = arith.constant 0 : index
    %c0_78 = arith.constant 0 : index
    %c0_79 = arith.constant 0 : index
    %136 = vector.load %arg2[%c0_76, %c0_77, %c0_78, %c0_79] : memref<1x3x14x128xf32, #tpu.memory_space<vmem>>, vector<1x1x12x128xf32>
    %137 = vector.shape_cast %136 : vector<1x1x12x128xf32> to vector<12x128xf32>
    %138 = arith.mulf %135, %137 : vector<12x128xf32>
    %c0_80 = arith.constant 0 : index
    %c1_81 = arith.constant 1 : index
    %c1_82 = arith.constant 1 : index
    %c0_83 = arith.constant 0 : index
    %139 = vector.load %arg3[%c0_80, %c1_81, %c1_82, %c0_83] : memref<1x3x14x128xf32, #tpu.memory_space<vmem>>, vector<1x1x12x128xf32>
    %140 = vector.shape_cast %139 : vector<1x1x12x128xf32> to vector<12x128xf32>
    %c0_84 = arith.constant 0 : index
    %c1_85 = arith.constant 1 : index
    %c0_86 = arith.constant 0 : index
    %c0_87 = arith.constant 0 : index
    %141 = vector.load %arg2[%c0_84, %c1_85, %c0_86, %c0_87] : memref<1x3x14x128xf32, #tpu.memory_space<vmem>>, vector<1x1x12x128xf32>
    %142 = vector.shape_cast %141 : vector<1x1x12x128xf32> to vector<12x128xf32>
    %143 = arith.mulf %140, %142 : vector<12x128xf32>
    %144 = arith.addf %138, %143 : vector<12x128xf32>
    %c0_88 = arith.constant 0 : index
    %c2_89 = arith.constant 2 : index
    %c1_90 = arith.constant 1 : index
    %c0_91 = arith.constant 0 : index
    %145 = vector.load %arg3[%c0_88, %c2_89, %c1_90, %c0_91] : memref<1x3x14x128xf32, #tpu.memory_space<vmem>>, vector<1x1x12x128xf32>
    %146 = vector.shape_cast %145 : vector<1x1x12x128xf32> to vector<12x128xf32>
    %c0_92 = arith.constant 0 : index
    %c2_93 = arith.constant 2 : index
    %c0_94 = arith.constant 0 : index
    %c0_95 = arith.constant 0 : index
    %147 = vector.load %arg2[%c0_92, %c2_93, %c0_94, %c0_95] : memref<1x3x14x128xf32, #tpu.memory_space<vmem>>, vector<1x1x12x128xf32>
    %148 = vector.shape_cast %147 : vector<1x1x12x128xf32> to vector<12x128xf32>
    %149 = arith.mulf %146, %148 : vector<12x128xf32>
    %150 = arith.addf %144, %149 : vector<12x128xf32>
    %151 = vector.extract_strided_slice %56 {offsets = [0, 0], sizes = [10, 128], strides = [1, 1]} : vector<12x128xf32> to vector<10x128xf32>
    %152 = arith.addf %36, %151 : vector<10x128xf32>
    %153 = vector.extract_strided_slice %150 {offsets = [0, 0], sizes = [10, 128], strides = [1, 1]} : vector<12x128xf32> to vector<10x128xf32>
    %154 = vector.extract_strided_slice %150 {offsets = [1, 0], sizes = [10, 128], strides = [1, 1]} : vector<12x128xf32> to vector<10x128xf32>
    %155 = arith.addf %153, %154 : vector<10x128xf32>
    %156 = vector.extract_strided_slice %150 {offsets = [2, 0], sizes = [10, 128], strides = [1, 1]} : vector<12x128xf32> to vector<10x128xf32>
    %157 = arith.addf %155, %156 : vector<10x128xf32>
    %c1_i32_96 = arith.constant 1 : i32
    %158 = tpu.dynamic_rotate %157 by %c1_i32_96 dim 1 : vector<10x128xf32>, i32 -> vector<10x128xf32>
    %159 = arith.addf %158, %157 : vector<10x128xf32>
    %c127_i32_97 = arith.constant 127 : i32
    %160 = tpu.dynamic_rotate %157 by %c127_i32_97 dim 1 : vector<10x128xf32>, i32 -> vector<10x128xf32>
    %161 = arith.addf %159, %160 : vector<10x128xf32>
    %cst_98 = arith.constant 2.000000e+00 : f32
    %162 = vector.broadcast %cst_98 : f32 to vector<10x128xf32>
    %163 = arith.mulf %162, %161 : vector<10x128xf32>
    %164 = arith.subf %152, %163 : vector<10x128xf32>
    %c-1_i32_99 = arith.constant -1 : i32
    %165 = vector.broadcast %c-1_i32_99 : i32 to vector<10x128xi32>
    %166 = arith.addi %60, %165 : vector<10x128xi32>
    %c0_i32_100 = arith.constant 0 : i32
    %167 = vector.broadcast %c0_i32_100 : i32 to vector<10x128xi32>
    %168 = arith.cmpi sge, %166, %167 : vector<10x128xi32>
    %c-1_i32_101 = arith.constant -1 : i32
    %169 = vector.broadcast %c-1_i32_101 : i32 to vector<10x128xi32>
    %170 = arith.addi %60, %169 : vector<10x128xi32>
    %c18_i32_102 = arith.constant 18 : i32
    %171 = vector.broadcast %c18_i32_102 : i32 to vector<10x128xi32>
    %172 = arith.cmpi slt, %170, %171 : vector<10x128xi32>
    %173 = arith.andi %168, %172 : vector<10x128xi1>
    %c0_i32_103 = arith.constant 0 : i32
    %174 = vector.broadcast %c0_i32_103 : i32 to vector<10x128xi32>
    %175 = arith.addi %63, %174 : vector<10x128xi32>
    %c0_i32_104 = arith.constant 0 : i32
    %176 = vector.broadcast %c0_i32_104 : i32 to vector<10x128xi32>
    %177 = arith.cmpi sge, %175, %176 : vector<10x128xi32>
    %178 = arith.andi %173, %177 : vector<10x128xi1>
    %c0_i32_105 = arith.constant 0 : i32
    %179 = vector.broadcast %c0_i32_105 : i32 to vector<10x128xi32>
    %180 = arith.addi %63, %179 : vector<10x128xi32>
    %c18_i32_106 = arith.constant 18 : i32
    %181 = vector.broadcast %c18_i32_106 : i32 to vector<10x128xi32>
    %182 = arith.cmpi slt, %180, %181 : vector<10x128xi32>
    %183 = arith.andi %178, %182 : vector<10x128xi1>
    %184 = arith.mulf %164, %16 : vector<10x128xf32>
    %cst_107 = arith.constant -1.000000e+30 : f32
    %185 = vector.broadcast %cst_107 : f32 to vector<10x128xf32>
    %186 = arith.select %183, %184, %185 : vector<10x128xi1>, vector<10x128xf32>
    %c0_108 = arith.constant 0 : index
    %c0_109 = arith.constant 0 : index
    %c1_110 = arith.constant 1 : index
    %c0_111 = arith.constant 0 : index
    %187 = vector.load %arg3[%c0_108, %c0_109, %c1_110, %c0_111] : memref<1x3x14x128xf32, #tpu.memory_space<vmem>>, vector<1x1x12x128xf32>
    %188 = vector.shape_cast %187 : vector<1x1x12x128xf32> to vector<12x128xf32>
    %c0_112 = arith.constant 0 : index
    %c0_113 = arith.constant 0 : index
    %c0_114 = arith.constant 0 : index
    %c0_115 = arith.constant 0 : index
    %189 = vector.load %arg2[%c0_112, %c0_113, %c0_114, %c0_115] : memref<1x3x14x128xf32, #tpu.memory_space<vmem>>, vector<1x1x12x128xf32>
    %190 = vector.shape_cast %189 : vector<1x1x12x128xf32> to vector<12x128xf32>
    %c127_i32_116 = arith.constant 127 : i32
    %191 = tpu.dynamic_rotate %190 by %c127_i32_116 dim 1 : vector<12x128xf32>, i32 -> vector<12x128xf32>
    %192 = arith.mulf %188, %191 : vector<12x128xf32>
    %c0_117 = arith.constant 0 : index
    %c1_118 = arith.constant 1 : index
    %c1_119 = arith.constant 1 : index
    %c0_120 = arith.constant 0 : index
    %193 = vector.load %arg3[%c0_117, %c1_118, %c1_119, %c0_120] : memref<1x3x14x128xf32, #tpu.memory_space<vmem>>, vector<1x1x12x128xf32>
    %194 = vector.shape_cast %193 : vector<1x1x12x128xf32> to vector<12x128xf32>
    %c0_121 = arith.constant 0 : index
    %c1_122 = arith.constant 1 : index
    %c0_123 = arith.constant 0 : index
    %c0_124 = arith.constant 0 : index
    %195 = vector.load %arg2[%c0_121, %c1_122, %c0_123, %c0_124] : memref<1x3x14x128xf32, #tpu.memory_space<vmem>>, vector<1x1x12x128xf32>
    %196 = vector.shape_cast %195 : vector<1x1x12x128xf32> to vector<12x128xf32>
    %c127_i32_125 = arith.constant 127 : i32
    %197 = tpu.dynamic_rotate %196 by %c127_i32_125 dim 1 : vector<12x128xf32>, i32 -> vector<12x128xf32>
    %198 = arith.mulf %194, %197 : vector<12x128xf32>
    %199 = arith.addf %192, %198 : vector<12x128xf32>
    %c0_126 = arith.constant 0 : index
    %c2_127 = arith.constant 2 : index
    %c1_128 = arith.constant 1 : index
    %c0_129 = arith.constant 0 : index
    %200 = vector.load %arg3[%c0_126, %c2_127, %c1_128, %c0_129] : memref<1x3x14x128xf32, #tpu.memory_space<vmem>>, vector<1x1x12x128xf32>
    %201 = vector.shape_cast %200 : vector<1x1x12x128xf32> to vector<12x128xf32>
    %c0_130 = arith.constant 0 : index
    %c2_131 = arith.constant 2 : index
    %c0_132 = arith.constant 0 : index
    %c0_133 = arith.constant 0 : index
    %202 = vector.load %arg2[%c0_130, %c2_131, %c0_132, %c0_133] : memref<1x3x14x128xf32, #tpu.memory_space<vmem>>, vector<1x1x12x128xf32>
    %203 = vector.shape_cast %202 : vector<1x1x12x128xf32> to vector<12x128xf32>
    %c127_i32_134 = arith.constant 127 : i32
    %204 = tpu.dynamic_rotate %203 by %c127_i32_134 dim 1 : vector<12x128xf32>, i32 -> vector<12x128xf32>
    %205 = arith.mulf %201, %204 : vector<12x128xf32>
    %206 = arith.addf %199, %205 : vector<12x128xf32>
    %207 = vector.extract_strided_slice %56 {offsets = [0, 0], sizes = [10, 128], strides = [1, 1]} : vector<12x128xf32> to vector<10x128xf32>
    %c127_i32_135 = arith.constant 127 : i32
    %208 = tpu.dynamic_rotate %207 by %c127_i32_135 dim 1 : vector<10x128xf32>, i32 -> vector<10x128xf32>
    %209 = arith.addf %36, %208 : vector<10x128xf32>
    %210 = vector.extract_strided_slice %206 {offsets = [0, 0], sizes = [10, 128], strides = [1, 1]} : vector<12x128xf32> to vector<10x128xf32>
    %211 = vector.extract_strided_slice %206 {offsets = [1, 0], sizes = [10, 128], strides = [1, 1]} : vector<12x128xf32> to vector<10x128xf32>
    %212 = arith.addf %210, %211 : vector<10x128xf32>
    %213 = vector.extract_strided_slice %206 {offsets = [2, 0], sizes = [10, 128], strides = [1, 1]} : vector<12x128xf32> to vector<10x128xf32>
    %214 = arith.addf %212, %213 : vector<10x128xf32>
    %c1_i32_136 = arith.constant 1 : i32
    %215 = tpu.dynamic_rotate %214 by %c1_i32_136 dim 1 : vector<10x128xf32>, i32 -> vector<10x128xf32>
    %216 = arith.addf %215, %214 : vector<10x128xf32>
    %c127_i32_137 = arith.constant 127 : i32
    %217 = tpu.dynamic_rotate %214 by %c127_i32_137 dim 1 : vector<10x128xf32>, i32 -> vector<10x128xf32>
    %218 = arith.addf %216, %217 : vector<10x128xf32>
    %cst_138 = arith.constant 2.000000e+00 : f32
    %219 = vector.broadcast %cst_138 : f32 to vector<10x128xf32>
    %220 = arith.mulf %219, %218 : vector<10x128xf32>
    %221 = arith.subf %209, %220 : vector<10x128xf32>
    %c-1_i32_139 = arith.constant -1 : i32
    %222 = vector.broadcast %c-1_i32_139 : i32 to vector<10x128xi32>
    %223 = arith.addi %60, %222 : vector<10x128xi32>
    %c0_i32_140 = arith.constant 0 : i32
    %224 = vector.broadcast %c0_i32_140 : i32 to vector<10x128xi32>
    %225 = arith.cmpi sge, %223, %224 : vector<10x128xi32>
    %c-1_i32_141 = arith.constant -1 : i32
    %226 = vector.broadcast %c-1_i32_141 : i32 to vector<10x128xi32>
    %227 = arith.addi %60, %226 : vector<10x128xi32>
    %c18_i32_142 = arith.constant 18 : i32
    %228 = vector.broadcast %c18_i32_142 : i32 to vector<10x128xi32>
    %229 = arith.cmpi slt, %227, %228 : vector<10x128xi32>
    %230 = arith.andi %225, %229 : vector<10x128xi1>
    %c1_i32_143 = arith.constant 1 : i32
    %231 = vector.broadcast %c1_i32_143 : i32 to vector<10x128xi32>
    %232 = arith.addi %63, %231 : vector<10x128xi32>
    %c0_i32_144 = arith.constant 0 : i32
    %233 = vector.broadcast %c0_i32_144 : i32 to vector<10x128xi32>
    %234 = arith.cmpi sge, %232, %233 : vector<10x128xi32>
    %235 = arith.andi %230, %234 : vector<10x128xi1>
    %c1_i32_145 = arith.constant 1 : i32
    %236 = vector.broadcast %c1_i32_145 : i32 to vector<10x128xi32>
    %237 = arith.addi %63, %236 : vector<10x128xi32>
    %c18_i32_146 = arith.constant 18 : i32
    %238 = vector.broadcast %c18_i32_146 : i32 to vector<10x128xi32>
    %239 = arith.cmpi slt, %237, %238 : vector<10x128xi32>
    %240 = arith.andi %235, %239 : vector<10x128xi1>
    %241 = arith.mulf %221, %16 : vector<10x128xf32>
    %cst_147 = arith.constant -1.000000e+30 : f32
    %242 = vector.broadcast %cst_147 : f32 to vector<10x128xf32>
    %243 = arith.select %240, %241, %242 : vector<10x128xi1>, vector<10x128xf32>
    %c0_148 = arith.constant 0 : index
    %c0_149 = arith.constant 0 : index
    %c1_150 = arith.constant 1 : index
    %c0_151 = arith.constant 0 : index
    %244 = vector.load %arg3[%c0_148, %c0_149, %c1_150, %c0_151] : memref<1x3x14x128xf32, #tpu.memory_space<vmem>>, vector<1x1x12x128xf32>
    %245 = vector.shape_cast %244 : vector<1x1x12x128xf32> to vector<12x128xf32>
    %c0_152 = arith.constant 0 : index
    %c0_153 = arith.constant 0 : index
    %c1_154 = arith.constant 1 : index
    %c0_155 = arith.constant 0 : index
    %246 = vector.load %arg2[%c0_152, %c0_153, %c1_154, %c0_155] : memref<1x3x14x128xf32, #tpu.memory_space<vmem>>, vector<1x1x12x128xf32>
    %247 = vector.shape_cast %246 : vector<1x1x12x128xf32> to vector<12x128xf32>
    %c1_i32_156 = arith.constant 1 : i32
    %248 = tpu.dynamic_rotate %247 by %c1_i32_156 dim 1 : vector<12x128xf32>, i32 -> vector<12x128xf32>
    %249 = arith.mulf %245, %248 : vector<12x128xf32>
    %c0_157 = arith.constant 0 : index
    %c1_158 = arith.constant 1 : index
    %c1_159 = arith.constant 1 : index
    %c0_160 = arith.constant 0 : index
    %250 = vector.load %arg3[%c0_157, %c1_158, %c1_159, %c0_160] : memref<1x3x14x128xf32, #tpu.memory_space<vmem>>, vector<1x1x12x128xf32>
    %251 = vector.shape_cast %250 : vector<1x1x12x128xf32> to vector<12x128xf32>
    %c0_161 = arith.constant 0 : index
    %c1_162 = arith.constant 1 : index
    %c1_163 = arith.constant 1 : index
    %c0_164 = arith.constant 0 : index
    %252 = vector.load %arg2[%c0_161, %c1_162, %c1_163, %c0_164] : memref<1x3x14x128xf32, #tpu.memory_space<vmem>>, vector<1x1x12x128xf32>
    %253 = vector.shape_cast %252 : vector<1x1x12x128xf32> to vector<12x128xf32>
    %c1_i32_165 = arith.constant 1 : i32
    %254 = tpu.dynamic_rotate %253 by %c1_i32_165 dim 1 : vector<12x128xf32>, i32 -> vector<12x128xf32>
    %255 = arith.mulf %251, %254 : vector<12x128xf32>
    %256 = arith.addf %249, %255 : vector<12x128xf32>
    %c0_166 = arith.constant 0 : index
    %c2_167 = arith.constant 2 : index
    %c1_168 = arith.constant 1 : index
    %c0_169 = arith.constant 0 : index
    %257 = vector.load %arg3[%c0_166, %c2_167, %c1_168, %c0_169] : memref<1x3x14x128xf32, #tpu.memory_space<vmem>>, vector<1x1x12x128xf32>
    %258 = vector.shape_cast %257 : vector<1x1x12x128xf32> to vector<12x128xf32>
    %c0_170 = arith.constant 0 : index
    %c2_171 = arith.constant 2 : index
    %c1_172 = arith.constant 1 : index
    %c0_173 = arith.constant 0 : index
    %259 = vector.load %arg2[%c0_170, %c2_171, %c1_172, %c0_173] : memref<1x3x14x128xf32, #tpu.memory_space<vmem>>, vector<1x1x12x128xf32>
    %260 = vector.shape_cast %259 : vector<1x1x12x128xf32> to vector<12x128xf32>
    %c1_i32_174 = arith.constant 1 : i32
    %261 = tpu.dynamic_rotate %260 by %c1_i32_174 dim 1 : vector<12x128xf32>, i32 -> vector<12x128xf32>
    %262 = arith.mulf %258, %261 : vector<12x128xf32>
    %263 = arith.addf %256, %262 : vector<12x128xf32>
    %264 = vector.extract_strided_slice %56 {offsets = [1, 0], sizes = [10, 128], strides = [1, 1]} : vector<12x128xf32> to vector<10x128xf32>
    %c1_i32_175 = arith.constant 1 : i32
    %265 = tpu.dynamic_rotate %264 by %c1_i32_175 dim 1 : vector<10x128xf32>, i32 -> vector<10x128xf32>
    %266 = arith.addf %36, %265 : vector<10x128xf32>
    %267 = vector.extract_strided_slice %263 {offsets = [0, 0], sizes = [10, 128], strides = [1, 1]} : vector<12x128xf32> to vector<10x128xf32>
    %268 = vector.extract_strided_slice %263 {offsets = [1, 0], sizes = [10, 128], strides = [1, 1]} : vector<12x128xf32> to vector<10x128xf32>
    %269 = arith.addf %267, %268 : vector<10x128xf32>
    %270 = vector.extract_strided_slice %263 {offsets = [2, 0], sizes = [10, 128], strides = [1, 1]} : vector<12x128xf32> to vector<10x128xf32>
    %271 = arith.addf %269, %270 : vector<10x128xf32>
    %c1_i32_176 = arith.constant 1 : i32
    %272 = tpu.dynamic_rotate %271 by %c1_i32_176 dim 1 : vector<10x128xf32>, i32 -> vector<10x128xf32>
    %273 = arith.addf %272, %271 : vector<10x128xf32>
    %c127_i32_177 = arith.constant 127 : i32
    %274 = tpu.dynamic_rotate %271 by %c127_i32_177 dim 1 : vector<10x128xf32>, i32 -> vector<10x128xf32>
    %275 = arith.addf %273, %274 : vector<10x128xf32>
    %cst_178 = arith.constant 2.000000e+00 : f32
    %276 = vector.broadcast %cst_178 : f32 to vector<10x128xf32>
    %277 = arith.mulf %276, %275 : vector<10x128xf32>
    %278 = arith.subf %266, %277 : vector<10x128xf32>
    %c0_i32_179 = arith.constant 0 : i32
    %279 = vector.broadcast %c0_i32_179 : i32 to vector<10x128xi32>
    %280 = arith.addi %60, %279 : vector<10x128xi32>
    %c0_i32_180 = arith.constant 0 : i32
    %281 = vector.broadcast %c0_i32_180 : i32 to vector<10x128xi32>
    %282 = arith.cmpi sge, %280, %281 : vector<10x128xi32>
    %c0_i32_181 = arith.constant 0 : i32
    %283 = vector.broadcast %c0_i32_181 : i32 to vector<10x128xi32>
    %284 = arith.addi %60, %283 : vector<10x128xi32>
    %c18_i32_182 = arith.constant 18 : i32
    %285 = vector.broadcast %c18_i32_182 : i32 to vector<10x128xi32>
    %286 = arith.cmpi slt, %284, %285 : vector<10x128xi32>
    %287 = arith.andi %282, %286 : vector<10x128xi1>
    %c-1_i32_183 = arith.constant -1 : i32
    %288 = vector.broadcast %c-1_i32_183 : i32 to vector<10x128xi32>
    %289 = arith.addi %63, %288 : vector<10x128xi32>
    %c0_i32_184 = arith.constant 0 : i32
    %290 = vector.broadcast %c0_i32_184 : i32 to vector<10x128xi32>
    %291 = arith.cmpi sge, %289, %290 : vector<10x128xi32>
    %292 = arith.andi %287, %291 : vector<10x128xi1>
    %c-1_i32_185 = arith.constant -1 : i32
    %293 = vector.broadcast %c-1_i32_185 : i32 to vector<10x128xi32>
    %294 = arith.addi %63, %293 : vector<10x128xi32>
    %c18_i32_186 = arith.constant 18 : i32
    %295 = vector.broadcast %c18_i32_186 : i32 to vector<10x128xi32>
    %296 = arith.cmpi slt, %294, %295 : vector<10x128xi32>
    %297 = arith.andi %292, %296 : vector<10x128xi1>
    %298 = arith.mulf %278, %16 : vector<10x128xf32>
    %cst_187 = arith.constant -1.000000e+30 : f32
    %299 = vector.broadcast %cst_187 : f32 to vector<10x128xf32>
    %300 = arith.select %297, %298, %299 : vector<10x128xi1>, vector<10x128xf32>
    %cst_188 = arith.constant -1.000000e+30 : f32
    %301 = vector.broadcast %cst_188 : f32 to vector<10x128xf32>
    %c0_189 = arith.constant 0 : index
    %c0_190 = arith.constant 0 : index
    %c1_191 = arith.constant 1 : index
    %c0_192 = arith.constant 0 : index
    %302 = vector.load %arg3[%c0_189, %c0_190, %c1_191, %c0_192] : memref<1x3x14x128xf32, #tpu.memory_space<vmem>>, vector<1x1x12x128xf32>
    %303 = vector.shape_cast %302 : vector<1x1x12x128xf32> to vector<12x128xf32>
    %c0_193 = arith.constant 0 : index
    %c0_194 = arith.constant 0 : index
    %c1_195 = arith.constant 1 : index
    %c0_196 = arith.constant 0 : index
    %304 = vector.load %arg2[%c0_193, %c0_194, %c1_195, %c0_196] : memref<1x3x14x128xf32, #tpu.memory_space<vmem>>, vector<1x1x12x128xf32>
    %305 = vector.shape_cast %304 : vector<1x1x12x128xf32> to vector<12x128xf32>
    %c127_i32_197 = arith.constant 127 : i32
    %306 = tpu.dynamic_rotate %305 by %c127_i32_197 dim 1 : vector<12x128xf32>, i32 -> vector<12x128xf32>
    %307 = arith.mulf %303, %306 : vector<12x128xf32>
    %c0_198 = arith.constant 0 : index
    %c1_199 = arith.constant 1 : index
    %c1_200 = arith.constant 1 : index
    %c0_201 = arith.constant 0 : index
    %308 = vector.load %arg3[%c0_198, %c1_199, %c1_200, %c0_201] : memref<1x3x14x128xf32, #tpu.memory_space<vmem>>, vector<1x1x12x128xf32>
    %309 = vector.shape_cast %308 : vector<1x1x12x128xf32> to vector<12x128xf32>
    %c0_202 = arith.constant 0 : index
    %c1_203 = arith.constant 1 : index
    %c1_204 = arith.constant 1 : index
    %c0_205 = arith.constant 0 : index
    %310 = vector.load %arg2[%c0_202, %c1_203, %c1_204, %c0_205] : memref<1x3x14x128xf32, #tpu.memory_space<vmem>>, vector<1x1x12x128xf32>
    %311 = vector.shape_cast %310 : vector<1x1x12x128xf32> to vector<12x128xf32>
    %c127_i32_206 = arith.constant 127 : i32
    %312 = tpu.dynamic_rotate %311 by %c127_i32_206 dim 1 : vector<12x128xf32>, i32 -> vector<12x128xf32>
    %313 = arith.mulf %309, %312 : vector<12x128xf32>
    %314 = arith.addf %307, %313 : vector<12x128xf32>
    %c0_207 = arith.constant 0 : index
    %c2_208 = arith.constant 2 : index
    %c1_209 = arith.constant 1 : index
    %c0_210 = arith.constant 0 : index
    %315 = vector.load %arg3[%c0_207, %c2_208, %c1_209, %c0_210] : memref<1x3x14x128xf32, #tpu.memory_space<vmem>>, vector<1x1x12x128xf32>
    %316 = vector.shape_cast %315 : vector<1x1x12x128xf32> to vector<12x128xf32>
    %c0_211 = arith.constant 0 : index
    %c2_212 = arith.constant 2 : index
    %c1_213 = arith.constant 1 : index
    %c0_214 = arith.constant 0 : index
    %317 = vector.load %arg2[%c0_211, %c2_212, %c1_213, %c0_214] : memref<1x3x14x128xf32, #tpu.memory_space<vmem>>, vector<1x1x12x128xf32>
    %318 = vector.shape_cast %317 : vector<1x1x12x128xf32> to vector<12x128xf32>
    %c127_i32_215 = arith.constant 127 : i32
    %319 = tpu.dynamic_rotate %318 by %c127_i32_215 dim 1 : vector<12x128xf32>, i32 -> vector<12x128xf32>
    %320 = arith.mulf %316, %319 : vector<12x128xf32>
    %321 = arith.addf %314, %320 : vector<12x128xf32>
    %322 = vector.extract_strided_slice %56 {offsets = [1, 0], sizes = [10, 128], strides = [1, 1]} : vector<12x128xf32> to vector<10x128xf32>
    %c127_i32_216 = arith.constant 127 : i32
    %323 = tpu.dynamic_rotate %322 by %c127_i32_216 dim 1 : vector<10x128xf32>, i32 -> vector<10x128xf32>
    %324 = arith.addf %36, %323 : vector<10x128xf32>
    %325 = vector.extract_strided_slice %321 {offsets = [0, 0], sizes = [10, 128], strides = [1, 1]} : vector<12x128xf32> to vector<10x128xf32>
    %326 = vector.extract_strided_slice %321 {offsets = [1, 0], sizes = [10, 128], strides = [1, 1]} : vector<12x128xf32> to vector<10x128xf32>
    %327 = arith.addf %325, %326 : vector<10x128xf32>
    %328 = vector.extract_strided_slice %321 {offsets = [2, 0], sizes = [10, 128], strides = [1, 1]} : vector<12x128xf32> to vector<10x128xf32>
    %329 = arith.addf %327, %328 : vector<10x128xf32>
    %c1_i32_217 = arith.constant 1 : i32
    %330 = tpu.dynamic_rotate %329 by %c1_i32_217 dim 1 : vector<10x128xf32>, i32 -> vector<10x128xf32>
    %331 = arith.addf %330, %329 : vector<10x128xf32>
    %c127_i32_218 = arith.constant 127 : i32
    %332 = tpu.dynamic_rotate %329 by %c127_i32_218 dim 1 : vector<10x128xf32>, i32 -> vector<10x128xf32>
    %333 = arith.addf %331, %332 : vector<10x128xf32>
    %cst_219 = arith.constant 2.000000e+00 : f32
    %334 = vector.broadcast %cst_219 : f32 to vector<10x128xf32>
    %335 = arith.mulf %334, %333 : vector<10x128xf32>
    %336 = arith.subf %324, %335 : vector<10x128xf32>
    %c0_i32_220 = arith.constant 0 : i32
    %337 = vector.broadcast %c0_i32_220 : i32 to vector<10x128xi32>
    %338 = arith.addi %60, %337 : vector<10x128xi32>
    %c0_i32_221 = arith.constant 0 : i32
    %339 = vector.broadcast %c0_i32_221 : i32 to vector<10x128xi32>
    %340 = arith.cmpi sge, %338, %339 : vector<10x128xi32>
    %c0_i32_222 = arith.constant 0 : i32
    %341 = vector.broadcast %c0_i32_222 : i32 to vector<10x128xi32>
    %342 = arith.addi %60, %341 : vector<10x128xi32>
    %c18_i32_223 = arith.constant 18 : i32
    %343 = vector.broadcast %c18_i32_223 : i32 to vector<10x128xi32>
    %344 = arith.cmpi slt, %342, %343 : vector<10x128xi32>
    %345 = arith.andi %340, %344 : vector<10x128xi1>
    %c1_i32_224 = arith.constant 1 : i32
    %346 = vector.broadcast %c1_i32_224 : i32 to vector<10x128xi32>
    %347 = arith.addi %63, %346 : vector<10x128xi32>
    %c0_i32_225 = arith.constant 0 : i32
    %348 = vector.broadcast %c0_i32_225 : i32 to vector<10x128xi32>
    %349 = arith.cmpi sge, %347, %348 : vector<10x128xi32>
    %350 = arith.andi %345, %349 : vector<10x128xi1>
    %c1_i32_226 = arith.constant 1 : i32
    %351 = vector.broadcast %c1_i32_226 : i32 to vector<10x128xi32>
    %352 = arith.addi %63, %351 : vector<10x128xi32>
    %c18_i32_227 = arith.constant 18 : i32
    %353 = vector.broadcast %c18_i32_227 : i32 to vector<10x128xi32>
    %354 = arith.cmpi slt, %352, %353 : vector<10x128xi32>
    %355 = arith.andi %350, %354 : vector<10x128xi1>
    %356 = arith.mulf %336, %16 : vector<10x128xf32>
    %cst_228 = arith.constant -1.000000e+30 : f32
    %357 = vector.broadcast %cst_228 : f32 to vector<10x128xf32>
    %358 = arith.select %355, %356, %357 : vector<10x128xi1>, vector<10x128xf32>
    %c0_229 = arith.constant 0 : index
    %c0_230 = arith.constant 0 : index
    %c1_231 = arith.constant 1 : index
    %c0_232 = arith.constant 0 : index
    %359 = vector.load %arg3[%c0_229, %c0_230, %c1_231, %c0_232] : memref<1x3x14x128xf32, #tpu.memory_space<vmem>>, vector<1x1x12x128xf32>
    %360 = vector.shape_cast %359 : vector<1x1x12x128xf32> to vector<12x128xf32>
    %c0_233 = arith.constant 0 : index
    %c0_234 = arith.constant 0 : index
    %c2_235 = arith.constant 2 : index
    %c0_236 = arith.constant 0 : index
    %361 = vector.load %arg2[%c0_233, %c0_234, %c2_235, %c0_236] : memref<1x3x14x128xf32, #tpu.memory_space<vmem>>, vector<1x1x12x128xf32>
    %362 = vector.shape_cast %361 : vector<1x1x12x128xf32> to vector<12x128xf32>
    %c1_i32_237 = arith.constant 1 : i32
    %363 = tpu.dynamic_rotate %362 by %c1_i32_237 dim 1 : vector<12x128xf32>, i32 -> vector<12x128xf32>
    %364 = arith.mulf %360, %363 : vector<12x128xf32>
    %c0_238 = arith.constant 0 : index
    %c1_239 = arith.constant 1 : index
    %c1_240 = arith.constant 1 : index
    %c0_241 = arith.constant 0 : index
    %365 = vector.load %arg3[%c0_238, %c1_239, %c1_240, %c0_241] : memref<1x3x14x128xf32, #tpu.memory_space<vmem>>, vector<1x1x12x128xf32>
    %366 = vector.shape_cast %365 : vector<1x1x12x128xf32> to vector<12x128xf32>
    %c0_242 = arith.constant 0 : index
    %c1_243 = arith.constant 1 : index
    %c2_244 = arith.constant 2 : index
    %c0_245 = arith.constant 0 : index
    %367 = vector.load %arg2[%c0_242, %c1_243, %c2_244, %c0_245] : memref<1x3x14x128xf32, #tpu.memory_space<vmem>>, vector<1x1x12x128xf32>
    %368 = vector.shape_cast %367 : vector<1x1x12x128xf32> to vector<12x128xf32>
    %c1_i32_246 = arith.constant 1 : i32
    %369 = tpu.dynamic_rotate %368 by %c1_i32_246 dim 1 : vector<12x128xf32>, i32 -> vector<12x128xf32>
    %370 = arith.mulf %366, %369 : vector<12x128xf32>
    %371 = arith.addf %364, %370 : vector<12x128xf32>
    %c0_247 = arith.constant 0 : index
    %c2_248 = arith.constant 2 : index
    %c1_249 = arith.constant 1 : index
    %c0_250 = arith.constant 0 : index
    %372 = vector.load %arg3[%c0_247, %c2_248, %c1_249, %c0_250] : memref<1x3x14x128xf32, #tpu.memory_space<vmem>>, vector<1x1x12x128xf32>
    %373 = vector.shape_cast %372 : vector<1x1x12x128xf32> to vector<12x128xf32>
    %c0_251 = arith.constant 0 : index
    %c2_252 = arith.constant 2 : index
    %c2_253 = arith.constant 2 : index
    %c0_254 = arith.constant 0 : index
    %374 = vector.load %arg2[%c0_251, %c2_252, %c2_253, %c0_254] : memref<1x3x14x128xf32, #tpu.memory_space<vmem>>, vector<1x1x12x128xf32>
    %375 = vector.shape_cast %374 : vector<1x1x12x128xf32> to vector<12x128xf32>
    %c1_i32_255 = arith.constant 1 : i32
    %376 = tpu.dynamic_rotate %375 by %c1_i32_255 dim 1 : vector<12x128xf32>, i32 -> vector<12x128xf32>
    %377 = arith.mulf %373, %376 : vector<12x128xf32>
    %378 = arith.addf %371, %377 : vector<12x128xf32>
    %379 = vector.extract_strided_slice %56 {offsets = [2, 0], sizes = [10, 128], strides = [1, 1]} : vector<12x128xf32> to vector<10x128xf32>
    %c1_i32_256 = arith.constant 1 : i32
    %380 = tpu.dynamic_rotate %379 by %c1_i32_256 dim 1 : vector<10x128xf32>, i32 -> vector<10x128xf32>
    %381 = arith.addf %36, %380 : vector<10x128xf32>
    %382 = vector.extract_strided_slice %378 {offsets = [0, 0], sizes = [10, 128], strides = [1, 1]} : vector<12x128xf32> to vector<10x128xf32>
    %383 = vector.extract_strided_slice %378 {offsets = [1, 0], sizes = [10, 128], strides = [1, 1]} : vector<12x128xf32> to vector<10x128xf32>
    %384 = arith.addf %382, %383 : vector<10x128xf32>
    %385 = vector.extract_strided_slice %378 {offsets = [2, 0], sizes = [10, 128], strides = [1, 1]} : vector<12x128xf32> to vector<10x128xf32>
    %386 = arith.addf %384, %385 : vector<10x128xf32>
    %c1_i32_257 = arith.constant 1 : i32
    %387 = tpu.dynamic_rotate %386 by %c1_i32_257 dim 1 : vector<10x128xf32>, i32 -> vector<10x128xf32>
    %388 = arith.addf %387, %386 : vector<10x128xf32>
    %c127_i32_258 = arith.constant 127 : i32
    %389 = tpu.dynamic_rotate %386 by %c127_i32_258 dim 1 : vector<10x128xf32>, i32 -> vector<10x128xf32>
    %390 = arith.addf %388, %389 : vector<10x128xf32>
    %cst_259 = arith.constant 2.000000e+00 : f32
    %391 = vector.broadcast %cst_259 : f32 to vector<10x128xf32>
    %392 = arith.mulf %391, %390 : vector<10x128xf32>
    %393 = arith.subf %381, %392 : vector<10x128xf32>
    %c1_i32_260 = arith.constant 1 : i32
    %394 = vector.broadcast %c1_i32_260 : i32 to vector<10x128xi32>
    %395 = arith.addi %60, %394 : vector<10x128xi32>
    %c0_i32_261 = arith.constant 0 : i32
    %396 = vector.broadcast %c0_i32_261 : i32 to vector<10x128xi32>
    %397 = arith.cmpi sge, %395, %396 : vector<10x128xi32>
    %c1_i32_262 = arith.constant 1 : i32
    %398 = vector.broadcast %c1_i32_262 : i32 to vector<10x128xi32>
    %399 = arith.addi %60, %398 : vector<10x128xi32>
    %c18_i32_263 = arith.constant 18 : i32
    %400 = vector.broadcast %c18_i32_263 : i32 to vector<10x128xi32>
    %401 = arith.cmpi slt, %399, %400 : vector<10x128xi32>
    %402 = arith.andi %397, %401 : vector<10x128xi1>
    %c-1_i32_264 = arith.constant -1 : i32
    %403 = vector.broadcast %c-1_i32_264 : i32 to vector<10x128xi32>
    %404 = arith.addi %63, %403 : vector<10x128xi32>
    %c0_i32_265 = arith.constant 0 : i32
    %405 = vector.broadcast %c0_i32_265 : i32 to vector<10x128xi32>
    %406 = arith.cmpi sge, %404, %405 : vector<10x128xi32>
    %407 = arith.andi %402, %406 : vector<10x128xi1>
    %c-1_i32_266 = arith.constant -1 : i32
    %408 = vector.broadcast %c-1_i32_266 : i32 to vector<10x128xi32>
    %409 = arith.addi %63, %408 : vector<10x128xi32>
    %c18_i32_267 = arith.constant 18 : i32
    %410 = vector.broadcast %c18_i32_267 : i32 to vector<10x128xi32>
    %411 = arith.cmpi slt, %409, %410 : vector<10x128xi32>
    %412 = arith.andi %407, %411 : vector<10x128xi1>
    %413 = arith.mulf %393, %16 : vector<10x128xf32>
    %cst_268 = arith.constant -1.000000e+30 : f32
    %414 = vector.broadcast %cst_268 : f32 to vector<10x128xf32>
    %415 = arith.select %412, %413, %414 : vector<10x128xi1>, vector<10x128xf32>
    %c0_269 = arith.constant 0 : index
    %c0_270 = arith.constant 0 : index
    %c1_271 = arith.constant 1 : index
    %c0_272 = arith.constant 0 : index
    %416 = vector.load %arg3[%c0_269, %c0_270, %c1_271, %c0_272] : memref<1x3x14x128xf32, #tpu.memory_space<vmem>>, vector<1x1x12x128xf32>
    %417 = vector.shape_cast %416 : vector<1x1x12x128xf32> to vector<12x128xf32>
    %c0_273 = arith.constant 0 : index
    %c0_274 = arith.constant 0 : index
    %c2_275 = arith.constant 2 : index
    %c0_276 = arith.constant 0 : index
    %418 = vector.load %arg2[%c0_273, %c0_274, %c2_275, %c0_276] : memref<1x3x14x128xf32, #tpu.memory_space<vmem>>, vector<1x1x12x128xf32>
    %419 = vector.shape_cast %418 : vector<1x1x12x128xf32> to vector<12x128xf32>
    %420 = arith.mulf %417, %419 : vector<12x128xf32>
    %c0_277 = arith.constant 0 : index
    %c1_278 = arith.constant 1 : index
    %c1_279 = arith.constant 1 : index
    %c0_280 = arith.constant 0 : index
    %421 = vector.load %arg3[%c0_277, %c1_278, %c1_279, %c0_280] : memref<1x3x14x128xf32, #tpu.memory_space<vmem>>, vector<1x1x12x128xf32>
    %422 = vector.shape_cast %421 : vector<1x1x12x128xf32> to vector<12x128xf32>
    %c0_281 = arith.constant 0 : index
    %c1_282 = arith.constant 1 : index
    %c2_283 = arith.constant 2 : index
    %c0_284 = arith.constant 0 : index
    %423 = vector.load %arg2[%c0_281, %c1_282, %c2_283, %c0_284] : memref<1x3x14x128xf32, #tpu.memory_space<vmem>>, vector<1x1x12x128xf32>
    %424 = vector.shape_cast %423 : vector<1x1x12x128xf32> to vector<12x128xf32>
    %425 = arith.mulf %422, %424 : vector<12x128xf32>
    %426 = arith.addf %420, %425 : vector<12x128xf32>
    %c0_285 = arith.constant 0 : index
    %c2_286 = arith.constant 2 : index
    %c1_287 = arith.constant 1 : index
    %c0_288 = arith.constant 0 : index
    %427 = vector.load %arg3[%c0_285, %c2_286, %c1_287, %c0_288] : memref<1x3x14x128xf32, #tpu.memory_space<vmem>>, vector<1x1x12x128xf32>
    %428 = vector.shape_cast %427 : vector<1x1x12x128xf32> to vector<12x128xf32>
    %c0_289 = arith.constant 0 : index
    %c2_290 = arith.constant 2 : index
    %c2_291 = arith.constant 2 : index
    %c0_292 = arith.constant 0 : index
    %429 = vector.load %arg2[%c0_289, %c2_290, %c2_291, %c0_292] : memref<1x3x14x128xf32, #tpu.memory_space<vmem>>, vector<1x1x12x128xf32>
    %430 = vector.shape_cast %429 : vector<1x1x12x128xf32> to vector<12x128xf32>
    %431 = arith.mulf %428, %430 : vector<12x128xf32>
    %432 = arith.addf %426, %431 : vector<12x128xf32>
    %433 = vector.extract_strided_slice %56 {offsets = [2, 0], sizes = [10, 128], strides = [1, 1]} : vector<12x128xf32> to vector<10x128xf32>
    %434 = arith.addf %36, %433 : vector<10x128xf32>
    %435 = vector.extract_strided_slice %432 {offsets = [0, 0], sizes = [10, 128], strides = [1, 1]} : vector<12x128xf32> to vector<10x128xf32>
    %436 = vector.extract_strided_slice %432 {offsets = [1, 0], sizes = [10, 128], strides = [1, 1]} : vector<12x128xf32> to vector<10x128xf32>
    %437 = arith.addf %435, %436 : vector<10x128xf32>
    %438 = vector.extract_strided_slice %432 {offsets = [2, 0], sizes = [10, 128], strides = [1, 1]} : vector<12x128xf32> to vector<10x128xf32>
    %439 = arith.addf %437, %438 : vector<10x128xf32>
    %c1_i32_293 = arith.constant 1 : i32
    %440 = tpu.dynamic_rotate %439 by %c1_i32_293 dim 1 : vector<10x128xf32>, i32 -> vector<10x128xf32>
    %441 = arith.addf %440, %439 : vector<10x128xf32>
    %c127_i32_294 = arith.constant 127 : i32
    %442 = tpu.dynamic_rotate %439 by %c127_i32_294 dim 1 : vector<10x128xf32>, i32 -> vector<10x128xf32>
    %443 = arith.addf %441, %442 : vector<10x128xf32>
    %cst_295 = arith.constant 2.000000e+00 : f32
    %444 = vector.broadcast %cst_295 : f32 to vector<10x128xf32>
    %445 = arith.mulf %444, %443 : vector<10x128xf32>
    %446 = arith.subf %434, %445 : vector<10x128xf32>
    %c1_i32_296 = arith.constant 1 : i32
    %447 = vector.broadcast %c1_i32_296 : i32 to vector<10x128xi32>
    %448 = arith.addi %60, %447 : vector<10x128xi32>
    %c0_i32_297 = arith.constant 0 : i32
    %449 = vector.broadcast %c0_i32_297 : i32 to vector<10x128xi32>
    %450 = arith.cmpi sge, %448, %449 : vector<10x128xi32>
    %c1_i32_298 = arith.constant 1 : i32
    %451 = vector.broadcast %c1_i32_298 : i32 to vector<10x128xi32>
    %452 = arith.addi %60, %451 : vector<10x128xi32>
    %c18_i32_299 = arith.constant 18 : i32
    %453 = vector.broadcast %c18_i32_299 : i32 to vector<10x128xi32>
    %454 = arith.cmpi slt, %452, %453 : vector<10x128xi32>
    %455 = arith.andi %450, %454 : vector<10x128xi1>
    %c0_i32_300 = arith.constant 0 : i32
    %456 = vector.broadcast %c0_i32_300 : i32 to vector<10x128xi32>
    %457 = arith.addi %63, %456 : vector<10x128xi32>
    %c0_i32_301 = arith.constant 0 : i32
    %458 = vector.broadcast %c0_i32_301 : i32 to vector<10x128xi32>
    %459 = arith.cmpi sge, %457, %458 : vector<10x128xi32>
    %460 = arith.andi %455, %459 : vector<10x128xi1>
    %c0_i32_302 = arith.constant 0 : i32
    %461 = vector.broadcast %c0_i32_302 : i32 to vector<10x128xi32>
    %462 = arith.addi %63, %461 : vector<10x128xi32>
    %c18_i32_303 = arith.constant 18 : i32
    %463 = vector.broadcast %c18_i32_303 : i32 to vector<10x128xi32>
    %464 = arith.cmpi slt, %462, %463 : vector<10x128xi32>
    %465 = arith.andi %460, %464 : vector<10x128xi1>
    %466 = arith.mulf %446, %16 : vector<10x128xf32>
    %cst_304 = arith.constant -1.000000e+30 : f32
    %467 = vector.broadcast %cst_304 : f32 to vector<10x128xf32>
    %468 = arith.select %465, %466, %467 : vector<10x128xi1>, vector<10x128xf32>
    %c0_305 = arith.constant 0 : index
    %c0_306 = arith.constant 0 : index
    %c1_307 = arith.constant 1 : index
    %c0_308 = arith.constant 0 : index
    %469 = vector.load %arg3[%c0_305, %c0_306, %c1_307, %c0_308] : memref<1x3x14x128xf32, #tpu.memory_space<vmem>>, vector<1x1x12x128xf32>
    %470 = vector.shape_cast %469 : vector<1x1x12x128xf32> to vector<12x128xf32>
    %c0_309 = arith.constant 0 : index
    %c0_310 = arith.constant 0 : index
    %c2_311 = arith.constant 2 : index
    %c0_312 = arith.constant 0 : index
    %471 = vector.load %arg2[%c0_309, %c0_310, %c2_311, %c0_312] : memref<1x3x14x128xf32, #tpu.memory_space<vmem>>, vector<1x1x12x128xf32>
    %472 = vector.shape_cast %471 : vector<1x1x12x128xf32> to vector<12x128xf32>
    %c127_i32_313 = arith.constant 127 : i32
    %473 = tpu.dynamic_rotate %472 by %c127_i32_313 dim 1 : vector<12x128xf32>, i32 -> vector<12x128xf32>
    %474 = arith.mulf %470, %473 : vector<12x128xf32>
    %c0_314 = arith.constant 0 : index
    %c1_315 = arith.constant 1 : index
    %c1_316 = arith.constant 1 : index
    %c0_317 = arith.constant 0 : index
    %475 = vector.load %arg3[%c0_314, %c1_315, %c1_316, %c0_317] : memref<1x3x14x128xf32, #tpu.memory_space<vmem>>, vector<1x1x12x128xf32>
    %476 = vector.shape_cast %475 : vector<1x1x12x128xf32> to vector<12x128xf32>
    %c0_318 = arith.constant 0 : index
    %c1_319 = arith.constant 1 : index
    %c2_320 = arith.constant 2 : index
    %c0_321 = arith.constant 0 : index
    %477 = vector.load %arg2[%c0_318, %c1_319, %c2_320, %c0_321] : memref<1x3x14x128xf32, #tpu.memory_space<vmem>>, vector<1x1x12x128xf32>
    %478 = vector.shape_cast %477 : vector<1x1x12x128xf32> to vector<12x128xf32>
    %c127_i32_322 = arith.constant 127 : i32
    %479 = tpu.dynamic_rotate %478 by %c127_i32_322 dim 1 : vector<12x128xf32>, i32 -> vector<12x128xf32>
    %480 = arith.mulf %476, %479 : vector<12x128xf32>
    %481 = arith.addf %474, %480 : vector<12x128xf32>
    %c0_323 = arith.constant 0 : index
    %c2_324 = arith.constant 2 : index
    %c1_325 = arith.constant 1 : index
    %c0_326 = arith.constant 0 : index
    %482 = vector.load %arg3[%c0_323, %c2_324, %c1_325, %c0_326] : memref<1x3x14x128xf32, #tpu.memory_space<vmem>>, vector<1x1x12x128xf32>
    %483 = vector.shape_cast %482 : vector<1x1x12x128xf32> to vector<12x128xf32>
    %c0_327 = arith.constant 0 : index
    %c2_328 = arith.constant 2 : index
    %c2_329 = arith.constant 2 : index
    %c0_330 = arith.constant 0 : index
    %484 = vector.load %arg2[%c0_327, %c2_328, %c2_329, %c0_330] : memref<1x3x14x128xf32, #tpu.memory_space<vmem>>, vector<1x1x12x128xf32>
    %485 = vector.shape_cast %484 : vector<1x1x12x128xf32> to vector<12x128xf32>
    %c127_i32_331 = arith.constant 127 : i32
    %486 = tpu.dynamic_rotate %485 by %c127_i32_331 dim 1 : vector<12x128xf32>, i32 -> vector<12x128xf32>
    %487 = arith.mulf %483, %486 : vector<12x128xf32>
    %488 = arith.addf %481, %487 : vector<12x128xf32>
    %489 = vector.extract_strided_slice %56 {offsets = [2, 0], sizes = [10, 128], strides = [1, 1]} : vector<12x128xf32> to vector<10x128xf32>
    %c127_i32_332 = arith.constant 127 : i32
    %490 = tpu.dynamic_rotate %489 by %c127_i32_332 dim 1 : vector<10x128xf32>, i32 -> vector<10x128xf32>
    %491 = arith.addf %36, %490 : vector<10x128xf32>
    %492 = vector.extract_strided_slice %488 {offsets = [0, 0], sizes = [10, 128], strides = [1, 1]} : vector<12x128xf32> to vector<10x128xf32>
    %493 = vector.extract_strided_slice %488 {offsets = [1, 0], sizes = [10, 128], strides = [1, 1]} : vector<12x128xf32> to vector<10x128xf32>
    %494 = arith.addf %492, %493 : vector<10x128xf32>
    %495 = vector.extract_strided_slice %488 {offsets = [2, 0], sizes = [10, 128], strides = [1, 1]} : vector<12x128xf32> to vector<10x128xf32>
    %496 = arith.addf %494, %495 : vector<10x128xf32>
    %c1_i32_333 = arith.constant 1 : i32
    %497 = tpu.dynamic_rotate %496 by %c1_i32_333 dim 1 : vector<10x128xf32>, i32 -> vector<10x128xf32>
    %498 = arith.addf %497, %496 : vector<10x128xf32>
    %c127_i32_334 = arith.constant 127 : i32
    %499 = tpu.dynamic_rotate %496 by %c127_i32_334 dim 1 : vector<10x128xf32>, i32 -> vector<10x128xf32>
    %500 = arith.addf %498, %499 : vector<10x128xf32>
    %cst_335 = arith.constant 2.000000e+00 : f32
    %501 = vector.broadcast %cst_335 : f32 to vector<10x128xf32>
    %502 = arith.mulf %501, %500 : vector<10x128xf32>
    %503 = arith.subf %491, %502 : vector<10x128xf32>
    %c1_i32_336 = arith.constant 1 : i32
    %504 = vector.broadcast %c1_i32_336 : i32 to vector<10x128xi32>
    %505 = arith.addi %60, %504 : vector<10x128xi32>
    %c0_i32_337 = arith.constant 0 : i32
    %506 = vector.broadcast %c0_i32_337 : i32 to vector<10x128xi32>
    %507 = arith.cmpi sge, %505, %506 : vector<10x128xi32>
    %c1_i32_338 = arith.constant 1 : i32
    %508 = vector.broadcast %c1_i32_338 : i32 to vector<10x128xi32>
    %509 = arith.addi %60, %508 : vector<10x128xi32>
    %c18_i32_339 = arith.constant 18 : i32
    %510 = vector.broadcast %c18_i32_339 : i32 to vector<10x128xi32>
    %511 = arith.cmpi slt, %509, %510 : vector<10x128xi32>
    %512 = arith.andi %507, %511 : vector<10x128xi1>
    %c1_i32_340 = arith.constant 1 : i32
    %513 = vector.broadcast %c1_i32_340 : i32 to vector<10x128xi32>
    %514 = arith.addi %63, %513 : vector<10x128xi32>
    %c0_i32_341 = arith.constant 0 : i32
    %515 = vector.broadcast %c0_i32_341 : i32 to vector<10x128xi32>
    %516 = arith.cmpi sge, %514, %515 : vector<10x128xi32>
    %517 = arith.andi %512, %516 : vector<10x128xi1>
    %c1_i32_342 = arith.constant 1 : i32
    %518 = vector.broadcast %c1_i32_342 : i32 to vector<10x128xi32>
    %519 = arith.addi %63, %518 : vector<10x128xi32>
    %c18_i32_343 = arith.constant 18 : i32
    %520 = vector.broadcast %c18_i32_343 : i32 to vector<10x128xi32>
    %521 = arith.cmpi slt, %519, %520 : vector<10x128xi32>
    %522 = arith.andi %517, %521 : vector<10x128xi1>
    %523 = arith.mulf %503, %16 : vector<10x128xf32>
    %cst_344 = arith.constant -1.000000e+30 : f32
    %524 = vector.broadcast %cst_344 : f32 to vector<10x128xf32>
    %525 = arith.select %522, %523, %524 : vector<10x128xi1>, vector<10x128xf32>
    %526 = tpu.iota {dimensions = array<i32: 0>} : vector<8x128xi32>
    %527 = vector.broadcast %0 : i32 to vector<8x128xi32>
    %528 = arith.addi %527, %526 : vector<8x128xi32>
    %529 = tpu.iota {dimensions = array<i32: 1>} : vector<8x128xi32>
    %c2_i32_345 = arith.constant 2 : i32
    %530 = vector.broadcast %c2_i32_345 : i32 to vector<8x128xi32>
    %531 = arith.subi %529, %530 : vector<8x128xi32>
    %c1_i32_346 = arith.constant 1 : i32
    %532 = vector.broadcast %c1_i32_346 : i32 to vector<8x128xi32>
    %533 = arith.addi %528, %532 : vector<8x128xi32>
    %c2_i32_347 = arith.constant 2 : i32
    %534 = vector.broadcast %c2_i32_347 : i32 to vector<8x128xi32>
    %535 = arith.minsi %533, %534 : vector<8x128xi32>
    %c1_i32_348 = arith.constant 1 : i32
    %536 = vector.broadcast %c1_i32_348 : i32 to vector<8x128xi32>
    %537 = arith.addi %528, %536 : vector<8x128xi32>
    %c18_i32_349 = arith.constant 18 : i32
    %538 = vector.broadcast %c18_i32_349 : i32 to vector<8x128xi32>
    %539 = arith.subi %537, %538 : vector<8x128xi32>
    %c1_i32_350 = arith.constant 1 : i32
    %540 = vector.broadcast %c1_i32_350 : i32 to vector<8x128xi32>
    %541 = arith.addi %539, %540 : vector<8x128xi32>
    %c0_i32_351 = arith.constant 0 : i32
    %542 = vector.broadcast %c0_i32_351 : i32 to vector<8x128xi32>
    %543 = arith.maxsi %541, %542 : vector<8x128xi32>
    %544 = arith.subi %535, %543 : vector<8x128xi32>
    %c1_i32_352 = arith.constant 1 : i32
    %545 = vector.broadcast %c1_i32_352 : i32 to vector<8x128xi32>
    %546 = arith.addi %544, %545 : vector<8x128xi32>
    %c1_i32_353 = arith.constant 1 : i32
    %547 = vector.broadcast %c1_i32_353 : i32 to vector<8x128xi32>
    %548 = arith.addi %531, %547 : vector<8x128xi32>
    %c2_i32_354 = arith.constant 2 : i32
    %549 = vector.broadcast %c2_i32_354 : i32 to vector<8x128xi32>
    %550 = arith.minsi %548, %549 : vector<8x128xi32>
    %c1_i32_355 = arith.constant 1 : i32
    %551 = vector.broadcast %c1_i32_355 : i32 to vector<8x128xi32>
    %552 = arith.addi %531, %551 : vector<8x128xi32>
    %c18_i32_356 = arith.constant 18 : i32
    %553 = vector.broadcast %c18_i32_356 : i32 to vector<8x128xi32>
    %554 = arith.subi %552, %553 : vector<8x128xi32>
    %c1_i32_357 = arith.constant 1 : i32
    %555 = vector.broadcast %c1_i32_357 : i32 to vector<8x128xi32>
    %556 = arith.addi %554, %555 : vector<8x128xi32>
    %c0_i32_358 = arith.constant 0 : i32
    %557 = vector.broadcast %c0_i32_358 : i32 to vector<8x128xi32>
    %558 = arith.maxsi %556, %557 : vector<8x128xi32>
    %559 = arith.subi %550, %558 : vector<8x128xi32>
    %c1_i32_359 = arith.constant 1 : i32
    %560 = vector.broadcast %c1_i32_359 : i32 to vector<8x128xi32>
    %561 = arith.addi %559, %560 : vector<8x128xi32>
    %562 = arith.muli %546, %561 : vector<8x128xi32>
    %563 = arith.sitofp %562 : vector<8x128xi32> to vector<8x128xf32>
    %cst_360 = arith.constant 1.000000e+00 : f32
    %564 = vector.broadcast %cst_360 : f32 to vector<8x128xf32>
    %565 = arith.maximumf %563, %564 : vector<8x128xf32>
    %cst_361 = arith.constant 1.000000e+00 : f32
    %566 = vector.broadcast %cst_361 : f32 to vector<8x128xf32>
    %567 = arith.divf %566, %565 : vector<8x128xf32>
    %c0_362 = arith.constant 0 : index
    %c0_363 = arith.constant 0 : index
    %c3 = arith.constant 3 : index
    %c0_364 = arith.constant 0 : index
    %568 = vector.load %arg5[%c0_362, %c0_363, %c3, %c0_364] : memref<1x4x14x128xf32, #tpu.memory_space<vmem>>, vector<1x1x8x128xf32>
    %569 = vector.shape_cast %568 : vector<1x1x8x128xf32> to vector<8x128xf32>
    %c0_365 = arith.constant 0 : index
    %c0_366 = arith.constant 0 : index
    %c0_367 = arith.constant 0 : index
    %570 = vector.load %arg6[%c0_365, %c0_366, %c0_367] : memref<16x8x128xf32, #tpu.memory_space<vmem>>, vector<1x8x128xf32>
    %571 = vector.shape_cast %570 : vector<1x8x128xf32> to vector<8x128xf32>
    %572 = vector.shape_cast %569 : vector<8x128xf32> to vector<1x8x128xf32>
    tpu.vector_store %arg6[%c0_365, %c0_366, %c0_367], %572 {strides = array<i32>} : memref<16x8x128xf32, #tpu.memory_space<vmem>>, vector<1x8x128xf32>,
    %c0_368 = arith.constant 0 : index
    %c1_369 = arith.constant 1 : index
    %c3_370 = arith.constant 3 : index
    %c0_371 = arith.constant 0 : index
    %573 = vector.load %arg5[%c0_368, %c1_369, %c3_370, %c0_371] : memref<1x4x14x128xf32, #tpu.memory_space<vmem>>, vector<1x1x8x128xf32>
    %574 = vector.shape_cast %573 : vector<1x1x8x128xf32> to vector<8x128xf32>
    %c1_372 = arith.constant 1 : index
    %c0_373 = arith.constant 0 : index
    %c0_374 = arith.constant 0 : index
    %575 = vector.load %arg6[%c1_372, %c0_373, %c0_374] : memref<16x8x128xf32, #tpu.memory_space<vmem>>, vector<1x8x128xf32>
    %576 = vector.shape_cast %575 : vector<1x8x128xf32> to vector<8x128xf32>
    %577 = vector.shape_cast %574 : vector<8x128xf32> to vector<1x8x128xf32>
    tpu.vector_store %arg6[%c1_372, %c0_373, %c0_374], %577 {strides = array<i32>} : memref<16x8x128xf32, #tpu.memory_space<vmem>>, vector<1x8x128xf32>,
    %c0_375 = arith.constant 0 : index
    %c2_376 = arith.constant 2 : index
    %c3_377 = arith.constant 3 : index
    %c0_378 = arith.constant 0 : index
    %578 = vector.load %arg5[%c0_375, %c2_376, %c3_377, %c0_378] : memref<1x4x14x128xf32, #tpu.memory_space<vmem>>, vector<1x1x8x128xf32>
    %579 = vector.shape_cast %578 : vector<1x1x8x128xf32> to vector<8x128xf32>
    %c2_379 = arith.constant 2 : index
    %c0_380 = arith.constant 0 : index
    %c0_381 = arith.constant 0 : index
    %580 = vector.load %arg6[%c2_379, %c0_380, %c0_381] : memref<16x8x128xf32, #tpu.memory_space<vmem>>, vector<1x8x128xf32>
    %581 = vector.shape_cast %580 : vector<1x8x128xf32> to vector<8x128xf32>
    %582 = vector.shape_cast %579 : vector<8x128xf32> to vector<1x8x128xf32>
    tpu.vector_store %arg6[%c2_379, %c0_380, %c0_381], %582 {strides = array<i32>} : memref<16x8x128xf32, #tpu.memory_space<vmem>>, vector<1x8x128xf32>,
    %c0_382 = arith.constant 0 : index
    %c3_383 = arith.constant 3 : index
    %c3_384 = arith.constant 3 : index
    %c0_385 = arith.constant 0 : index
    %583 = vector.load %arg5[%c0_382, %c3_383, %c3_384, %c0_385] : memref<1x4x14x128xf32, #tpu.memory_space<vmem>>, vector<1x1x8x128xf32>
    %584 = vector.shape_cast %583 : vector<1x1x8x128xf32> to vector<8x128xf32>
    %c3_386 = arith.constant 3 : index
    %c0_387 = arith.constant 0 : index
    %c0_388 = arith.constant 0 : index
    %585 = vector.load %arg6[%c3_386, %c0_387, %c0_388] : memref<16x8x128xf32, #tpu.memory_space<vmem>>, vector<1x8x128xf32>
    %586 = vector.shape_cast %585 : vector<1x8x128xf32> to vector<8x128xf32>
    %587 = vector.shape_cast %584 : vector<8x128xf32> to vector<1x8x128xf32>
    tpu.vector_store %arg6[%c3_386, %c0_387, %c0_388], %587 {strides = array<i32>} : memref<16x8x128xf32, #tpu.memory_space<vmem>>, vector<1x8x128xf32>,
    %588 = arith.maximumf %133, %186 : vector<10x128xf32>
    %589 = arith.maximumf %243, %300 : vector<10x128xf32>
    %590 = arith.maximumf %301, %358 : vector<10x128xf32>
    %591 = arith.maximumf %415, %468 : vector<10x128xf32>
    %592 = arith.maximumf %588, %589 : vector<10x128xf32>
    %593 = arith.maximumf %590, %591 : vector<10x128xf32>
    %594 = arith.maximumf %592, %593 : vector<10x128xf32>
    %595 = arith.maximumf %594, %525 : vector<10x128xf32>
    %596 = arith.subf %133, %595 : vector<10x128xf32>
    %597 = math.exp %596 : vector<10x128xf32>
    %598 = arith.subf %186, %595 : vector<10x128xf32>
    %599 = math.exp %598 : vector<10x128xf32>
    %600 = arith.subf %243, %595 : vector<10x128xf32>
    %601 = math.exp %600 : vector<10x128xf32>
    %602 = arith.subf %300, %595 : vector<10x128xf32>
    %603 = math.exp %602 : vector<10x128xf32>
    %604 = arith.subf %301, %595 : vector<10x128xf32>
    %605 = math.exp %604 : vector<10x128xf32>
    %606 = arith.subf %358, %595 : vector<10x128xf32>
    %607 = math.exp %606 : vector<10x128xf32>
    %608 = arith.subf %415, %595 : vector<10x128xf32>
    %609 = math.exp %608 : vector<10x128xf32>
    %610 = arith.subf %468, %595 : vector<10x128xf32>
    %611 = math.exp %610 : vector<10x128xf32>
    %612 = arith.subf %525, %595 : vector<10x128xf32>
    %613 = math.exp %612 : vector<10x128xf32>
    %614 = arith.addf %597, %599 : vector<10x128xf32>
    %615 = arith.addf %601, %603 : vector<10x128xf32>
    %616 = arith.addf %605, %607 : vector<10x128xf32>
    %617 = arith.addf %609, %611 : vector<10x128xf32>
    %618 = arith.addf %614, %615 : vector<10x128xf32>
    %619 = arith.addf %616, %617 : vector<10x128xf32>
    %620 = arith.addf %618, %619 : vector<10x128xf32>
    %621 = arith.addf %620, %613 : vector<10x128xf32>
    %cst_389 = arith.constant 1.000000e+00 : f32
    %622 = vector.broadcast %cst_389 : f32 to vector<10x128xf32>
    %623 = arith.divf %622, %621 : vector<10x128xf32>
    %624 = arith.mulf %597, %623 : vector<10x128xf32>
    %625 = arith.mulf %599, %623 : vector<10x128xf32>
    %626 = arith.mulf %601, %623 : vector<10x128xf32>
    %627 = arith.mulf %603, %623 : vector<10x128xf32>
    %628 = arith.mulf %605, %623 : vector<10x128xf32>
    %629 = arith.mulf %607, %623 : vector<10x128xf32>
    %630 = arith.mulf %609, %623 : vector<10x128xf32>
    %631 = arith.mulf %611, %623 : vector<10x128xf32>
    %632 = arith.mulf %613, %623 : vector<10x128xf32>
    %cst_390 = arith.constant 1.000000e+00 : f32
    %633 = vector.broadcast %cst_390 : f32 to vector<10x128xf32>
    %634 = arith.subf %633, %624 : vector<10x128xf32>
    %cst_391 = arith.constant 9.99999996E-13 : f32
    %635 = vector.broadcast %cst_391 : f32 to vector<10x128xf32>
    %636 = arith.maximumf %634, %635 : vector<10x128xf32>
    %637 = math.log %636 : vector<10x128xf32>
    %638 = arith.addf %133, %637 : vector<10x128xf32>
    %cst_392 = arith.constant 1.000000e+00 : f32
    %639 = vector.broadcast %cst_392 : f32 to vector<10x128xf32>
    %640 = arith.subf %639, %625 : vector<10x128xf32>
    %cst_393 = arith.constant 9.99999996E-13 : f32
    %641 = vector.broadcast %cst_393 : f32 to vector<10x128xf32>
    %642 = arith.maximumf %640, %641 : vector<10x128xf32>
    %643 = math.log %642 : vector<10x128xf32>
    %644 = arith.addf %186, %643 : vector<10x128xf32>
    %cst_394 = arith.constant 1.000000e+00 : f32
    %645 = vector.broadcast %cst_394 : f32 to vector<10x128xf32>
    %646 = arith.subf %645, %626 : vector<10x128xf32>
    %cst_395 = arith.constant 9.99999996E-13 : f32
    %647 = vector.broadcast %cst_395 : f32 to vector<10x128xf32>
    %648 = arith.maximumf %646, %647 : vector<10x128xf32>
    %649 = math.log %648 : vector<10x128xf32>
    %650 = arith.addf %243, %649 : vector<10x128xf32>
    %cst_396 = arith.constant 1.000000e+00 : f32
    %651 = vector.broadcast %cst_396 : f32 to vector<10x128xf32>
    %652 = arith.subf %651, %627 : vector<10x128xf32>
    %cst_397 = arith.constant 9.99999996E-13 : f32
    %653 = vector.broadcast %cst_397 : f32 to vector<10x128xf32>
    %654 = arith.maximumf %652, %653 : vector<10x128xf32>
    %655 = math.log %654 : vector<10x128xf32>
    %656 = arith.addf %300, %655 : vector<10x128xf32>
    %cst_398 = arith.constant 1.000000e+00 : f32
    %657 = vector.broadcast %cst_398 : f32 to vector<10x128xf32>
    %658 = arith.subf %657, %628 : vector<10x128xf32>
    %cst_399 = arith.constant 9.99999996E-13 : f32
    %659 = vector.broadcast %cst_399 : f32 to vector<10x128xf32>
    %660 = arith.maximumf %658, %659 : vector<10x128xf32>
    %661 = math.log %660 : vector<10x128xf32>
    %662 = arith.addf %301, %661 : vector<10x128xf32>
    %cst_400 = arith.constant 1.000000e+00 : f32
    %663 = vector.broadcast %cst_400 : f32 to vector<10x128xf32>
    %664 = arith.subf %663, %629 : vector<10x128xf32>
    %cst_401 = arith.constant 9.99999996E-13 : f32
    %665 = vector.broadcast %cst_401 : f32 to vector<10x128xf32>
    %666 = arith.maximumf %664, %665 : vector<10x128xf32>
    %667 = math.log %666 : vector<10x128xf32>
    %668 = arith.addf %358, %667 : vector<10x128xf32>
    %cst_402 = arith.constant 1.000000e+00 : f32
    %669 = vector.broadcast %cst_402 : f32 to vector<10x128xf32>
    %670 = arith.subf %669, %630 : vector<10x128xf32>
    %cst_403 = arith.constant 9.99999996E-13 : f32
    %671 = vector.broadcast %cst_403 : f32 to vector<10x128xf32>
    %672 = arith.maximumf %670, %671 : vector<10x128xf32>
    %673 = math.log %672 : vector<10x128xf32>
    %674 = arith.addf %415, %673 : vector<10x128xf32>
    %cst_404 = arith.constant 1.000000e+00 : f32
    %675 = vector.broadcast %cst_404 : f32 to vector<10x128xf32>
    %676 = arith.subf %675, %631 : vector<10x128xf32>
    %cst_405 = arith.constant 9.99999996E-13 : f32
    %677 = vector.broadcast %cst_405 : f32 to vector<10x128xf32>
    %678 = arith.maximumf %676, %677 : vector<10x128xf32>
    %679 = math.log %678 : vector<10x128xf32>
    %680 = arith.addf %468, %679 : vector<10x128xf32>
    %cst_406 = arith.constant 1.000000e+00 : f32
    %681 = vector.broadcast %cst_406 : f32 to vector<10x128xf32>
    %682 = arith.subf %681, %632 : vector<10x128xf32>
    %cst_407 = arith.constant 9.99999996E-13 : f32
    %683 = vector.broadcast %cst_407 : f32 to vector<10x128xf32>
    %684 = arith.maximumf %682, %683 : vector<10x128xf32>
    %685 = math.log %684 : vector<10x128xf32>
    %686 = arith.addf %525, %685 : vector<10x128xf32>
    %687 = arith.mulf %76, %624 : vector<10x128xf32>
    %688 = vector.extract_strided_slice %687 {offsets = [0, 0], sizes = [8, 128], strides = [1, 1]} : vector<10x128xf32> to vector<8x128xf32>
    %689 = vector.extract_strided_slice %687 {offsets = [1, 0], sizes = [8, 128], strides = [1, 1]} : vector<10x128xf32> to vector<8x128xf32>
    %690 = arith.addf %688, %689 : vector<8x128xf32>
    %691 = vector.extract_strided_slice %687 {offsets = [2, 0], sizes = [8, 128], strides = [1, 1]} : vector<10x128xf32> to vector<8x128xf32>
    %692 = arith.addf %690, %691 : vector<8x128xf32>
    %c1_i32_408 = arith.constant 1 : i32
    %693 = tpu.dynamic_rotate %692 by %c1_i32_408 dim 1 : vector<8x128xf32>, i32 -> vector<8x128xf32>
    %694 = arith.addf %693, %692 : vector<8x128xf32>
    %c127_i32_409 = arith.constant 127 : i32
    %695 = tpu.dynamic_rotate %692 by %c127_i32_409 dim 1 : vector<8x128xf32>, i32 -> vector<8x128xf32>
    %696 = arith.addf %694, %695 : vector<8x128xf32>
    %c0_410 = arith.constant 0 : index
    %c0_411 = arith.constant 0 : index
    %c2_412 = arith.constant 2 : index
    %c0_413 = arith.constant 0 : index
    %697 = vector.load %arg1[%c0_410, %c0_411, %c2_412, %c0_413] : memref<1x4x14x128xf32, #tpu.memory_space<vmem>>, vector<1x1x8x128xf32>
    %698 = vector.shape_cast %697 : vector<1x1x8x128xf32> to vector<8x128xf32>
    %c1_i32_414 = arith.constant 1 : i32
    %699 = tpu.dynamic_rotate %698 by %c1_i32_414 dim 1 : vector<8x128xf32>, i32 -> vector<8x128xf32>
    %700 = arith.mulf %699, %696 : vector<8x128xf32>
    %c0_415 = arith.constant 0 : index
    %c1_416 = arith.constant 1 : index
    %c2_417 = arith.constant 2 : index
    %c0_418 = arith.constant 0 : index
    %701 = vector.load %arg1[%c0_415, %c1_416, %c2_417, %c0_418] : memref<1x4x14x128xf32, #tpu.memory_space<vmem>>, vector<1x1x8x128xf32>
    %702 = vector.shape_cast %701 : vector<1x1x8x128xf32> to vector<8x128xf32>
    %c1_i32_419 = arith.constant 1 : i32
    %703 = tpu.dynamic_rotate %702 by %c1_i32_419 dim 1 : vector<8x128xf32>, i32 -> vector<8x128xf32>
    %704 = arith.mulf %703, %696 : vector<8x128xf32>
    %c0_420 = arith.constant 0 : index
    %c2_421 = arith.constant 2 : index
    %c2_422 = arith.constant 2 : index
    %c0_423 = arith.constant 0 : index
    %705 = vector.load %arg1[%c0_420, %c2_421, %c2_422, %c0_423] : memref<1x4x14x128xf32, #tpu.memory_space<vmem>>, vector<1x1x8x128xf32>
    %706 = vector.shape_cast %705 : vector<1x1x8x128xf32> to vector<8x128xf32>
    %c1_i32_424 = arith.constant 1 : i32
    %707 = tpu.dynamic_rotate %706 by %c1_i32_424 dim 1 : vector<8x128xf32>, i32 -> vector<8x128xf32>
    %708 = arith.mulf %707, %696 : vector<8x128xf32>
    %c0_425 = arith.constant 0 : index
    %c3_426 = arith.constant 3 : index
    %c2_427 = arith.constant 2 : index
    %c0_428 = arith.constant 0 : index
    %709 = vector.load %arg1[%c0_425, %c3_426, %c2_427, %c0_428] : memref<1x4x14x128xf32, #tpu.memory_space<vmem>>, vector<1x1x8x128xf32>
    %710 = vector.shape_cast %709 : vector<1x1x8x128xf32> to vector<8x128xf32>
    %c1_i32_429 = arith.constant 1 : i32
    %711 = tpu.dynamic_rotate %710 by %c1_i32_429 dim 1 : vector<8x128xf32>, i32 -> vector<8x128xf32>
    %712 = arith.mulf %711, %696 : vector<8x128xf32>
    %713 = arith.mulf %76, %625 : vector<10x128xf32>
    %714 = vector.extract_strided_slice %713 {offsets = [0, 0], sizes = [8, 128], strides = [1, 1]} : vector<10x128xf32> to vector<8x128xf32>
    %715 = vector.extract_strided_slice %713 {offsets = [1, 0], sizes = [8, 128], strides = [1, 1]} : vector<10x128xf32> to vector<8x128xf32>
    %716 = arith.addf %714, %715 : vector<8x128xf32>
    %717 = vector.extract_strided_slice %713 {offsets = [2, 0], sizes = [8, 128], strides = [1, 1]} : vector<10x128xf32> to vector<8x128xf32>
    %718 = arith.addf %716, %717 : vector<8x128xf32>
    %c1_i32_430 = arith.constant 1 : i32
    %719 = tpu.dynamic_rotate %718 by %c1_i32_430 dim 1 : vector<8x128xf32>, i32 -> vector<8x128xf32>
    %720 = arith.addf %719, %718 : vector<8x128xf32>
    %c127_i32_431 = arith.constant 127 : i32
    %721 = tpu.dynamic_rotate %718 by %c127_i32_431 dim 1 : vector<8x128xf32>, i32 -> vector<8x128xf32>
    %722 = arith.addf %720, %721 : vector<8x128xf32>
    %c0_432 = arith.constant 0 : index
    %c0_433 = arith.constant 0 : index
    %c2_434 = arith.constant 2 : index
    %c0_435 = arith.constant 0 : index
    %723 = vector.load %arg1[%c0_432, %c0_433, %c2_434, %c0_435] : memref<1x4x14x128xf32, #tpu.memory_space<vmem>>, vector<1x1x8x128xf32>
    %724 = vector.shape_cast %723 : vector<1x1x8x128xf32> to vector<8x128xf32>
    %725 = arith.mulf %724, %722 : vector<8x128xf32>
    %726 = arith.addf %700, %725 : vector<8x128xf32>
    %c0_436 = arith.constant 0 : index
    %c1_437 = arith.constant 1 : index
    %c2_438 = arith.constant 2 : index
    %c0_439 = arith.constant 0 : index
    %727 = vector.load %arg1[%c0_436, %c1_437, %c2_438, %c0_439] : memref<1x4x14x128xf32, #tpu.memory_space<vmem>>, vector<1x1x8x128xf32>
    %728 = vector.shape_cast %727 : vector<1x1x8x128xf32> to vector<8x128xf32>
    %729 = arith.mulf %728, %722 : vector<8x128xf32>
    %730 = arith.addf %704, %729 : vector<8x128xf32>
    %c0_440 = arith.constant 0 : index
    %c2_441 = arith.constant 2 : index
    %c2_442 = arith.constant 2 : index
    %c0_443 = arith.constant 0 : index
    %731 = vector.load %arg1[%c0_440, %c2_441, %c2_442, %c0_443] : memref<1x4x14x128xf32, #tpu.memory_space<vmem>>, vector<1x1x8x128xf32>
    %732 = vector.shape_cast %731 : vector<1x1x8x128xf32> to vector<8x128xf32>
    %733 = arith.mulf %732, %722 : vector<8x128xf32>
    %734 = arith.addf %708, %733 : vector<8x128xf32>
    %c0_444 = arith.constant 0 : index
    %c3_445 = arith.constant 3 : index
    %c2_446 = arith.constant 2 : index
    %c0_447 = arith.constant 0 : index
    %735 = vector.load %arg1[%c0_444, %c3_445, %c2_446, %c0_447] : memref<1x4x14x128xf32, #tpu.memory_space<vmem>>, vector<1x1x8x128xf32>
    %736 = vector.shape_cast %735 : vector<1x1x8x128xf32> to vector<8x128xf32>
    %737 = arith.mulf %736, %722 : vector<8x128xf32>
    %738 = arith.addf %712, %737 : vector<8x128xf32>
    %739 = arith.mulf %76, %626 : vector<10x128xf32>
    %740 = vector.extract_strided_slice %739 {offsets = [0, 0], sizes = [8, 128], strides = [1, 1]} : vector<10x128xf32> to vector<8x128xf32>
    %741 = vector.extract_strided_slice %739 {offsets = [1, 0], sizes = [8, 128], strides = [1, 1]} : vector<10x128xf32> to vector<8x128xf32>
    %742 = arith.addf %740, %741 : vector<8x128xf32>
    %743 = vector.extract_strided_slice %739 {offsets = [2, 0], sizes = [8, 128], strides = [1, 1]} : vector<10x128xf32> to vector<8x128xf32>
    %744 = arith.addf %742, %743 : vector<8x128xf32>
    %c1_i32_448 = arith.constant 1 : i32
    %745 = tpu.dynamic_rotate %744 by %c1_i32_448 dim 1 : vector<8x128xf32>, i32 -> vector<8x128xf32>
    %746 = arith.addf %745, %744 : vector<8x128xf32>
    %c127_i32_449 = arith.constant 127 : i32
    %747 = tpu.dynamic_rotate %744 by %c127_i32_449 dim 1 : vector<8x128xf32>, i32 -> vector<8x128xf32>
    %748 = arith.addf %746, %747 : vector<8x128xf32>
    %c0_450 = arith.constant 0 : index
    %c0_451 = arith.constant 0 : index
    %c2_452 = arith.constant 2 : index
    %c0_453 = arith.constant 0 : index
    %749 = vector.load %arg1[%c0_450, %c0_451, %c2_452, %c0_453] : memref<1x4x14x128xf32, #tpu.memory_space<vmem>>, vector<1x1x8x128xf32>
    %750 = vector.shape_cast %749 : vector<1x1x8x128xf32> to vector<8x128xf32>
    %c127_i32_454 = arith.constant 127 : i32
    %751 = tpu.dynamic_rotate %750 by %c127_i32_454 dim 1 : vector<8x128xf32>, i32 -> vector<8x128xf32>
    %752 = arith.mulf %751, %748 : vector<8x128xf32>
    %753 = arith.addf %726, %752 : vector<8x128xf32>
    %c0_455 = arith.constant 0 : index
    %c1_456 = arith.constant 1 : index
    %c2_457 = arith.constant 2 : index
    %c0_458 = arith.constant 0 : index
    %754 = vector.load %arg1[%c0_455, %c1_456, %c2_457, %c0_458] : memref<1x4x14x128xf32, #tpu.memory_space<vmem>>, vector<1x1x8x128xf32>
    %755 = vector.shape_cast %754 : vector<1x1x8x128xf32> to vector<8x128xf32>
    %c127_i32_459 = arith.constant 127 : i32
    %756 = tpu.dynamic_rotate %755 by %c127_i32_459 dim 1 : vector<8x128xf32>, i32 -> vector<8x128xf32>
    %757 = arith.mulf %756, %748 : vector<8x128xf32>
    %758 = arith.addf %730, %757 : vector<8x128xf32>
    %c0_460 = arith.constant 0 : index
    %c2_461 = arith.constant 2 : index
    %c2_462 = arith.constant 2 : index
    %c0_463 = arith.constant 0 : index
    %759 = vector.load %arg1[%c0_460, %c2_461, %c2_462, %c0_463] : memref<1x4x14x128xf32, #tpu.memory_space<vmem>>, vector<1x1x8x128xf32>
    %760 = vector.shape_cast %759 : vector<1x1x8x128xf32> to vector<8x128xf32>
    %c127_i32_464 = arith.constant 127 : i32
    %761 = tpu.dynamic_rotate %760 by %c127_i32_464 dim 1 : vector<8x128xf32>, i32 -> vector<8x128xf32>
    %762 = arith.mulf %761, %748 : vector<8x128xf32>
    %763 = arith.addf %734, %762 : vector<8x128xf32>
    %c0_465 = arith.constant 0 : index
    %c3_466 = arith.constant 3 : index
    %c2_467 = arith.constant 2 : index
    %c0_468 = arith.constant 0 : index
    %764 = vector.load %arg1[%c0_465, %c3_466, %c2_467, %c0_468] : memref<1x4x14x128xf32, #tpu.memory_space<vmem>>, vector<1x1x8x128xf32>
    %765 = vector.shape_cast %764 : vector<1x1x8x128xf32> to vector<8x128xf32>
    %c127_i32_469 = arith.constant 127 : i32
    %766 = tpu.dynamic_rotate %765 by %c127_i32_469 dim 1 : vector<8x128xf32>, i32 -> vector<8x128xf32>
    %767 = arith.mulf %766, %748 : vector<8x128xf32>
    %768 = arith.addf %738, %767 : vector<8x128xf32>
    %769 = arith.mulf %76, %627 : vector<10x128xf32>
    %770 = vector.extract_strided_slice %769 {offsets = [0, 0], sizes = [8, 128], strides = [1, 1]} : vector<10x128xf32> to vector<8x128xf32>
    %771 = vector.extract_strided_slice %769 {offsets = [1, 0], sizes = [8, 128], strides = [1, 1]} : vector<10x128xf32> to vector<8x128xf32>
    %772 = arith.addf %770, %771 : vector<8x128xf32>
    %773 = vector.extract_strided_slice %769 {offsets = [2, 0], sizes = [8, 128], strides = [1, 1]} : vector<10x128xf32> to vector<8x128xf32>
    %774 = arith.addf %772, %773 : vector<8x128xf32>
    %c1_i32_470 = arith.constant 1 : i32
    %775 = tpu.dynamic_rotate %774 by %c1_i32_470 dim 1 : vector<8x128xf32>, i32 -> vector<8x128xf32>
    %776 = arith.addf %775, %774 : vector<8x128xf32>
    %c127_i32_471 = arith.constant 127 : i32
    %777 = tpu.dynamic_rotate %774 by %c127_i32_471 dim 1 : vector<8x128xf32>, i32 -> vector<8x128xf32>
    %778 = arith.addf %776, %777 : vector<8x128xf32>
    %c0_472 = arith.constant 0 : index
    %c0_473 = arith.constant 0 : index
    %c3_474 = arith.constant 3 : index
    %c0_475 = arith.constant 0 : index
    %779 = vector.load %arg1[%c0_472, %c0_473, %c3_474, %c0_475] : memref<1x4x14x128xf32, #tpu.memory_space<vmem>>, vector<1x1x8x128xf32>
    %780 = vector.shape_cast %779 : vector<1x1x8x128xf32> to vector<8x128xf32>
    %c1_i32_476 = arith.constant 1 : i32
    %781 = tpu.dynamic_rotate %780 by %c1_i32_476 dim 1 : vector<8x128xf32>, i32 -> vector<8x128xf32>
    %782 = arith.mulf %781, %778 : vector<8x128xf32>
    %783 = arith.addf %753, %782 : vector<8x128xf32>
    %c0_477 = arith.constant 0 : index
    %c1_478 = arith.constant 1 : index
    %c3_479 = arith.constant 3 : index
    %c0_480 = arith.constant 0 : index
    %784 = vector.load %arg1[%c0_477, %c1_478, %c3_479, %c0_480] : memref<1x4x14x128xf32, #tpu.memory_space<vmem>>, vector<1x1x8x128xf32>
    %785 = vector.shape_cast %784 : vector<1x1x8x128xf32> to vector<8x128xf32>
    %c1_i32_481 = arith.constant 1 : i32
    %786 = tpu.dynamic_rotate %785 by %c1_i32_481 dim 1 : vector<8x128xf32>, i32 -> vector<8x128xf32>
    %787 = arith.mulf %786, %778 : vector<8x128xf32>
    %788 = arith.addf %758, %787 : vector<8x128xf32>
    %c0_482 = arith.constant 0 : index
    %c2_483 = arith.constant 2 : index
    %c3_484 = arith.constant 3 : index
    %c0_485 = arith.constant 0 : index
    %789 = vector.load %arg1[%c0_482, %c2_483, %c3_484, %c0_485] : memref<1x4x14x128xf32, #tpu.memory_space<vmem>>, vector<1x1x8x128xf32>
    %790 = vector.shape_cast %789 : vector<1x1x8x128xf32> to vector<8x128xf32>
    %c1_i32_486 = arith.constant 1 : i32
    %791 = tpu.dynamic_rotate %790 by %c1_i32_486 dim 1 : vector<8x128xf32>, i32 -> vector<8x128xf32>
    %792 = arith.mulf %791, %778 : vector<8x128xf32>
    %793 = arith.addf %763, %792 : vector<8x128xf32>
    %c0_487 = arith.constant 0 : index
    %c3_488 = arith.constant 3 : index
    %c3_489 = arith.constant 3 : index
    %c0_490 = arith.constant 0 : index
    %794 = vector.load %arg1[%c0_487, %c3_488, %c3_489, %c0_490] : memref<1x4x14x128xf32, #tpu.memory_space<vmem>>, vector<1x1x8x128xf32>
    %795 = vector.shape_cast %794 : vector<1x1x8x128xf32> to vector<8x128xf32>
    %c1_i32_491 = arith.constant 1 : i32
    %796 = tpu.dynamic_rotate %795 by %c1_i32_491 dim 1 : vector<8x128xf32>, i32 -> vector<8x128xf32>
    %797 = arith.mulf %796, %778 : vector<8x128xf32>
    %798 = arith.addf %768, %797 : vector<8x128xf32>
    %799 = arith.mulf %76, %629 : vector<10x128xf32>
    %800 = vector.extract_strided_slice %799 {offsets = [0, 0], sizes = [8, 128], strides = [1, 1]} : vector<10x128xf32> to vector<8x128xf32>
    %801 = vector.extract_strided_slice %799 {offsets = [1, 0], sizes = [8, 128], strides = [1, 1]} : vector<10x128xf32> to vector<8x128xf32>
    %802 = arith.addf %800, %801 : vector<8x128xf32>
    %803 = vector.extract_strided_slice %799 {offsets = [2, 0], sizes = [8, 128], strides = [1, 1]} : vector<10x128xf32> to vector<8x128xf32>
    %804 = arith.addf %802, %803 : vector<8x128xf32>
    %c1_i32_492 = arith.constant 1 : i32
    %805 = tpu.dynamic_rotate %804 by %c1_i32_492 dim 1 : vector<8x128xf32>, i32 -> vector<8x128xf32>
    %806 = arith.addf %805, %804 : vector<8x128xf32>
    %c127_i32_493 = arith.constant 127 : i32
    %807 = tpu.dynamic_rotate %804 by %c127_i32_493 dim 1 : vector<8x128xf32>, i32 -> vector<8x128xf32>
    %808 = arith.addf %806, %807 : vector<8x128xf32>
    %c0_494 = arith.constant 0 : index
    %c0_495 = arith.constant 0 : index
    %c3_496 = arith.constant 3 : index
    %c0_497 = arith.constant 0 : index
    %809 = vector.load %arg1[%c0_494, %c0_495, %c3_496, %c0_497] : memref<1x4x14x128xf32, #tpu.memory_space<vmem>>, vector<1x1x8x128xf32>
    %810 = vector.shape_cast %809 : vector<1x1x8x128xf32> to vector<8x128xf32>
    %c127_i32_498 = arith.constant 127 : i32
    %811 = tpu.dynamic_rotate %810 by %c127_i32_498 dim 1 : vector<8x128xf32>, i32 -> vector<8x128xf32>
    %812 = arith.mulf %811, %808 : vector<8x128xf32>
    %813 = arith.addf %783, %812 : vector<8x128xf32>
    %c0_499 = arith.constant 0 : index
    %c1_500 = arith.constant 1 : index
    %c3_501 = arith.constant 3 : index
    %c0_502 = arith.constant 0 : index
    %814 = vector.load %arg1[%c0_499, %c1_500, %c3_501, %c0_502] : memref<1x4x14x128xf32, #tpu.memory_space<vmem>>, vector<1x1x8x128xf32>
    %815 = vector.shape_cast %814 : vector<1x1x8x128xf32> to vector<8x128xf32>
    %c127_i32_503 = arith.constant 127 : i32
    %816 = tpu.dynamic_rotate %815 by %c127_i32_503 dim 1 : vector<8x128xf32>, i32 -> vector<8x128xf32>
    %817 = arith.mulf %816, %808 : vector<8x128xf32>
    %818 = arith.addf %788, %817 : vector<8x128xf32>
    %c0_504 = arith.constant 0 : index
    %c2_505 = arith.constant 2 : index
    %c3_506 = arith.constant 3 : index
    %c0_507 = arith.constant 0 : index
    %819 = vector.load %arg1[%c0_504, %c2_505, %c3_506, %c0_507] : memref<1x4x14x128xf32, #tpu.memory_space<vmem>>, vector<1x1x8x128xf32>
    %820 = vector.shape_cast %819 : vector<1x1x8x128xf32> to vector<8x128xf32>
    %c127_i32_508 = arith.constant 127 : i32
    %821 = tpu.dynamic_rotate %820 by %c127_i32_508 dim 1 : vector<8x128xf32>, i32 -> vector<8x128xf32>
    %822 = arith.mulf %821, %808 : vector<8x128xf32>
    %823 = arith.addf %793, %822 : vector<8x128xf32>
    %c0_509 = arith.constant 0 : index
    %c3_510 = arith.constant 3 : index
    %c3_511 = arith.constant 3 : index
    %c0_512 = arith.constant 0 : index
    %824 = vector.load %arg1[%c0_509, %c3_510, %c3_511, %c0_512] : memref<1x4x14x128xf32, #tpu.memory_space<vmem>>, vector<1x1x8x128xf32>
    %825 = vector.shape_cast %824 : vector<1x1x8x128xf32> to vector<8x128xf32>
    %c127_i32_513 = arith.constant 127 : i32
    %826 = tpu.dynamic_rotate %825 by %c127_i32_513 dim 1 : vector<8x128xf32>, i32 -> vector<8x128xf32>
    %827 = arith.mulf %826, %808 : vector<8x128xf32>
    %828 = arith.addf %798, %827 : vector<8x128xf32>
    %829 = arith.mulf %76, %630 : vector<10x128xf32>
    %830 = vector.extract_strided_slice %829 {offsets = [0, 0], sizes = [8, 128], strides = [1, 1]} : vector<10x128xf32> to vector<8x128xf32>
    %831 = vector.extract_strided_slice %829 {offsets = [1, 0], sizes = [8, 128], strides = [1, 1]} : vector<10x128xf32> to vector<8x128xf32>
    %832 = arith.addf %830, %831 : vector<8x128xf32>
    %833 = vector.extract_strided_slice %829 {offsets = [2, 0], sizes = [8, 128], strides = [1, 1]} : vector<10x128xf32> to vector<8x128xf32>
    %834 = arith.addf %832, %833 : vector<8x128xf32>
    %c1_i32_514 = arith.constant 1 : i32
    %835 = tpu.dynamic_rotate %834 by %c1_i32_514 dim 1 : vector<8x128xf32>, i32 -> vector<8x128xf32>
    %836 = arith.addf %835, %834 : vector<8x128xf32>
    %c127_i32_515 = arith.constant 127 : i32
    %837 = tpu.dynamic_rotate %834 by %c127_i32_515 dim 1 : vector<8x128xf32>, i32 -> vector<8x128xf32>
    %838 = arith.addf %836, %837 : vector<8x128xf32>
    %c0_516 = arith.constant 0 : index
    %c0_517 = arith.constant 0 : index
    %c4 = arith.constant 4 : index
    %c0_518 = arith.constant 0 : index
    %839 = vector.load %arg1[%c0_516, %c0_517, %c4, %c0_518] : memref<1x4x14x128xf32, #tpu.memory_space<vmem>>, vector<1x1x8x128xf32>
    %840 = vector.shape_cast %839 : vector<1x1x8x128xf32> to vector<8x128xf32>
    %c1_i32_519 = arith.constant 1 : i32
    %841 = tpu.dynamic_rotate %840 by %c1_i32_519 dim 1 : vector<8x128xf32>, i32 -> vector<8x128xf32>
    %842 = arith.mulf %841, %838 : vector<8x128xf32>
    %843 = arith.addf %813, %842 : vector<8x128xf32>
    %c0_520 = arith.constant 0 : index
    %c1_521 = arith.constant 1 : index
    %c4_522 = arith.constant 4 : index
    %c0_523 = arith.constant 0 : index
    %844 = vector.load %arg1[%c0_520, %c1_521, %c4_522, %c0_523] : memref<1x4x14x128xf32, #tpu.memory_space<vmem>>, vector<1x1x8x128xf32>
    %845 = vector.shape_cast %844 : vector<1x1x8x128xf32> to vector<8x128xf32>
    %c1_i32_524 = arith.constant 1 : i32
    %846 = tpu.dynamic_rotate %845 by %c1_i32_524 dim 1 : vector<8x128xf32>, i32 -> vector<8x128xf32>
    %847 = arith.mulf %846, %838 : vector<8x128xf32>
    %848 = arith.addf %818, %847 : vector<8x128xf32>
    %c0_525 = arith.constant 0 : index
    %c2_526 = arith.constant 2 : index
    %c4_527 = arith.constant 4 : index
    %c0_528 = arith.constant 0 : index
    %849 = vector.load %arg1[%c0_525, %c2_526, %c4_527, %c0_528] : memref<1x4x14x128xf32, #tpu.memory_space<vmem>>, vector<1x1x8x128xf32>
    %850 = vector.shape_cast %849 : vector<1x1x8x128xf32> to vector<8x128xf32>
    %c1_i32_529 = arith.constant 1 : i32
    %851 = tpu.dynamic_rotate %850 by %c1_i32_529 dim 1 : vector<8x128xf32>, i32 -> vector<8x128xf32>
    %852 = arith.mulf %851, %838 : vector<8x128xf32>
    %853 = arith.addf %823, %852 : vector<8x128xf32>
    %c0_530 = arith.constant 0 : index
    %c3_531 = arith.constant 3 : index
    %c4_532 = arith.constant 4 : index
    %c0_533 = arith.constant 0 : index
    %854 = vector.load %arg1[%c0_530, %c3_531, %c4_532, %c0_533] : memref<1x4x14x128xf32, #tpu.memory_space<vmem>>, vector<1x1x8x128xf32>
    %855 = vector.shape_cast %854 : vector<1x1x8x128xf32> to vector<8x128xf32>
    %c1_i32_534 = arith.constant 1 : i32
    %856 = tpu.dynamic_rotate %855 by %c1_i32_534 dim 1 : vector<8x128xf32>, i32 -> vector<8x128xf32>
    %857 = arith.mulf %856, %838 : vector<8x128xf32>
    %858 = arith.addf %828, %857 : vector<8x128xf32>
    %859 = arith.mulf %76, %631 : vector<10x128xf32>
    %860 = vector.extract_strided_slice %859 {offsets = [0, 0], sizes = [8, 128], strides = [1, 1]} : vector<10x128xf32> to vector<8x128xf32>
    %861 = vector.extract_strided_slice %859 {offsets = [1, 0], sizes = [8, 128], strides = [1, 1]} : vector<10x128xf32> to vector<8x128xf32>
    %862 = arith.addf %860, %861 : vector<8x128xf32>
    %863 = vector.extract_strided_slice %859 {offsets = [2, 0], sizes = [8, 128], strides = [1, 1]} : vector<10x128xf32> to vector<8x128xf32>
    %864 = arith.addf %862, %863 : vector<8x128xf32>
    %c1_i32_535 = arith.constant 1 : i32
    %865 = tpu.dynamic_rotate %864 by %c1_i32_535 dim 1 : vector<8x128xf32>, i32 -> vector<8x128xf32>
    %866 = arith.addf %865, %864 : vector<8x128xf32>
    %c127_i32_536 = arith.constant 127 : i32
    %867 = tpu.dynamic_rotate %864 by %c127_i32_536 dim 1 : vector<8x128xf32>, i32 -> vector<8x128xf32>
    %868 = arith.addf %866, %867 : vector<8x128xf32>
    %c0_537 = arith.constant 0 : index
    %c0_538 = arith.constant 0 : index
    %c4_539 = arith.constant 4 : index
    %c0_540 = arith.constant 0 : index
    %869 = vector.load %arg1[%c0_537, %c0_538, %c4_539, %c0_540] : memref<1x4x14x128xf32, #tpu.memory_space<vmem>>, vector<1x1x8x128xf32>
    %870 = vector.shape_cast %869 : vector<1x1x8x128xf32> to vector<8x128xf32>
    %871 = arith.mulf %870, %868 : vector<8x128xf32>
    %872 = arith.addf %843, %871 : vector<8x128xf32>
    %c0_541 = arith.constant 0 : index
    %c1_542 = arith.constant 1 : index
    %c4_543 = arith.constant 4 : index
    %c0_544 = arith.constant 0 : index
    %873 = vector.load %arg1[%c0_541, %c1_542, %c4_543, %c0_544] : memref<1x4x14x128xf32, #tpu.memory_space<vmem>>, vector<1x1x8x128xf32>
    %874 = vector.shape_cast %873 : vector<1x1x8x128xf32> to vector<8x128xf32>
    %875 = arith.mulf %874, %868 : vector<8x128xf32>
    %876 = arith.addf %848, %875 : vector<8x128xf32>
    %c0_545 = arith.constant 0 : index
    %c2_546 = arith.constant 2 : index
    %c4_547 = arith.constant 4 : index
    %c0_548 = arith.constant 0 : index
    %877 = vector.load %arg1[%c0_545, %c2_546, %c4_547, %c0_548] : memref<1x4x14x128xf32, #tpu.memory_space<vmem>>, vector<1x1x8x128xf32>
    %878 = vector.shape_cast %877 : vector<1x1x8x128xf32> to vector<8x128xf32>
    %879 = arith.mulf %878, %868 : vector<8x128xf32>
    %880 = arith.addf %853, %879 : vector<8x128xf32>
    %c0_549 = arith.constant 0 : index
    %c3_550 = arith.constant 3 : index
    %c4_551 = arith.constant 4 : index
    %c0_552 = arith.constant 0 : index
    %881 = vector.load %arg1[%c0_549, %c3_550, %c4_551, %c0_552] : memref<1x4x14x128xf32, #tpu.memory_space<vmem>>, vector<1x1x8x128xf32>
    %882 = vector.shape_cast %881 : vector<1x1x8x128xf32> to vector<8x128xf32>
    %883 = arith.mulf %882, %868 : vector<8x128xf32>
    %884 = arith.addf %858, %883 : vector<8x128xf32>
    %885 = arith.mulf %76, %632 : vector<10x128xf32>
    %886 = vector.extract_strided_slice %885 {offsets = [0, 0], sizes = [8, 128], strides = [1, 1]} : vector<10x128xf32> to vector<8x128xf32>
    %887 = vector.extract_strided_slice %885 {offsets = [1, 0], sizes = [8, 128], strides = [1, 1]} : vector<10x128xf32> to vector<8x128xf32>
    %888 = arith.addf %886, %887 : vector<8x128xf32>
    %889 = vector.extract_strided_slice %885 {offsets = [2, 0], sizes = [8, 128], strides = [1, 1]} : vector<10x128xf32> to vector<8x128xf32>
    %890 = arith.addf %888, %889 : vector<8x128xf32>
    %c1_i32_553 = arith.constant 1 : i32
    %891 = tpu.dynamic_rotate %890 by %c1_i32_553 dim 1 : vector<8x128xf32>, i32 -> vector<8x128xf32>
    %892 = arith.addf %891, %890 : vector<8x128xf32>
    %c127_i32_554 = arith.constant 127 : i32
    %893 = tpu.dynamic_rotate %890 by %c127_i32_554 dim 1 : vector<8x128xf32>, i32 -> vector<8x128xf32>
    %894 = arith.addf %892, %893 : vector<8x128xf32>
    %c0_555 = arith.constant 0 : index
    %c0_556 = arith.constant 0 : index
    %c4_557 = arith.constant 4 : index
    %c0_558 = arith.constant 0 : index
    %895 = vector.load %arg1[%c0_555, %c0_556, %c4_557, %c0_558] : memref<1x4x14x128xf32, #tpu.memory_space<vmem>>, vector<1x1x8x128xf32>
    %896 = vector.shape_cast %895 : vector<1x1x8x128xf32> to vector<8x128xf32>
    %c127_i32_559 = arith.constant 127 : i32
    %897 = tpu.dynamic_rotate %896 by %c127_i32_559 dim 1 : vector<8x128xf32>, i32 -> vector<8x128xf32>
    %898 = arith.mulf %897, %894 : vector<8x128xf32>
    %899 = arith.addf %872, %898 : vector<8x128xf32>
    %c0_560 = arith.constant 0 : index
    %c1_561 = arith.constant 1 : index
    %c4_562 = arith.constant 4 : index
    %c0_563 = arith.constant 0 : index
    %900 = vector.load %arg1[%c0_560, %c1_561, %c4_562, %c0_563] : memref<1x4x14x128xf32, #tpu.memory_space<vmem>>, vector<1x1x8x128xf32>
    %901 = vector.shape_cast %900 : vector<1x1x8x128xf32> to vector<8x128xf32>
    %c127_i32_564 = arith.constant 127 : i32
    %902 = tpu.dynamic_rotate %901 by %c127_i32_564 dim 1 : vector<8x128xf32>, i32 -> vector<8x128xf32>
    %903 = arith.mulf %902, %894 : vector<8x128xf32>
    %904 = arith.addf %876, %903 : vector<8x128xf32>
    %c0_565 = arith.constant 0 : index
    %c2_566 = arith.constant 2 : index
    %c4_567 = arith.constant 4 : index
    %c0_568 = arith.constant 0 : index
    %905 = vector.load %arg1[%c0_565, %c2_566, %c4_567, %c0_568] : memref<1x4x14x128xf32, #tpu.memory_space<vmem>>, vector<1x1x8x128xf32>
    %906 = vector.shape_cast %905 : vector<1x1x8x128xf32> to vector<8x128xf32>
    %c127_i32_569 = arith.constant 127 : i32
    %907 = tpu.dynamic_rotate %906 by %c127_i32_569 dim 1 : vector<8x128xf32>, i32 -> vector<8x128xf32>
    %908 = arith.mulf %907, %894 : vector<8x128xf32>
    %909 = arith.addf %880, %908 : vector<8x128xf32>
    %c0_570 = arith.constant 0 : index
    %c3_571 = arith.constant 3 : index
    %c4_572 = arith.constant 4 : index
    %c0_573 = arith.constant 0 : index
    %910 = vector.load %arg1[%c0_570, %c3_571, %c4_572, %c0_573] : memref<1x4x14x128xf32, #tpu.memory_space<vmem>>, vector<1x1x8x128xf32>
    %911 = vector.shape_cast %910 : vector<1x1x8x128xf32> to vector<8x128xf32>
    %c127_i32_574 = arith.constant 127 : i32
    %912 = tpu.dynamic_rotate %911 by %c127_i32_574 dim 1 : vector<8x128xf32>, i32 -> vector<8x128xf32>
    %913 = arith.mulf %912, %894 : vector<8x128xf32>
    %914 = arith.addf %884, %913 : vector<8x128xf32>
    %915 = arith.mulf %899, %567 : vector<8x128xf32>
    %c0_575 = arith.constant 0 : index
    %c0_576 = arith.constant 0 : index
    %c3_577 = arith.constant 3 : index
    %c0_578 = arith.constant 0 : index
    %916 = vector.load %arg5[%c0_575, %c0_576, %c3_577, %c0_578] : memref<1x4x14x128xf32, #tpu.memory_space<vmem>>, vector<1x1x8x128xf32>
    %917 = vector.shape_cast %916 : vector<1x1x8x128xf32> to vector<8x128xf32>
    %918 = arith.subf %915, %917 : vector<8x128xf32>
    %c4_579 = arith.constant 4 : index
    %c0_580 = arith.constant 0 : index
    %c0_581 = arith.constant 0 : index
    %919 = vector.load %arg6[%c4_579, %c0_580, %c0_581] : memref<16x8x128xf32, #tpu.memory_space<vmem>>, vector<1x8x128xf32>
    %920 = vector.shape_cast %919 : vector<1x8x128xf32> to vector<8x128xf32>
    %921 = vector.shape_cast %918 : vector<8x128xf32> to vector<1x8x128xf32>
    tpu.vector_store %arg6[%c4_579, %c0_580, %c0_581], %921 {strides = array<i32>} : memref<16x8x128xf32, #tpu.memory_space<vmem>>, vector<1x8x128xf32>,
    %922 = arith.mulf %904, %567 : vector<8x128xf32>
    %c0_582 = arith.constant 0 : index
    %c1_583 = arith.constant 1 : index
    %c3_584 = arith.constant 3 : index
    %c0_585 = arith.constant 0 : index
    %923 = vector.load %arg5[%c0_582, %c1_583, %c3_584, %c0_585] : memref<1x4x14x128xf32, #tpu.memory_space<vmem>>, vector<1x1x8x128xf32>
    %924 = vector.shape_cast %923 : vector<1x1x8x128xf32> to vector<8x128xf32>
    %925 = arith.subf %922, %924 : vector<8x128xf32>
    %c5 = arith.constant 5 : index
    %c0_586 = arith.constant 0 : index
    %c0_587 = arith.constant 0 : index
    %926 = vector.load %arg6[%c5, %c0_586, %c0_587] : memref<16x8x128xf32, #tpu.memory_space<vmem>>, vector<1x8x128xf32>
    %927 = vector.shape_cast %926 : vector<1x8x128xf32> to vector<8x128xf32>
    %928 = vector.shape_cast %925 : vector<8x128xf32> to vector<1x8x128xf32>
    tpu.vector_store %arg6[%c5, %c0_586, %c0_587], %928 {strides = array<i32>} : memref<16x8x128xf32, #tpu.memory_space<vmem>>, vector<1x8x128xf32>,
    %929 = arith.mulf %909, %567 : vector<8x128xf32>
    %c0_588 = arith.constant 0 : index
    %c2_589 = arith.constant 2 : index
    %c3_590 = arith.constant 3 : index
    %c0_591 = arith.constant 0 : index
    %930 = vector.load %arg5[%c0_588, %c2_589, %c3_590, %c0_591] : memref<1x4x14x128xf32, #tpu.memory_space<vmem>>, vector<1x1x8x128xf32>
    %931 = vector.shape_cast %930 : vector<1x1x8x128xf32> to vector<8x128xf32>
    %932 = arith.subf %929, %931 : vector<8x128xf32>
    %c6 = arith.constant 6 : index
    %c0_592 = arith.constant 0 : index
    %c0_593 = arith.constant 0 : index
    %933 = vector.load %arg6[%c6, %c0_592, %c0_593] : memref<16x8x128xf32, #tpu.memory_space<vmem>>, vector<1x8x128xf32>
    %934 = vector.shape_cast %933 : vector<1x8x128xf32> to vector<8x128xf32>
    %935 = vector.shape_cast %932 : vector<8x128xf32> to vector<1x8x128xf32>
    tpu.vector_store %arg6[%c6, %c0_592, %c0_593], %935 {strides = array<i32>} : memref<16x8x128xf32, #tpu.memory_space<vmem>>, vector<1x8x128xf32>,
    %936 = arith.mulf %914, %567 : vector<8x128xf32>
    %c0_594 = arith.constant 0 : index
    %c3_595 = arith.constant 3 : index
    %c3_596 = arith.constant 3 : index
    %c0_597 = arith.constant 0 : index
    %937 = vector.load %arg5[%c0_594, %c3_595, %c3_596, %c0_597] : memref<1x4x14x128xf32, #tpu.memory_space<vmem>>, vector<1x1x8x128xf32>
    %938 = vector.shape_cast %937 : vector<1x1x8x128xf32> to vector<8x128xf32>
    %939 = arith.subf %936, %938 : vector<8x128xf32>
    %c7 = arith.constant 7 : index
    %c0_598 = arith.constant 0 : index
    %c0_599 = arith.constant 0 : index
    %940 = vector.load %arg6[%c7, %c0_598, %c0_599] : memref<16x8x128xf32, #tpu.memory_space<vmem>>, vector<1x8x128xf32>
    %941 = vector.shape_cast %940 : vector<1x8x128xf32> to vector<8x128xf32>
    %942 = vector.shape_cast %939 : vector<8x128xf32> to vector<1x8x128xf32>
    tpu.vector_store %arg6[%c7, %c0_598, %c0_599], %942 {strides = array<i32>} : memref<16x8x128xf32, #tpu.memory_space<vmem>>, vector<1x8x128xf32>,
    %943 = arith.maximumf %638, %644 : vector<10x128xf32>
    %944 = arith.maximumf %650, %656 : vector<10x128xf32>
    %945 = arith.maximumf %662, %668 : vector<10x128xf32>
    %946 = arith.maximumf %674, %680 : vector<10x128xf32>
    %947 = arith.maximumf %943, %944 : vector<10x128xf32>
    %948 = arith.maximumf %945, %946 : vector<10x128xf32>
    %949 = arith.maximumf %947, %948 : vector<10x128xf32>
    %950 = arith.maximumf %949, %686 : vector<10x128xf32>
    %951 = arith.subf %638, %950 : vector<10x128xf32>
    %952 = math.exp %951 : vector<10x128xf32>
    %953 = arith.subf %644, %950 : vector<10x128xf32>
    %954 = math.exp %953 : vector<10x128xf32>
    %955 = arith.subf %650, %950 : vector<10x128xf32>
    %956 = math.exp %955 : vector<10x128xf32>
    %957 = arith.subf %656, %950 : vector<10x128xf32>
    %958 = math.exp %957 : vector<10x128xf32>
    %959 = arith.subf %662, %950 : vector<10x128xf32>
    %960 = math.exp %959 : vector<10x128xf32>
    %961 = arith.subf %668, %950 : vector<10x128xf32>
    %962 = math.exp %961 : vector<10x128xf32>
    %963 = arith.subf %674, %950 : vector<10x128xf32>
    %964 = math.exp %963 : vector<10x128xf32>
    %965 = arith.subf %680, %950 : vector<10x128xf32>
    %966 = math.exp %965 : vector<10x128xf32>
    %967 = arith.subf %686, %950 : vector<10x128xf32>
    %968 = math.exp %967 : vector<10x128xf32>
    %969 = arith.addf %952, %954 : vector<10x128xf32>
    %970 = arith.addf %956, %958 : vector<10x128xf32>
    %971 = arith.addf %960, %962 : vector<10x128xf32>
    %972 = arith.addf %964, %966 : vector<10x128xf32>
    %973 = arith.addf %969, %970 : vector<10x128xf32>
    %974 = arith.addf %971, %972 : vector<10x128xf32>
    %975 = arith.addf %973, %974 : vector<10x128xf32>
    %976 = arith.addf %975, %968 : vector<10x128xf32>
    %cst_600 = arith.constant 1.000000e+00 : f32
    %977 = vector.broadcast %cst_600 : f32 to vector<10x128xf32>
    %978 = arith.divf %977, %976 : vector<10x128xf32>
    %979 = arith.mulf %952, %978 : vector<10x128xf32>
    %980 = arith.mulf %954, %978 : vector<10x128xf32>
    %981 = arith.mulf %956, %978 : vector<10x128xf32>
    %982 = arith.mulf %958, %978 : vector<10x128xf32>
    %983 = arith.mulf %960, %978 : vector<10x128xf32>
    %984 = arith.mulf %962, %978 : vector<10x128xf32>
    %985 = arith.mulf %964, %978 : vector<10x128xf32>
    %986 = arith.mulf %966, %978 : vector<10x128xf32>
    %987 = arith.mulf %968, %978 : vector<10x128xf32>
    %cst_601 = arith.constant 1.000000e+00 : f32
    %988 = vector.broadcast %cst_601 : f32 to vector<10x128xf32>
    %989 = arith.subf %988, %979 : vector<10x128xf32>
    %cst_602 = arith.constant 9.99999996E-13 : f32
    %990 = vector.broadcast %cst_602 : f32 to vector<10x128xf32>
    %991 = arith.maximumf %989, %990 : vector<10x128xf32>
    %992 = math.log %991 : vector<10x128xf32>
    %993 = arith.addf %638, %992 : vector<10x128xf32>
    %cst_603 = arith.constant 1.000000e+00 : f32
    %994 = vector.broadcast %cst_603 : f32 to vector<10x128xf32>
    %995 = arith.subf %994, %980 : vector<10x128xf32>
    %cst_604 = arith.constant 9.99999996E-13 : f32
    %996 = vector.broadcast %cst_604 : f32 to vector<10x128xf32>
    %997 = arith.maximumf %995, %996 : vector<10x128xf32>
    %998 = math.log %997 : vector<10x128xf32>
    %999 = arith.addf %644, %998 : vector<10x128xf32>
    %cst_605 = arith.constant 1.000000e+00 : f32
    %1000 = vector.broadcast %cst_605 : f32 to vector<10x128xf32>
    %1001 = arith.subf %1000, %981 : vector<10x128xf32>
    %cst_606 = arith.constant 9.99999996E-13 : f32
    %1002 = vector.broadcast %cst_606 : f32 to vector<10x128xf32>
    %1003 = arith.maximumf %1001, %1002 : vector<10x128xf32>
    %1004 = math.log %1003 : vector<10x128xf32>
    %1005 = arith.addf %650, %1004 : vector<10x128xf32>
    %cst_607 = arith.constant 1.000000e+00 : f32
    %1006 = vector.broadcast %cst_607 : f32 to vector<10x128xf32>
    %1007 = arith.subf %1006, %982 : vector<10x128xf32>
    %cst_608 = arith.constant 9.99999996E-13 : f32
    %1008 = vector.broadcast %cst_608 : f32 to vector<10x128xf32>
    %1009 = arith.maximumf %1007, %1008 : vector<10x128xf32>
    %1010 = math.log %1009 : vector<10x128xf32>
    %1011 = arith.addf %656, %1010 : vector<10x128xf32>
    %cst_609 = arith.constant 1.000000e+00 : f32
    %1012 = vector.broadcast %cst_609 : f32 to vector<10x128xf32>
    %1013 = arith.subf %1012, %983 : vector<10x128xf32>
    %cst_610 = arith.constant 9.99999996E-13 : f32
    %1014 = vector.broadcast %cst_610 : f32 to vector<10x128xf32>
    %1015 = arith.maximumf %1013, %1014 : vector<10x128xf32>
    %1016 = math.log %1015 : vector<10x128xf32>
    %1017 = arith.addf %662, %1016 : vector<10x128xf32>
    %cst_611 = arith.constant 1.000000e+00 : f32
    %1018 = vector.broadcast %cst_611 : f32 to vector<10x128xf32>
    %1019 = arith.subf %1018, %984 : vector<10x128xf32>
    %cst_612 = arith.constant 9.99999996E-13 : f32
    %1020 = vector.broadcast %cst_612 : f32 to vector<10x128xf32>
    %1021 = arith.maximumf %1019, %1020 : vector<10x128xf32>
    %1022 = math.log %1021 : vector<10x128xf32>
    %1023 = arith.addf %668, %1022 : vector<10x128xf32>
    %cst_613 = arith.constant 1.000000e+00 : f32
    %1024 = vector.broadcast %cst_613 : f32 to vector<10x128xf32>
    %1025 = arith.subf %1024, %985 : vector<10x128xf32>
    %cst_614 = arith.constant 9.99999996E-13 : f32
    %1026 = vector.broadcast %cst_614 : f32 to vector<10x128xf32>
    %1027 = arith.maximumf %1025, %1026 : vector<10x128xf32>
    %1028 = math.log %1027 : vector<10x128xf32>
    %1029 = arith.addf %674, %1028 : vector<10x128xf32>
    %cst_615 = arith.constant 1.000000e+00 : f32
    %1030 = vector.broadcast %cst_615 : f32 to vector<10x128xf32>
    %1031 = arith.subf %1030, %986 : vector<10x128xf32>
    %cst_616 = arith.constant 9.99999996E-13 : f32
    %1032 = vector.broadcast %cst_616 : f32 to vector<10x128xf32>
    %1033 = arith.maximumf %1031, %1032 : vector<10x128xf32>
    %1034 = math.log %1033 : vector<10x128xf32>
    %1035 = arith.addf %680, %1034 : vector<10x128xf32>
    %cst_617 = arith.constant 1.000000e+00 : f32
    %1036 = vector.broadcast %cst_617 : f32 to vector<10x128xf32>
    %1037 = arith.subf %1036, %987 : vector<10x128xf32>
    %cst_618 = arith.constant 9.99999996E-13 : f32
    %1038 = vector.broadcast %cst_618 : f32 to vector<10x128xf32>
    %1039 = arith.maximumf %1037, %1038 : vector<10x128xf32>
    %1040 = math.log %1039 : vector<10x128xf32>
    %1041 = arith.addf %686, %1040 : vector<10x128xf32>
    %1042 = arith.mulf %76, %979 : vector<10x128xf32>
    %1043 = vector.extract_strided_slice %1042 {offsets = [0, 0], sizes = [8, 128], strides = [1, 1]} : vector<10x128xf32> to vector<8x128xf32>
    %1044 = vector.extract_strided_slice %1042 {offsets = [1, 0], sizes = [8, 128], strides = [1, 1]} : vector<10x128xf32> to vector<8x128xf32>
    %1045 = arith.addf %1043, %1044 : vector<8x128xf32>
    %1046 = vector.extract_strided_slice %1042 {offsets = [2, 0], sizes = [8, 128], strides = [1, 1]} : vector<10x128xf32> to vector<8x128xf32>
    %1047 = arith.addf %1045, %1046 : vector<8x128xf32>
    %c1_i32_619 = arith.constant 1 : i32
    %1048 = tpu.dynamic_rotate %1047 by %c1_i32_619 dim 1 : vector<8x128xf32>, i32 -> vector<8x128xf32>
    %1049 = arith.addf %1048, %1047 : vector<8x128xf32>
    %c127_i32_620 = arith.constant 127 : i32
    %1050 = tpu.dynamic_rotate %1047 by %c127_i32_620 dim 1 : vector<8x128xf32>, i32 -> vector<8x128xf32>
    %1051 = arith.addf %1049, %1050 : vector<8x128xf32>
    %c0_621 = arith.constant 0 : index
    %c0_622 = arith.constant 0 : index
    %c2_623 = arith.constant 2 : index
    %c0_624 = arith.constant 0 : index
    %1052 = vector.load %arg1[%c0_621, %c0_622, %c2_623, %c0_624] : memref<1x4x14x128xf32, #tpu.memory_space<vmem>>, vector<1x1x8x128xf32>
    %1053 = vector.shape_cast %1052 : vector<1x1x8x128xf32> to vector<8x128xf32>
    %c1_i32_625 = arith.constant 1 : i32
    %1054 = tpu.dynamic_rotate %1053 by %c1_i32_625 dim 1 : vector<8x128xf32>, i32 -> vector<8x128xf32>
    %1055 = arith.mulf %1054, %1051 : vector<8x128xf32>
    %c0_626 = arith.constant 0 : index
    %c1_627 = arith.constant 1 : index
    %c2_628 = arith.constant 2 : index
    %c0_629 = arith.constant 0 : index
    %1056 = vector.load %arg1[%c0_626, %c1_627, %c2_628, %c0_629] : memref<1x4x14x128xf32, #tpu.memory_space<vmem>>, vector<1x1x8x128xf32>
    %1057 = vector.shape_cast %1056 : vector<1x1x8x128xf32> to vector<8x128xf32>
    %c1_i32_630 = arith.constant 1 : i32
    %1058 = tpu.dynamic_rotate %1057 by %c1_i32_630 dim 1 : vector<8x128xf32>, i32 -> vector<8x128xf32>
    %1059 = arith.mulf %1058, %1051 : vector<8x128xf32>
    %c0_631 = arith.constant 0 : index
    %c2_632 = arith.constant 2 : index
    %c2_633 = arith.constant 2 : index
    %c0_634 = arith.constant 0 : index
    %1060 = vector.load %arg1[%c0_631, %c2_632, %c2_633, %c0_634] : memref<1x4x14x128xf32, #tpu.memory_space<vmem>>, vector<1x1x8x128xf32>
    %1061 = vector.shape_cast %1060 : vector<1x1x8x128xf32> to vector<8x128xf32>
    %c1_i32_635 = arith.constant 1 : i32
    %1062 = tpu.dynamic_rotate %1061 by %c1_i32_635 dim 1 : vector<8x128xf32>, i32 -> vector<8x128xf32>
    %1063 = arith.mulf %1062, %1051 : vector<8x128xf32>
    %c0_636 = arith.constant 0 : index
    %c3_637 = arith.constant 3 : index
    %c2_638 = arith.constant 2 : index
    %c0_639 = arith.constant 0 : index
    %1064 = vector.load %arg1[%c0_636, %c3_637, %c2_638, %c0_639] : memref<1x4x14x128xf32, #tpu.memory_space<vmem>>, vector<1x1x8x128xf32>
    %1065 = vector.shape_cast %1064 : vector<1x1x8x128xf32> to vector<8x128xf32>
    %c1_i32_640 = arith.constant 1 : i32
    %1066 = tpu.dynamic_rotate %1065 by %c1_i32_640 dim 1 : vector<8x128xf32>, i32 -> vector<8x128xf32>
    %1067 = arith.mulf %1066, %1051 : vector<8x128xf32>
    %1068 = arith.mulf %76, %980 : vector<10x128xf32>
    %1069 = vector.extract_strided_slice %1068 {offsets = [0, 0], sizes = [8, 128], strides = [1, 1]} : vector<10x128xf32> to vector<8x128xf32>
    %1070 = vector.extract_strided_slice %1068 {offsets = [1, 0], sizes = [8, 128], strides = [1, 1]} : vector<10x128xf32> to vector<8x128xf32>
    %1071 = arith.addf %1069, %1070 : vector<8x128xf32>
    %1072 = vector.extract_strided_slice %1068 {offsets = [2, 0], sizes = [8, 128], strides = [1, 1]} : vector<10x128xf32> to vector<8x128xf32>
    %1073 = arith.addf %1071, %1072 : vector<8x128xf32>
    %c1_i32_641 = arith.constant 1 : i32
    %1074 = tpu.dynamic_rotate %1073 by %c1_i32_641 dim 1 : vector<8x128xf32>, i32 -> vector<8x128xf32>
    %1075 = arith.addf %1074, %1073 : vector<8x128xf32>
    %c127_i32_642 = arith.constant 127 : i32
    %1076 = tpu.dynamic_rotate %1073 by %c127_i32_642 dim 1 : vector<8x128xf32>, i32 -> vector<8x128xf32>
    %1077 = arith.addf %1075, %1076 : vector<8x128xf32>
    %c0_643 = arith.constant 0 : index
    %c0_644 = arith.constant 0 : index
    %c2_645 = arith.constant 2 : index
    %c0_646 = arith.constant 0 : index
    %1078 = vector.load %arg1[%c0_643, %c0_644, %c2_645, %c0_646] : memref<1x4x14x128xf32, #tpu.memory_space<vmem>>, vector<1x1x8x128xf32>
    %1079 = vector.shape_cast %1078 : vector<1x1x8x128xf32> to vector<8x128xf32>
    %1080 = arith.mulf %1079, %1077 : vector<8x128xf32>
    %1081 = arith.addf %1055, %1080 : vector<8x128xf32>
    %c0_647 = arith.constant 0 : index
    %c1_648 = arith.constant 1 : index
    %c2_649 = arith.constant 2 : index
    %c0_650 = arith.constant 0 : index
    %1082 = vector.load %arg1[%c0_647, %c1_648, %c2_649, %c0_650] : memref<1x4x14x128xf32, #tpu.memory_space<vmem>>, vector<1x1x8x128xf32>
    %1083 = vector.shape_cast %1082 : vector<1x1x8x128xf32> to vector<8x128xf32>
    %1084 = arith.mulf %1083, %1077 : vector<8x128xf32>
    %1085 = arith.addf %1059, %1084 : vector<8x128xf32>
    %c0_651 = arith.constant 0 : index
    %c2_652 = arith.constant 2 : index
    %c2_653 = arith.constant 2 : index
    %c0_654 = arith.constant 0 : index
    %1086 = vector.load %arg1[%c0_651, %c2_652, %c2_653, %c0_654] : memref<1x4x14x128xf32, #tpu.memory_space<vmem>>, vector<1x1x8x128xf32>
    %1087 = vector.shape_cast %1086 : vector<1x1x8x128xf32> to vector<8x128xf32>
    %1088 = arith.mulf %1087, %1077 : vector<8x128xf32>
    %1089 = arith.addf %1063, %1088 : vector<8x128xf32>
    %c0_655 = arith.constant 0 : index
    %c3_656 = arith.constant 3 : index
    %c2_657 = arith.constant 2 : index
    %c0_658 = arith.constant 0 : index
    %1090 = vector.load %arg1[%c0_655, %c3_656, %c2_657, %c0_658] : memref<1x4x14x128xf32, #tpu.memory_space<vmem>>, vector<1x1x8x128xf32>
    %1091 = vector.shape_cast %1090 : vector<1x1x8x128xf32> to vector<8x128xf32>
    %1092 = arith.mulf %1091, %1077 : vector<8x128xf32>
    %1093 = arith.addf %1067, %1092 : vector<8x128xf32>
    %1094 = arith.mulf %76, %981 : vector<10x128xf32>
    %1095 = vector.extract_strided_slice %1094 {offsets = [0, 0], sizes = [8, 128], strides = [1, 1]} : vector<10x128xf32> to vector<8x128xf32>
    %1096 = vector.extract_strided_slice %1094 {offsets = [1, 0], sizes = [8, 128], strides = [1, 1]} : vector<10x128xf32> to vector<8x128xf32>
    %1097 = arith.addf %1095, %1096 : vector<8x128xf32>
    %1098 = vector.extract_strided_slice %1094 {offsets = [2, 0], sizes = [8, 128], strides = [1, 1]} : vector<10x128xf32> to vector<8x128xf32>
    %1099 = arith.addf %1097, %1098 : vector<8x128xf32>
    %c1_i32_659 = arith.constant 1 : i32
    %1100 = tpu.dynamic_rotate %1099 by %c1_i32_659 dim 1 : vector<8x128xf32>, i32 -> vector<8x128xf32>
    %1101 = arith.addf %1100, %1099 : vector<8x128xf32>
    %c127_i32_660 = arith.constant 127 : i32
    %1102 = tpu.dynamic_rotate %1099 by %c127_i32_660 dim 1 : vector<8x128xf32>, i32 -> vector<8x128xf32>
    %1103 = arith.addf %1101, %1102 : vector<8x128xf32>
    %c0_661 = arith.constant 0 : index
    %c0_662 = arith.constant 0 : index
    %c2_663 = arith.constant 2 : index
    %c0_664 = arith.constant 0 : index
    %1104 = vector.load %arg1[%c0_661, %c0_662, %c2_663, %c0_664] : memref<1x4x14x128xf32, #tpu.memory_space<vmem>>, vector<1x1x8x128xf32>
    %1105 = vector.shape_cast %1104 : vector<1x1x8x128xf32> to vector<8x128xf32>
    %c127_i32_665 = arith.constant 127 : i32
    %1106 = tpu.dynamic_rotate %1105 by %c127_i32_665 dim 1 : vector<8x128xf32>, i32 -> vector<8x128xf32>
    %1107 = arith.mulf %1106, %1103 : vector<8x128xf32>
    %1108 = arith.addf %1081, %1107 : vector<8x128xf32>
    %c0_666 = arith.constant 0 : index
    %c1_667 = arith.constant 1 : index
    %c2_668 = arith.constant 2 : index
    %c0_669 = arith.constant 0 : index
    %1109 = vector.load %arg1[%c0_666, %c1_667, %c2_668, %c0_669] : memref<1x4x14x128xf32, #tpu.memory_space<vmem>>, vector<1x1x8x128xf32>
    %1110 = vector.shape_cast %1109 : vector<1x1x8x128xf32> to vector<8x128xf32>
    %c127_i32_670 = arith.constant 127 : i32
    %1111 = tpu.dynamic_rotate %1110 by %c127_i32_670 dim 1 : vector<8x128xf32>, i32 -> vector<8x128xf32>
    %1112 = arith.mulf %1111, %1103 : vector<8x128xf32>
    %1113 = arith.addf %1085, %1112 : vector<8x128xf32>
    %c0_671 = arith.constant 0 : index
    %c2_672 = arith.constant 2 : index
    %c2_673 = arith.constant 2 : index
    %c0_674 = arith.constant 0 : index
    %1114 = vector.load %arg1[%c0_671, %c2_672, %c2_673, %c0_674] : memref<1x4x14x128xf32, #tpu.memory_space<vmem>>, vector<1x1x8x128xf32>
    %1115 = vector.shape_cast %1114 : vector<1x1x8x128xf32> to vector<8x128xf32>
    %c127_i32_675 = arith.constant 127 : i32
    %1116 = tpu.dynamic_rotate %1115 by %c127_i32_675 dim 1 : vector<8x128xf32>, i32 -> vector<8x128xf32>
    %1117 = arith.mulf %1116, %1103 : vector<8x128xf32>
    %1118 = arith.addf %1089, %1117 : vector<8x128xf32>
    %c0_676 = arith.constant 0 : index
    %c3_677 = arith.constant 3 : index
    %c2_678 = arith.constant 2 : index
    %c0_679 = arith.constant 0 : index
    %1119 = vector.load %arg1[%c0_676, %c3_677, %c2_678, %c0_679] : memref<1x4x14x128xf32, #tpu.memory_space<vmem>>, vector<1x1x8x128xf32>
    %1120 = vector.shape_cast %1119 : vector<1x1x8x128xf32> to vector<8x128xf32>
    %c127_i32_680 = arith.constant 127 : i32
    %1121 = tpu.dynamic_rotate %1120 by %c127_i32_680 dim 1 : vector<8x128xf32>, i32 -> vector<8x128xf32>
    %1122 = arith.mulf %1121, %1103 : vector<8x128xf32>
    %1123 = arith.addf %1093, %1122 : vector<8x128xf32>
    %1124 = arith.mulf %76, %982 : vector<10x128xf32>
    %1125 = vector.extract_strided_slice %1124 {offsets = [0, 0], sizes = [8, 128], strides = [1, 1]} : vector<10x128xf32> to vector<8x128xf32>
    %1126 = vector.extract_strided_slice %1124 {offsets = [1, 0], sizes = [8, 128], strides = [1, 1]} : vector<10x128xf32> to vector<8x128xf32>
    %1127 = arith.addf %1125, %1126 : vector<8x128xf32>
    %1128 = vector.extract_strided_slice %1124 {offsets = [2, 0], sizes = [8, 128], strides = [1, 1]} : vector<10x128xf32> to vector<8x128xf32>
    %1129 = arith.addf %1127, %1128 : vector<8x128xf32>
    %c1_i32_681 = arith.constant 1 : i32
    %1130 = tpu.dynamic_rotate %1129 by %c1_i32_681 dim 1 : vector<8x128xf32>, i32 -> vector<8x128xf32>
    %1131 = arith.addf %1130, %1129 : vector<8x128xf32>
    %c127_i32_682 = arith.constant 127 : i32
    %1132 = tpu.dynamic_rotate %1129 by %c127_i32_682 dim 1 : vector<8x128xf32>, i32 -> vector<8x128xf32>
    %1133 = arith.addf %1131, %1132 : vector<8x128xf32>
    %c0_683 = arith.constant 0 : index
    %c0_684 = arith.constant 0 : index
    %c3_685 = arith.constant 3 : index
    %c0_686 = arith.constant 0 : index
    %1134 = vector.load %arg1[%c0_683, %c0_684, %c3_685, %c0_686] : memref<1x4x14x128xf32, #tpu.memory_space<vmem>>, vector<1x1x8x128xf32>
    %1135 = vector.shape_cast %1134 : vector<1x1x8x128xf32> to vector<8x128xf32>
    %c1_i32_687 = arith.constant 1 : i32
    %1136 = tpu.dynamic_rotate %1135 by %c1_i32_687 dim 1 : vector<8x128xf32>, i32 -> vector<8x128xf32>
    %1137 = arith.mulf %1136, %1133 : vector<8x128xf32>
    %1138 = arith.addf %1108, %1137 : vector<8x128xf32>
    %c0_688 = arith.constant 0 : index
    %c1_689 = arith.constant 1 : index
    %c3_690 = arith.constant 3 : index
    %c0_691 = arith.constant 0 : index
    %1139 = vector.load %arg1[%c0_688, %c1_689, %c3_690, %c0_691] : memref<1x4x14x128xf32, #tpu.memory_space<vmem>>, vector<1x1x8x128xf32>
    %1140 = vector.shape_cast %1139 : vector<1x1x8x128xf32> to vector<8x128xf32>
    %c1_i32_692 = arith.constant 1 : i32
    %1141 = tpu.dynamic_rotate %1140 by %c1_i32_692 dim 1 : vector<8x128xf32>, i32 -> vector<8x128xf32>
    %1142 = arith.mulf %1141, %1133 : vector<8x128xf32>
    %1143 = arith.addf %1113, %1142 : vector<8x128xf32>
    %c0_693 = arith.constant 0 : index
    %c2_694 = arith.constant 2 : index
    %c3_695 = arith.constant 3 : index
    %c0_696 = arith.constant 0 : index
    %1144 = vector.load %arg1[%c0_693, %c2_694, %c3_695, %c0_696] : memref<1x4x14x128xf32, #tpu.memory_space<vmem>>, vector<1x1x8x128xf32>
    %1145 = vector.shape_cast %1144 : vector<1x1x8x128xf32> to vector<8x128xf32>
    %c1_i32_697 = arith.constant 1 : i32
    %1146 = tpu.dynamic_rotate %1145 by %c1_i32_697 dim 1 : vector<8x128xf32>, i32 -> vector<8x128xf32>
    %1147 = arith.mulf %1146, %1133 : vector<8x128xf32>
    %1148 = arith.addf %1118, %1147 : vector<8x128xf32>
    %c0_698 = arith.constant 0 : index
    %c3_699 = arith.constant 3 : index
    %c3_700 = arith.constant 3 : index
    %c0_701 = arith.constant 0 : index
    %1149 = vector.load %arg1[%c0_698, %c3_699, %c3_700, %c0_701] : memref<1x4x14x128xf32, #tpu.memory_space<vmem>>, vector<1x1x8x128xf32>
    %1150 = vector.shape_cast %1149 : vector<1x1x8x128xf32> to vector<8x128xf32>
    %c1_i32_702 = arith.constant 1 : i32
    %1151 = tpu.dynamic_rotate %1150 by %c1_i32_702 dim 1 : vector<8x128xf32>, i32 -> vector<8x128xf32>
    %1152 = arith.mulf %1151, %1133 : vector<8x128xf32>
    %1153 = arith.addf %1123, %1152 : vector<8x128xf32>
    %1154 = arith.mulf %76, %984 : vector<10x128xf32>
    %1155 = vector.extract_strided_slice %1154 {offsets = [0, 0], sizes = [8, 128], strides = [1, 1]} : vector<10x128xf32> to vector<8x128xf32>
    %1156 = vector.extract_strided_slice %1154 {offsets = [1, 0], sizes = [8, 128], strides = [1, 1]} : vector<10x128xf32> to vector<8x128xf32>
    %1157 = arith.addf %1155, %1156 : vector<8x128xf32>
    %1158 = vector.extract_strided_slice %1154 {offsets = [2, 0], sizes = [8, 128], strides = [1, 1]} : vector<10x128xf32> to vector<8x128xf32>
    %1159 = arith.addf %1157, %1158 : vector<8x128xf32>
    %c1_i32_703 = arith.constant 1 : i32
    %1160 = tpu.dynamic_rotate %1159 by %c1_i32_703 dim 1 : vector<8x128xf32>, i32 -> vector<8x128xf32>
    %1161 = arith.addf %1160, %1159 : vector<8x128xf32>
    %c127_i32_704 = arith.constant 127 : i32
    %1162 = tpu.dynamic_rotate %1159 by %c127_i32_704 dim 1 : vector<8x128xf32>, i32 -> vector<8x128xf32>
    %1163 = arith.addf %1161, %1162 : vector<8x128xf32>
    %c0_705 = arith.constant 0 : index
    %c0_706 = arith.constant 0 : index
    %c3_707 = arith.constant 3 : index
    %c0_708 = arith.constant 0 : index
    %1164 = vector.load %arg1[%c0_705, %c0_706, %c3_707, %c0_708] : memref<1x4x14x128xf32, #tpu.memory_space<vmem>>, vector<1x1x8x128xf32>
    %1165 = vector.shape_cast %1164 : vector<1x1x8x128xf32> to vector<8x128xf32>
    %c127_i32_709 = arith.constant 127 : i32
    %1166 = tpu.dynamic_rotate %1165 by %c127_i32_709 dim 1 : vector<8x128xf32>, i32 -> vector<8x128xf32>
    %1167 = arith.mulf %1166, %1163 : vector<8x128xf32>
    %1168 = arith.addf %1138, %1167 : vector<8x128xf32>
    %c0_710 = arith.constant 0 : index
    %c1_711 = arith.constant 1 : index
    %c3_712 = arith.constant 3 : index
    %c0_713 = arith.constant 0 : index
    %1169 = vector.load %arg1[%c0_710, %c1_711, %c3_712, %c0_713] : memref<1x4x14x128xf32, #tpu.memory_space<vmem>>, vector<1x1x8x128xf32>
    %1170 = vector.shape_cast %1169 : vector<1x1x8x128xf32> to vector<8x128xf32>
    %c127_i32_714 = arith.constant 127 : i32
    %1171 = tpu.dynamic_rotate %1170 by %c127_i32_714 dim 1 : vector<8x128xf32>, i32 -> vector<8x128xf32>
    %1172 = arith.mulf %1171, %1163 : vector<8x128xf32>
    %1173 = arith.addf %1143, %1172 : vector<8x128xf32>
    %c0_715 = arith.constant 0 : index
    %c2_716 = arith.constant 2 : index
    %c3_717 = arith.constant 3 : index
    %c0_718 = arith.constant 0 : index
    %1174 = vector.load %arg1[%c0_715, %c2_716, %c3_717, %c0_718] : memref<1x4x14x128xf32, #tpu.memory_space<vmem>>, vector<1x1x8x128xf32>
    %1175 = vector.shape_cast %1174 : vector<1x1x8x128xf32> to vector<8x128xf32>
    %c127_i32_719 = arith.constant 127 : i32
    %1176 = tpu.dynamic_rotate %1175 by %c127_i32_719 dim 1 : vector<8x128xf32>, i32 -> vector<8x128xf32>
    %1177 = arith.mulf %1176, %1163 : vector<8x128xf32>
    %1178 = arith.addf %1148, %1177 : vector<8x128xf32>
    %c0_720 = arith.constant 0 : index
    %c3_721 = arith.constant 3 : index
    %c3_722 = arith.constant 3 : index
    %c0_723 = arith.constant 0 : index
    %1179 = vector.load %arg1[%c0_720, %c3_721, %c3_722, %c0_723] : memref<1x4x14x128xf32, #tpu.memory_space<vmem>>, vector<1x1x8x128xf32>
    %1180 = vector.shape_cast %1179 : vector<1x1x8x128xf32> to vector<8x128xf32>
    %c127_i32_724 = arith.constant 127 : i32
    %1181 = tpu.dynamic_rotate %1180 by %c127_i32_724 dim 1 : vector<8x128xf32>, i32 -> vector<8x128xf32>
    %1182 = arith.mulf %1181, %1163 : vector<8x128xf32>
    %1183 = arith.addf %1153, %1182 : vector<8x128xf32>
    %1184 = arith.mulf %76, %985 : vector<10x128xf32>
    %1185 = vector.extract_strided_slice %1184 {offsets = [0, 0], sizes = [8, 128], strides = [1, 1]} : vector<10x128xf32> to vector<8x128xf32>
    %1186 = vector.extract_strided_slice %1184 {offsets = [1, 0], sizes = [8, 128], strides = [1, 1]} : vector<10x128xf32> to vector<8x128xf32>
    %1187 = arith.addf %1185, %1186 : vector<8x128xf32>
    %1188 = vector.extract_strided_slice %1184 {offsets = [2, 0], sizes = [8, 128], strides = [1, 1]} : vector<10x128xf32> to vector<8x128xf32>
    %1189 = arith.addf %1187, %1188 : vector<8x128xf32>
    %c1_i32_725 = arith.constant 1 : i32
    %1190 = tpu.dynamic_rotate %1189 by %c1_i32_725 dim 1 : vector<8x128xf32>, i32 -> vector<8x128xf32>
    %1191 = arith.addf %1190, %1189 : vector<8x128xf32>
    %c127_i32_726 = arith.constant 127 : i32
    %1192 = tpu.dynamic_rotate %1189 by %c127_i32_726 dim 1 : vector<8x128xf32>, i32 -> vector<8x128xf32>
    %1193 = arith.addf %1191, %1192 : vector<8x128xf32>
    %c0_727 = arith.constant 0 : index
    %c0_728 = arith.constant 0 : index
    %c4_729 = arith.constant 4 : index
    %c0_730 = arith.constant 0 : index
    %1194 = vector.load %arg1[%c0_727, %c0_728, %c4_729, %c0_730] : memref<1x4x14x128xf32, #tpu.memory_space<vmem>>, vector<1x1x8x128xf32>
    %1195 = vector.shape_cast %1194 : vector<1x1x8x128xf32> to vector<8x128xf32>
    %c1_i32_731 = arith.constant 1 : i32
    %1196 = tpu.dynamic_rotate %1195 by %c1_i32_731 dim 1 : vector<8x128xf32>, i32 -> vector<8x128xf32>
    %1197 = arith.mulf %1196, %1193 : vector<8x128xf32>
    %1198 = arith.addf %1168, %1197 : vector<8x128xf32>
    %c0_732 = arith.constant 0 : index
    %c1_733 = arith.constant 1 : index
    %c4_734 = arith.constant 4 : index
    %c0_735 = arith.constant 0 : index
    %1199 = vector.load %arg1[%c0_732, %c1_733, %c4_734, %c0_735] : memref<1x4x14x128xf32, #tpu.memory_space<vmem>>, vector<1x1x8x128xf32>
    %1200 = vector.shape_cast %1199 : vector<1x1x8x128xf32> to vector<8x128xf32>
    %c1_i32_736 = arith.constant 1 : i32
    %1201 = tpu.dynamic_rotate %1200 by %c1_i32_736 dim 1 : vector<8x128xf32>, i32 -> vector<8x128xf32>
    %1202 = arith.mulf %1201, %1193 : vector<8x128xf32>
    %1203 = arith.addf %1173, %1202 : vector<8x128xf32>
    %c0_737 = arith.constant 0 : index
    %c2_738 = arith.constant 2 : index
    %c4_739 = arith.constant 4 : index
    %c0_740 = arith.constant 0 : index
    %1204 = vector.load %arg1[%c0_737, %c2_738, %c4_739, %c0_740] : memref<1x4x14x128xf32, #tpu.memory_space<vmem>>, vector<1x1x8x128xf32>
    %1205 = vector.shape_cast %1204 : vector<1x1x8x128xf32> to vector<8x128xf32>
    %c1_i32_741 = arith.constant 1 : i32
    %1206 = tpu.dynamic_rotate %1205 by %c1_i32_741 dim 1 : vector<8x128xf32>, i32 -> vector<8x128xf32>
    %1207 = arith.mulf %1206, %1193 : vector<8x128xf32>
    %1208 = arith.addf %1178, %1207 : vector<8x128xf32>
    %c0_742 = arith.constant 0 : index
    %c3_743 = arith.constant 3 : index
    %c4_744 = arith.constant 4 : index
    %c0_745 = arith.constant 0 : index
    %1209 = vector.load %arg1[%c0_742, %c3_743, %c4_744, %c0_745] : memref<1x4x14x128xf32, #tpu.memory_space<vmem>>, vector<1x1x8x128xf32>
    %1210 = vector.shape_cast %1209 : vector<1x1x8x128xf32> to vector<8x128xf32>
    %c1_i32_746 = arith.constant 1 : i32
    %1211 = tpu.dynamic_rotate %1210 by %c1_i32_746 dim 1 : vector<8x128xf32>, i32 -> vector<8x128xf32>
    %1212 = arith.mulf %1211, %1193 : vector<8x128xf32>
    %1213 = arith.addf %1183, %1212 : vector<8x128xf32>
    %1214 = arith.mulf %76, %986 : vector<10x128xf32>
    %1215 = vector.extract_strided_slice %1214 {offsets = [0, 0], sizes = [8, 128], strides = [1, 1]} : vector<10x128xf32> to vector<8x128xf32>
    %1216 = vector.extract_strided_slice %1214 {offsets = [1, 0], sizes = [8, 128], strides = [1, 1]} : vector<10x128xf32> to vector<8x128xf32>
    %1217 = arith.addf %1215, %1216 : vector<8x128xf32>
    %1218 = vector.extract_strided_slice %1214 {offsets = [2, 0], sizes = [8, 128], strides = [1, 1]} : vector<10x128xf32> to vector<8x128xf32>
    %1219 = arith.addf %1217, %1218 : vector<8x128xf32>
    %c1_i32_747 = arith.constant 1 : i32
    %1220 = tpu.dynamic_rotate %1219 by %c1_i32_747 dim 1 : vector<8x128xf32>, i32 -> vector<8x128xf32>
    %1221 = arith.addf %1220, %1219 : vector<8x128xf32>
    %c127_i32_748 = arith.constant 127 : i32
    %1222 = tpu.dynamic_rotate %1219 by %c127_i32_748 dim 1 : vector<8x128xf32>, i32 -> vector<8x128xf32>
    %1223 = arith.addf %1221, %1222 : vector<8x128xf32>
    %c0_749 = arith.constant 0 : index
    %c0_750 = arith.constant 0 : index
    %c4_751 = arith.constant 4 : index
    %c0_752 = arith.constant 0 : index
    %1224 = vector.load %arg1[%c0_749, %c0_750, %c4_751, %c0_752] : memref<1x4x14x128xf32, #tpu.memory_space<vmem>>, vector<1x1x8x128xf32>
    %1225 = vector.shape_cast %1224 : vector<1x1x8x128xf32> to vector<8x128xf32>
    %1226 = arith.mulf %1225, %1223 : vector<8x128xf32>
    %1227 = arith.addf %1198, %1226 : vector<8x128xf32>
    %c0_753 = arith.constant 0 : index
    %c1_754 = arith.constant 1 : index
    %c4_755 = arith.constant 4 : index
    %c0_756 = arith.constant 0 : index
    %1228 = vector.load %arg1[%c0_753, %c1_754, %c4_755, %c0_756] : memref<1x4x14x128xf32, #tpu.memory_space<vmem>>, vector<1x1x8x128xf32>
    %1229 = vector.shape_cast %1228 : vector<1x1x8x128xf32> to vector<8x128xf32>
    %1230 = arith.mulf %1229, %1223 : vector<8x128xf32>
    %1231 = arith.addf %1203, %1230 : vector<8x128xf32>
    %c0_757 = arith.constant 0 : index
    %c2_758 = arith.constant 2 : index
    %c4_759 = arith.constant 4 : index
    %c0_760 = arith.constant 0 : index
    %1232 = vector.load %arg1[%c0_757, %c2_758, %c4_759, %c0_760] : memref<1x4x14x128xf32, #tpu.memory_space<vmem>>, vector<1x1x8x128xf32>
    %1233 = vector.shape_cast %1232 : vector<1x1x8x128xf32> to vector<8x128xf32>
    %1234 = arith.mulf %1233, %1223 : vector<8x128xf32>
    %1235 = arith.addf %1208, %1234 : vector<8x128xf32>
    %c0_761 = arith.constant 0 : index
    %c3_762 = arith.constant 3 : index
    %c4_763 = arith.constant 4 : index
    %c0_764 = arith.constant 0 : index
    %1236 = vector.load %arg1[%c0_761, %c3_762, %c4_763, %c0_764] : memref<1x4x14x128xf32, #tpu.memory_space<vmem>>, vector<1x1x8x128xf32>
    %1237 = vector.shape_cast %1236 : vector<1x1x8x128xf32> to vector<8x128xf32>
    %1238 = arith.mulf %1237, %1223 : vector<8x128xf32>
    %1239 = arith.addf %1213, %1238 : vector<8x128xf32>
    %1240 = arith.mulf %76, %987 : vector<10x128xf32>
    %1241 = vector.extract_strided_slice %1240 {offsets = [0, 0], sizes = [8, 128], strides = [1, 1]} : vector<10x128xf32> to vector<8x128xf32>
    %1242 = vector.extract_strided_slice %1240 {offsets = [1, 0], sizes = [8, 128], strides = [1, 1]} : vector<10x128xf32> to vector<8x128xf32>
    %1243 = arith.addf %1241, %1242 : vector<8x128xf32>
    %1244 = vector.extract_strided_slice %1240 {offsets = [2, 0], sizes = [8, 128], strides = [1, 1]} : vector<10x128xf32> to vector<8x128xf32>
    %1245 = arith.addf %1243, %1244 : vector<8x128xf32>
    %c1_i32_765 = arith.constant 1 : i32
    %1246 = tpu.dynamic_rotate %1245 by %c1_i32_765 dim 1 : vector<8x128xf32>, i32 -> vector<8x128xf32>
    %1247 = arith.addf %1246, %1245 : vector<8x128xf32>
    %c127_i32_766 = arith.constant 127 : i32
    %1248 = tpu.dynamic_rotate %1245 by %c127_i32_766 dim 1 : vector<8x128xf32>, i32 -> vector<8x128xf32>
    %1249 = arith.addf %1247, %1248 : vector<8x128xf32>
    %c0_767 = arith.constant 0 : index
    %c0_768 = arith.constant 0 : index
    %c4_769 = arith.constant 4 : index
    %c0_770 = arith.constant 0 : index
    %1250 = vector.load %arg1[%c0_767, %c0_768, %c4_769, %c0_770] : memref<1x4x14x128xf32, #tpu.memory_space<vmem>>, vector<1x1x8x128xf32>
    %1251 = vector.shape_cast %1250 : vector<1x1x8x128xf32> to vector<8x128xf32>
    %c127_i32_771 = arith.constant 127 : i32
    %1252 = tpu.dynamic_rotate %1251 by %c127_i32_771 dim 1 : vector<8x128xf32>, i32 -> vector<8x128xf32>
    %1253 = arith.mulf %1252, %1249 : vector<8x128xf32>
    %1254 = arith.addf %1227, %1253 : vector<8x128xf32>
    %c0_772 = arith.constant 0 : index
    %c1_773 = arith.constant 1 : index
    %c4_774 = arith.constant 4 : index
    %c0_775 = arith.constant 0 : index
    %1255 = vector.load %arg1[%c0_772, %c1_773, %c4_774, %c0_775] : memref<1x4x14x128xf32, #tpu.memory_space<vmem>>, vector<1x1x8x128xf32>
    %1256 = vector.shape_cast %1255 : vector<1x1x8x128xf32> to vector<8x128xf32>
    %c127_i32_776 = arith.constant 127 : i32
    %1257 = tpu.dynamic_rotate %1256 by %c127_i32_776 dim 1 : vector<8x128xf32>, i32 -> vector<8x128xf32>
    %1258 = arith.mulf %1257, %1249 : vector<8x128xf32>
    %1259 = arith.addf %1231, %1258 : vector<8x128xf32>
    %c0_777 = arith.constant 0 : index
    %c2_778 = arith.constant 2 : index
    %c4_779 = arith.constant 4 : index
    %c0_780 = arith.constant 0 : index
    %1260 = vector.load %arg1[%c0_777, %c2_778, %c4_779, %c0_780] : memref<1x4x14x128xf32, #tpu.memory_space<vmem>>, vector<1x1x8x128xf32>
    %1261 = vector.shape_cast %1260 : vector<1x1x8x128xf32> to vector<8x128xf32>
    %c127_i32_781 = arith.constant 127 : i32
    %1262 = tpu.dynamic_rotate %1261 by %c127_i32_781 dim 1 : vector<8x128xf32>, i32 -> vector<8x128xf32>
    %1263 = arith.mulf %1262, %1249 : vector<8x128xf32>
    %1264 = arith.addf %1235, %1263 : vector<8x128xf32>
    %c0_782 = arith.constant 0 : index
    %c3_783 = arith.constant 3 : index
    %c4_784 = arith.constant 4 : index
    %c0_785 = arith.constant 0 : index
    %1265 = vector.load %arg1[%c0_782, %c3_783, %c4_784, %c0_785] : memref<1x4x14x128xf32, #tpu.memory_space<vmem>>, vector<1x1x8x128xf32>
    %1266 = vector.shape_cast %1265 : vector<1x1x8x128xf32> to vector<8x128xf32>
    %c127_i32_786 = arith.constant 127 : i32
    %1267 = tpu.dynamic_rotate %1266 by %c127_i32_786 dim 1 : vector<8x128xf32>, i32 -> vector<8x128xf32>
    %1268 = arith.mulf %1267, %1249 : vector<8x128xf32>
    %1269 = arith.addf %1239, %1268 : vector<8x128xf32>
    %1270 = arith.mulf %1254, %567 : vector<8x128xf32>
    %c0_787 = arith.constant 0 : index
    %c0_788 = arith.constant 0 : index
    %c3_789 = arith.constant 3 : index
    %c0_790 = arith.constant 0 : index
    %1271 = vector.load %arg5[%c0_787, %c0_788, %c3_789, %c0_790] : memref<1x4x14x128xf32, #tpu.memory_space<vmem>>, vector<1x1x8x128xf32>
    %1272 = vector.shape_cast %1271 : vector<1x1x8x128xf32> to vector<8x128xf32>
    %1273 = arith.subf %1270, %1272 : vector<8x128xf32>
    %c8 = arith.constant 8 : index
    %c0_791 = arith.constant 0 : index
    %c0_792 = arith.constant 0 : index
    %1274 = vector.load %arg6[%c8, %c0_791, %c0_792] : memref<16x8x128xf32, #tpu.memory_space<vmem>>, vector<1x8x128xf32>
    %1275 = vector.shape_cast %1274 : vector<1x8x128xf32> to vector<8x128xf32>
    %1276 = vector.shape_cast %1273 : vector<8x128xf32> to vector<1x8x128xf32>
    tpu.vector_store %arg6[%c8, %c0_791, %c0_792], %1276 {strides = array<i32>} : memref<16x8x128xf32, #tpu.memory_space<vmem>>, vector<1x8x128xf32>,
    %1277 = arith.mulf %1259, %567 : vector<8x128xf32>
    %c0_793 = arith.constant 0 : index
    %c1_794 = arith.constant 1 : index
    %c3_795 = arith.constant 3 : index
    %c0_796 = arith.constant 0 : index
    %1278 = vector.load %arg5[%c0_793, %c1_794, %c3_795, %c0_796] : memref<1x4x14x128xf32, #tpu.memory_space<vmem>>, vector<1x1x8x128xf32>
    %1279 = vector.shape_cast %1278 : vector<1x1x8x128xf32> to vector<8x128xf32>
    %1280 = arith.subf %1277, %1279 : vector<8x128xf32>
    %c9 = arith.constant 9 : index
    %c0_797 = arith.constant 0 : index
    %c0_798 = arith.constant 0 : index
    %1281 = vector.load %arg6[%c9, %c0_797, %c0_798] : memref<16x8x128xf32, #tpu.memory_space<vmem>>, vector<1x8x128xf32>
    %1282 = vector.shape_cast %1281 : vector<1x8x128xf32> to vector<8x128xf32>
    %1283 = vector.shape_cast %1280 : vector<8x128xf32> to vector<1x8x128xf32>
    tpu.vector_store %arg6[%c9, %c0_797, %c0_798], %1283 {strides = array<i32>} : memref<16x8x128xf32, #tpu.memory_space<vmem>>, vector<1x8x128xf32>,
    %1284 = arith.mulf %1264, %567 : vector<8x128xf32>
    %c0_799 = arith.constant 0 : index
    %c2_800 = arith.constant 2 : index
    %c3_801 = arith.constant 3 : index
    %c0_802 = arith.constant 0 : index
    %1285 = vector.load %arg5[%c0_799, %c2_800, %c3_801, %c0_802] : memref<1x4x14x128xf32, #tpu.memory_space<vmem>>, vector<1x1x8x128xf32>
    %1286 = vector.shape_cast %1285 : vector<1x1x8x128xf32> to vector<8x128xf32>
    %1287 = arith.subf %1284, %1286 : vector<8x128xf32>
    %c10 = arith.constant 10 : index
    %c0_803 = arith.constant 0 : index
    %c0_804 = arith.constant 0 : index
    %1288 = vector.load %arg6[%c10, %c0_803, %c0_804] : memref<16x8x128xf32, #tpu.memory_space<vmem>>, vector<1x8x128xf32>
    %1289 = vector.shape_cast %1288 : vector<1x8x128xf32> to vector<8x128xf32>
    %1290 = vector.shape_cast %1287 : vector<8x128xf32> to vector<1x8x128xf32>
    tpu.vector_store %arg6[%c10, %c0_803, %c0_804], %1290 {strides = array<i32>} : memref<16x8x128xf32, #tpu.memory_space<vmem>>, vector<1x8x128xf32>,
    %1291 = arith.mulf %1269, %567 : vector<8x128xf32>
    %c0_805 = arith.constant 0 : index
    %c3_806 = arith.constant 3 : index
    %c3_807 = arith.constant 3 : index
    %c0_808 = arith.constant 0 : index
    %1292 = vector.load %arg5[%c0_805, %c3_806, %c3_807, %c0_808] : memref<1x4x14x128xf32, #tpu.memory_space<vmem>>, vector<1x1x8x128xf32>
    %1293 = vector.shape_cast %1292 : vector<1x1x8x128xf32> to vector<8x128xf32>
    %1294 = arith.subf %1291, %1293 : vector<8x128xf32>
    %c11 = arith.constant 11 : index
    %c0_809 = arith.constant 0 : index
    %c0_810 = arith.constant 0 : index
    %1295 = vector.load %arg6[%c11, %c0_809, %c0_810] : memref<16x8x128xf32, #tpu.memory_space<vmem>>, vector<1x8x128xf32>
    %1296 = vector.shape_cast %1295 : vector<1x8x128xf32> to vector<8x128xf32>
    %1297 = vector.shape_cast %1294 : vector<8x128xf32> to vector<1x8x128xf32>
    tpu.vector_store %arg6[%c11, %c0_809, %c0_810], %1297 {strides = array<i32>} : memref<16x8x128xf32, #tpu.memory_space<vmem>>, vector<1x8x128xf32>,
    %1298 = arith.maximumf %993, %999 : vector<10x128xf32>
    %1299 = arith.maximumf %1005, %1011 : vector<10x128xf32>
    %1300 = arith.maximumf %1017, %1023 : vector<10x128xf32>
    %1301 = arith.maximumf %1029, %1035 : vector<10x128xf32>
    %1302 = arith.maximumf %1298, %1299 : vector<10x128xf32>
    %1303 = arith.maximumf %1300, %1301 : vector<10x128xf32>
    %1304 = arith.maximumf %1302, %1303 : vector<10x128xf32>
    %1305 = arith.maximumf %1304, %1041 : vector<10x128xf32>
    %1306 = arith.subf %993, %1305 : vector<10x128xf32>
    %1307 = math.exp %1306 : vector<10x128xf32>
    %1308 = arith.subf %999, %1305 : vector<10x128xf32>
    %1309 = math.exp %1308 : vector<10x128xf32>
    %1310 = arith.subf %1005, %1305 : vector<10x128xf32>
    %1311 = math.exp %1310 : vector<10x128xf32>
    %1312 = arith.subf %1011, %1305 : vector<10x128xf32>
    %1313 = math.exp %1312 : vector<10x128xf32>
    %1314 = arith.subf %1017, %1305 : vector<10x128xf32>
    %1315 = math.exp %1314 : vector<10x128xf32>
    %1316 = arith.subf %1023, %1305 : vector<10x128xf32>
    %1317 = math.exp %1316 : vector<10x128xf32>
    %1318 = arith.subf %1029, %1305 : vector<10x128xf32>
    %1319 = math.exp %1318 : vector<10x128xf32>
    %1320 = arith.subf %1035, %1305 : vector<10x128xf32>
    %1321 = math.exp %1320 : vector<10x128xf32>
    %1322 = arith.subf %1041, %1305 : vector<10x128xf32>
    %1323 = math.exp %1322 : vector<10x128xf32>
    %1324 = arith.addf %1307, %1309 : vector<10x128xf32>
    %1325 = arith.addf %1311, %1313 : vector<10x128xf32>
    %1326 = arith.addf %1315, %1317 : vector<10x128xf32>
    %1327 = arith.addf %1319, %1321 : vector<10x128xf32>
    %1328 = arith.addf %1324, %1325 : vector<10x128xf32>
    %1329 = arith.addf %1326, %1327 : vector<10x128xf32>
    %1330 = arith.addf %1328, %1329 : vector<10x128xf32>
    %1331 = arith.addf %1330, %1323 : vector<10x128xf32>
    %cst_811 = arith.constant 1.000000e+00 : f32
    %1332 = vector.broadcast %cst_811 : f32 to vector<10x128xf32>
    %1333 = arith.divf %1332, %1331 : vector<10x128xf32>
    %1334 = arith.mulf %1307, %1333 : vector<10x128xf32>
    %1335 = arith.mulf %1309, %1333 : vector<10x128xf32>
    %1336 = arith.mulf %1311, %1333 : vector<10x128xf32>
    %1337 = arith.mulf %1313, %1333 : vector<10x128xf32>
    %1338 = arith.mulf %1317, %1333 : vector<10x128xf32>
    %1339 = arith.mulf %1319, %1333 : vector<10x128xf32>
    %1340 = arith.mulf %1321, %1333 : vector<10x128xf32>
    %1341 = arith.mulf %1323, %1333 : vector<10x128xf32>
    %1342 = arith.mulf %76, %1334 : vector<10x128xf32>
    %1343 = vector.extract_strided_slice %1342 {offsets = [0, 0], sizes = [8, 128], strides = [1, 1]} : vector<10x128xf32> to vector<8x128xf32>
    %1344 = vector.extract_strided_slice %1342 {offsets = [1, 0], sizes = [8, 128], strides = [1, 1]} : vector<10x128xf32> to vector<8x128xf32>
    %1345 = arith.addf %1343, %1344 : vector<8x128xf32>
    %1346 = vector.extract_strided_slice %1342 {offsets = [2, 0], sizes = [8, 128], strides = [1, 1]} : vector<10x128xf32> to vector<8x128xf32>
    %1347 = arith.addf %1345, %1346 : vector<8x128xf32>
    %c1_i32_812 = arith.constant 1 : i32
    %1348 = tpu.dynamic_rotate %1347 by %c1_i32_812 dim 1 : vector<8x128xf32>, i32 -> vector<8x128xf32>
    %1349 = arith.addf %1348, %1347 : vector<8x128xf32>
    %c127_i32_813 = arith.constant 127 : i32
    %1350 = tpu.dynamic_rotate %1347 by %c127_i32_813 dim 1 : vector<8x128xf32>, i32 -> vector<8x128xf32>
    %1351 = arith.addf %1349, %1350 : vector<8x128xf32>
    %c0_814 = arith.constant 0 : index
    %c0_815 = arith.constant 0 : index
    %c2_816 = arith.constant 2 : index
    %c0_817 = arith.constant 0 : index
    %1352 = vector.load %arg1[%c0_814, %c0_815, %c2_816, %c0_817] : memref<1x4x14x128xf32, #tpu.memory_space<vmem>>, vector<1x1x8x128xf32>
    %1353 = vector.shape_cast %1352 : vector<1x1x8x128xf32> to vector<8x128xf32>
    %c1_i32_818 = arith.constant 1 : i32
    %1354 = tpu.dynamic_rotate %1353 by %c1_i32_818 dim 1 : vector<8x128xf32>, i32 -> vector<8x128xf32>
    %1355 = arith.mulf %1354, %1351 : vector<8x128xf32>
    %c0_819 = arith.constant 0 : index
    %c1_820 = arith.constant 1 : index
    %c2_821 = arith.constant 2 : index
    %c0_822 = arith.constant 0 : index
    %1356 = vector.load %arg1[%c0_819, %c1_820, %c2_821, %c0_822] : memref<1x4x14x128xf32, #tpu.memory_space<vmem>>, vector<1x1x8x128xf32>
    %1357 = vector.shape_cast %1356 : vector<1x1x8x128xf32> to vector<8x128xf32>
    %c1_i32_823 = arith.constant 1 : i32
    %1358 = tpu.dynamic_rotate %1357 by %c1_i32_823 dim 1 : vector<8x128xf32>, i32 -> vector<8x128xf32>
    %1359 = arith.mulf %1358, %1351 : vector<8x128xf32>
    %c0_824 = arith.constant 0 : index
    %c2_825 = arith.constant 2 : index
    %c2_826 = arith.constant 2 : index
    %c0_827 = arith.constant 0 : index
    %1360 = vector.load %arg1[%c0_824, %c2_825, %c2_826, %c0_827] : memref<1x4x14x128xf32, #tpu.memory_space<vmem>>, vector<1x1x8x128xf32>
    %1361 = vector.shape_cast %1360 : vector<1x1x8x128xf32> to vector<8x128xf32>
    %c1_i32_828 = arith.constant 1 : i32
    %1362 = tpu.dynamic_rotate %1361 by %c1_i32_828 dim 1 : vector<8x128xf32>, i32 -> vector<8x128xf32>
    %1363 = arith.mulf %1362, %1351 : vector<8x128xf32>
    %c0_829 = arith.constant 0 : index
    %c3_830 = arith.constant 3 : index
    %c2_831 = arith.constant 2 : index
    %c0_832 = arith.constant 0 : index
    %1364 = vector.load %arg1[%c0_829, %c3_830, %c2_831, %c0_832] : memref<1x4x14x128xf32, #tpu.memory_space<vmem>>, vector<1x1x8x128xf32>
    %1365 = vector.shape_cast %1364 : vector<1x1x8x128xf32> to vector<8x128xf32>
    %c1_i32_833 = arith.constant 1 : i32
    %1366 = tpu.dynamic_rotate %1365 by %c1_i32_833 dim 1 : vector<8x128xf32>, i32 -> vector<8x128xf32>
    %1367 = arith.mulf %1366, %1351 : vector<8x128xf32>
    %1368 = arith.mulf %76, %1335 : vector<10x128xf32>
    %1369 = vector.extract_strided_slice %1368 {offsets = [0, 0], sizes = [8, 128], strides = [1, 1]} : vector<10x128xf32> to vector<8x128xf32>
    %1370 = vector.extract_strided_slice %1368 {offsets = [1, 0], sizes = [8, 128], strides = [1, 1]} : vector<10x128xf32> to vector<8x128xf32>
    %1371 = arith.addf %1369, %1370 : vector<8x128xf32>
    %1372 = vector.extract_strided_slice %1368 {offsets = [2, 0], sizes = [8, 128], strides = [1, 1]} : vector<10x128xf32> to vector<8x128xf32>
    %1373 = arith.addf %1371, %1372 : vector<8x128xf32>
    %c1_i32_834 = arith.constant 1 : i32
    %1374 = tpu.dynamic_rotate %1373 by %c1_i32_834 dim 1 : vector<8x128xf32>, i32 -> vector<8x128xf32>
    %1375 = arith.addf %1374, %1373 : vector<8x128xf32>
    %c127_i32_835 = arith.constant 127 : i32
    %1376 = tpu.dynamic_rotate %1373 by %c127_i32_835 dim 1 : vector<8x128xf32>, i32 -> vector<8x128xf32>
    %1377 = arith.addf %1375, %1376 : vector<8x128xf32>
    %c0_836 = arith.constant 0 : index
    %c0_837 = arith.constant 0 : index
    %c2_838 = arith.constant 2 : index
    %c0_839 = arith.constant 0 : index
    %1378 = vector.load %arg1[%c0_836, %c0_837, %c2_838, %c0_839] : memref<1x4x14x128xf32, #tpu.memory_space<vmem>>, vector<1x1x8x128xf32>
    %1379 = vector.shape_cast %1378 : vector<1x1x8x128xf32> to vector<8x128xf32>
    %1380 = arith.mulf %1379, %1377 : vector<8x128xf32>
    %1381 = arith.addf %1355, %1380 : vector<8x128xf32>
    %c0_840 = arith.constant 0 : index
    %c1_841 = arith.constant 1 : index
    %c2_842 = arith.constant 2 : index
    %c0_843 = arith.constant 0 : index
    %1382 = vector.load %arg1[%c0_840, %c1_841, %c2_842, %c0_843] : memref<1x4x14x128xf32, #tpu.memory_space<vmem>>, vector<1x1x8x128xf32>
    %1383 = vector.shape_cast %1382 : vector<1x1x8x128xf32> to vector<8x128xf32>
    %1384 = arith.mulf %1383, %1377 : vector<8x128xf32>
    %1385 = arith.addf %1359, %1384 : vector<8x128xf32>
    %c0_844 = arith.constant 0 : index
    %c2_845 = arith.constant 2 : index
    %c2_846 = arith.constant 2 : index
    %c0_847 = arith.constant 0 : index
    %1386 = vector.load %arg1[%c0_844, %c2_845, %c2_846, %c0_847] : memref<1x4x14x128xf32, #tpu.memory_space<vmem>>, vector<1x1x8x128xf32>
    %1387 = vector.shape_cast %1386 : vector<1x1x8x128xf32> to vector<8x128xf32>
    %1388 = arith.mulf %1387, %1377 : vector<8x128xf32>
    %1389 = arith.addf %1363, %1388 : vector<8x128xf32>
    %c0_848 = arith.constant 0 : index
    %c3_849 = arith.constant 3 : index
    %c2_850 = arith.constant 2 : index
    %c0_851 = arith.constant 0 : index
    %1390 = vector.load %arg1[%c0_848, %c3_849, %c2_850, %c0_851] : memref<1x4x14x128xf32, #tpu.memory_space<vmem>>, vector<1x1x8x128xf32>
    %1391 = vector.shape_cast %1390 : vector<1x1x8x128xf32> to vector<8x128xf32>
    %1392 = arith.mulf %1391, %1377 : vector<8x128xf32>
    %1393 = arith.addf %1367, %1392 : vector<8x128xf32>
    %1394 = arith.mulf %76, %1336 : vector<10x128xf32>
    %1395 = vector.extract_strided_slice %1394 {offsets = [0, 0], sizes = [8, 128], strides = [1, 1]} : vector<10x128xf32> to vector<8x128xf32>
    %1396 = vector.extract_strided_slice %1394 {offsets = [1, 0], sizes = [8, 128], strides = [1, 1]} : vector<10x128xf32> to vector<8x128xf32>
    %1397 = arith.addf %1395, %1396 : vector<8x128xf32>
    %1398 = vector.extract_strided_slice %1394 {offsets = [2, 0], sizes = [8, 128], strides = [1, 1]} : vector<10x128xf32> to vector<8x128xf32>
    %1399 = arith.addf %1397, %1398 : vector<8x128xf32>
    %c1_i32_852 = arith.constant 1 : i32
    %1400 = tpu.dynamic_rotate %1399 by %c1_i32_852 dim 1 : vector<8x128xf32>, i32 -> vector<8x128xf32>
    %1401 = arith.addf %1400, %1399 : vector<8x128xf32>
    %c127_i32_853 = arith.constant 127 : i32
    %1402 = tpu.dynamic_rotate %1399 by %c127_i32_853 dim 1 : vector<8x128xf32>, i32 -> vector<8x128xf32>
    %1403 = arith.addf %1401, %1402 : vector<8x128xf32>
    %c0_854 = arith.constant 0 : index
    %c0_855 = arith.constant 0 : index
    %c2_856 = arith.constant 2 : index
    %c0_857 = arith.constant 0 : index
    %1404 = vector.load %arg1[%c0_854, %c0_855, %c2_856, %c0_857] : memref<1x4x14x128xf32, #tpu.memory_space<vmem>>, vector<1x1x8x128xf32>
    %1405 = vector.shape_cast %1404 : vector<1x1x8x128xf32> to vector<8x128xf32>
    %c127_i32_858 = arith.constant 127 : i32
    %1406 = tpu.dynamic_rotate %1405 by %c127_i32_858 dim 1 : vector<8x128xf32>, i32 -> vector<8x128xf32>
    %1407 = arith.mulf %1406, %1403 : vector<8x128xf32>
    %1408 = arith.addf %1381, %1407 : vector<8x128xf32>
    %c0_859 = arith.constant 0 : index
    %c1_860 = arith.constant 1 : index
    %c2_861 = arith.constant 2 : index
    %c0_862 = arith.constant 0 : index
    %1409 = vector.load %arg1[%c0_859, %c1_860, %c2_861, %c0_862] : memref<1x4x14x128xf32, #tpu.memory_space<vmem>>, vector<1x1x8x128xf32>
    %1410 = vector.shape_cast %1409 : vector<1x1x8x128xf32> to vector<8x128xf32>
    %c127_i32_863 = arith.constant 127 : i32
    %1411 = tpu.dynamic_rotate %1410 by %c127_i32_863 dim 1 : vector<8x128xf32>, i32 -> vector<8x128xf32>
    %1412 = arith.mulf %1411, %1403 : vector<8x128xf32>
    %1413 = arith.addf %1385, %1412 : vector<8x128xf32>
    %c0_864 = arith.constant 0 : index
    %c2_865 = arith.constant 2 : index
    %c2_866 = arith.constant 2 : index
    %c0_867 = arith.constant 0 : index
    %1414 = vector.load %arg1[%c0_864, %c2_865, %c2_866, %c0_867] : memref<1x4x14x128xf32, #tpu.memory_space<vmem>>, vector<1x1x8x128xf32>
    %1415 = vector.shape_cast %1414 : vector<1x1x8x128xf32> to vector<8x128xf32>
    %c127_i32_868 = arith.constant 127 : i32
    %1416 = tpu.dynamic_rotate %1415 by %c127_i32_868 dim 1 : vector<8x128xf32>, i32 -> vector<8x128xf32>
    %1417 = arith.mulf %1416, %1403 : vector<8x128xf32>
    %1418 = arith.addf %1389, %1417 : vector<8x128xf32>
    %c0_869 = arith.constant 0 : index
    %c3_870 = arith.constant 3 : index
    %c2_871 = arith.constant 2 : index
    %c0_872 = arith.constant 0 : index
    %1419 = vector.load %arg1[%c0_869, %c3_870, %c2_871, %c0_872] : memref<1x4x14x128xf32, #tpu.memory_space<vmem>>, vector<1x1x8x128xf32>
    %1420 = vector.shape_cast %1419 : vector<1x1x8x128xf32> to vector<8x128xf32>
    %c127_i32_873 = arith.constant 127 : i32
    %1421 = tpu.dynamic_rotate %1420 by %c127_i32_873 dim 1 : vector<8x128xf32>, i32 -> vector<8x128xf32>
    %1422 = arith.mulf %1421, %1403 : vector<8x128xf32>
    %1423 = arith.addf %1393, %1422 : vector<8x128xf32>
    %1424 = arith.mulf %76, %1337 : vector<10x128xf32>
    %1425 = vector.extract_strided_slice %1424 {offsets = [0, 0], sizes = [8, 128], strides = [1, 1]} : vector<10x128xf32> to vector<8x128xf32>
    %1426 = vector.extract_strided_slice %1424 {offsets = [1, 0], sizes = [8, 128], strides = [1, 1]} : vector<10x128xf32> to vector<8x128xf32>
    %1427 = arith.addf %1425, %1426 : vector<8x128xf32>
    %1428 = vector.extract_strided_slice %1424 {offsets = [2, 0], sizes = [8, 128], strides = [1, 1]} : vector<10x128xf32> to vector<8x128xf32>
    %1429 = arith.addf %1427, %1428 : vector<8x128xf32>
    %c1_i32_874 = arith.constant 1 : i32
    %1430 = tpu.dynamic_rotate %1429 by %c1_i32_874 dim 1 : vector<8x128xf32>, i32 -> vector<8x128xf32>
    %1431 = arith.addf %1430, %1429 : vector<8x128xf32>
    %c127_i32_875 = arith.constant 127 : i32
    %1432 = tpu.dynamic_rotate %1429 by %c127_i32_875 dim 1 : vector<8x128xf32>, i32 -> vector<8x128xf32>
    %1433 = arith.addf %1431, %1432 : vector<8x128xf32>
    %c0_876 = arith.constant 0 : index
    %c0_877 = arith.constant 0 : index
    %c3_878 = arith.constant 3 : index
    %c0_879 = arith.constant 0 : index
    %1434 = vector.load %arg1[%c0_876, %c0_877, %c3_878, %c0_879] : memref<1x4x14x128xf32, #tpu.memory_space<vmem>>, vector<1x1x8x128xf32>
    %1435 = vector.shape_cast %1434 : vector<1x1x8x128xf32> to vector<8x128xf32>
    %c1_i32_880 = arith.constant 1 : i32
    %1436 = tpu.dynamic_rotate %1435 by %c1_i32_880 dim 1 : vector<8x128xf32>, i32 -> vector<8x128xf32>
    %1437 = arith.mulf %1436, %1433 : vector<8x128xf32>
    %1438 = arith.addf %1408, %1437 : vector<8x128xf32>
    %c0_881 = arith.constant 0 : index
    %c1_882 = arith.constant 1 : index
    %c3_883 = arith.constant 3 : index
    %c0_884 = arith.constant 0 : index
    %1439 = vector.load %arg1[%c0_881, %c1_882, %c3_883, %c0_884] : memref<1x4x14x128xf32, #tpu.memory_space<vmem>>, vector<1x1x8x128xf32>
    %1440 = vector.shape_cast %1439 : vector<1x1x8x128xf32> to vector<8x128xf32>
    %c1_i32_885 = arith.constant 1 : i32
    %1441 = tpu.dynamic_rotate %1440 by %c1_i32_885 dim 1 : vector<8x128xf32>, i32 -> vector<8x128xf32>
    %1442 = arith.mulf %1441, %1433 : vector<8x128xf32>
    %1443 = arith.addf %1413, %1442 : vector<8x128xf32>
    %c0_886 = arith.constant 0 : index
    %c2_887 = arith.constant 2 : index
    %c3_888 = arith.constant 3 : index
    %c0_889 = arith.constant 0 : index
    %1444 = vector.load %arg1[%c0_886, %c2_887, %c3_888, %c0_889] : memref<1x4x14x128xf32, #tpu.memory_space<vmem>>, vector<1x1x8x128xf32>
    %1445 = vector.shape_cast %1444 : vector<1x1x8x128xf32> to vector<8x128xf32>
    %c1_i32_890 = arith.constant 1 : i32
    %1446 = tpu.dynamic_rotate %1445 by %c1_i32_890 dim 1 : vector<8x128xf32>, i32 -> vector<8x128xf32>
    %1447 = arith.mulf %1446, %1433 : vector<8x128xf32>
    %1448 = arith.addf %1418, %1447 : vector<8x128xf32>
    %c0_891 = arith.constant 0 : index
    %c3_892 = arith.constant 3 : index
    %c3_893 = arith.constant 3 : index
    %c0_894 = arith.constant 0 : index
    %1449 = vector.load %arg1[%c0_891, %c3_892, %c3_893, %c0_894] : memref<1x4x14x128xf32, #tpu.memory_space<vmem>>, vector<1x1x8x128xf32>
    %1450 = vector.shape_cast %1449 : vector<1x1x8x128xf32> to vector<8x128xf32>
    %c1_i32_895 = arith.constant 1 : i32
    %1451 = tpu.dynamic_rotate %1450 by %c1_i32_895 dim 1 : vector<8x128xf32>, i32 -> vector<8x128xf32>
    %1452 = arith.mulf %1451, %1433 : vector<8x128xf32>
    %1453 = arith.addf %1423, %1452 : vector<8x128xf32>
    %1454 = arith.mulf %76, %1338 : vector<10x128xf32>
    %1455 = vector.extract_strided_slice %1454 {offsets = [0, 0], sizes = [8, 128], strides = [1, 1]} : vector<10x128xf32> to vector<8x128xf32>
    %1456 = vector.extract_strided_slice %1454 {offsets = [1, 0], sizes = [8, 128], strides = [1, 1]} : vector<10x128xf32> to vector<8x128xf32>
    %1457 = arith.addf %1455, %1456 : vector<8x128xf32>
    %1458 = vector.extract_strided_slice %1454 {offsets = [2, 0], sizes = [8, 128], strides = [1, 1]} : vector<10x128xf32> to vector<8x128xf32>
    %1459 = arith.addf %1457, %1458 : vector<8x128xf32>
    %c1_i32_896 = arith.constant 1 : i32
    %1460 = tpu.dynamic_rotate %1459 by %c1_i32_896 dim 1 : vector<8x128xf32>, i32 -> vector<8x128xf32>
    %1461 = arith.addf %1460, %1459 : vector<8x128xf32>
    %c127_i32_897 = arith.constant 127 : i32
    %1462 = tpu.dynamic_rotate %1459 by %c127_i32_897 dim 1 : vector<8x128xf32>, i32 -> vector<8x128xf32>
    %1463 = arith.addf %1461, %1462 : vector<8x128xf32>
    %c0_898 = arith.constant 0 : index
    %c0_899 = arith.constant 0 : index
    %c3_900 = arith.constant 3 : index
    %c0_901 = arith.constant 0 : index
    %1464 = vector.load %arg1[%c0_898, %c0_899, %c3_900, %c0_901] : memref<1x4x14x128xf32, #tpu.memory_space<vmem>>, vector<1x1x8x128xf32>
    %1465 = vector.shape_cast %1464 : vector<1x1x8x128xf32> to vector<8x128xf32>
    %c127_i32_902 = arith.constant 127 : i32
    %1466 = tpu.dynamic_rotate %1465 by %c127_i32_902 dim 1 : vector<8x128xf32>, i32 -> vector<8x128xf32>
    %1467 = arith.mulf %1466, %1463 : vector<8x128xf32>
    %1468 = arith.addf %1438, %1467 : vector<8x128xf32>
    %c0_903 = arith.constant 0 : index
    %c1_904 = arith.constant 1 : index
    %c3_905 = arith.constant 3 : index
    %c0_906 = arith.constant 0 : index
    %1469 = vector.load %arg1[%c0_903, %c1_904, %c3_905, %c0_906] : memref<1x4x14x128xf32, #tpu.memory_space<vmem>>, vector<1x1x8x128xf32>
    %1470 = vector.shape_cast %1469 : vector<1x1x8x128xf32> to vector<8x128xf32>
    %c127_i32_907 = arith.constant 127 : i32
    %1471 = tpu.dynamic_rotate %1470 by %c127_i32_907 dim 1 : vector<8x128xf32>, i32 -> vector<8x128xf32>
    %1472 = arith.mulf %1471, %1463 : vector<8x128xf32>
    %1473 = arith.addf %1443, %1472 : vector<8x128xf32>
    %c0_908 = arith.constant 0 : index
    %c2_909 = arith.constant 2 : index
    %c3_910 = arith.constant 3 : index
    %c0_911 = arith.constant 0 : index
    %1474 = vector.load %arg1[%c0_908, %c2_909, %c3_910, %c0_911] : memref<1x4x14x128xf32, #tpu.memory_space<vmem>>, vector<1x1x8x128xf32>
    %1475 = vector.shape_cast %1474 : vector<1x1x8x128xf32> to vector<8x128xf32>
    %c127_i32_912 = arith.constant 127 : i32
    %1476 = tpu.dynamic_rotate %1475 by %c127_i32_912 dim 1 : vector<8x128xf32>, i32 -> vector<8x128xf32>
    %1477 = arith.mulf %1476, %1463 : vector<8x128xf32>
    %1478 = arith.addf %1448, %1477 : vector<8x128xf32>
    %c0_913 = arith.constant 0 : index
    %c3_914 = arith.constant 3 : index
    %c3_915 = arith.constant 3 : index
    %c0_916 = arith.constant 0 : index
    %1479 = vector.load %arg1[%c0_913, %c3_914, %c3_915, %c0_916] : memref<1x4x14x128xf32, #tpu.memory_space<vmem>>, vector<1x1x8x128xf32>
    %1480 = vector.shape_cast %1479 : vector<1x1x8x128xf32> to vector<8x128xf32>
    %c127_i32_917 = arith.constant 127 : i32
    %1481 = tpu.dynamic_rotate %1480 by %c127_i32_917 dim 1 : vector<8x128xf32>, i32 -> vector<8x128xf32>
    %1482 = arith.mulf %1481, %1463 : vector<8x128xf32>
    %1483 = arith.addf %1453, %1482 : vector<8x128xf32>
    %1484 = arith.mulf %76, %1339 : vector<10x128xf32>
    %1485 = vector.extract_strided_slice %1484 {offsets = [0, 0], sizes = [8, 128], strides = [1, 1]} : vector<10x128xf32> to vector<8x128xf32>
    %1486 = vector.extract_strided_slice %1484 {offsets = [1, 0], sizes = [8, 128], strides = [1, 1]} : vector<10x128xf32> to vector<8x128xf32>
    %1487 = arith.addf %1485, %1486 : vector<8x128xf32>
    %1488 = vector.extract_strided_slice %1484 {offsets = [2, 0], sizes = [8, 128], strides = [1, 1]} : vector<10x128xf32> to vector<8x128xf32>
    %1489 = arith.addf %1487, %1488 : vector<8x128xf32>
    %c1_i32_918 = arith.constant 1 : i32
    %1490 = tpu.dynamic_rotate %1489 by %c1_i32_918 dim 1 : vector<8x128xf32>, i32 -> vector<8x128xf32>
    %1491 = arith.addf %1490, %1489 : vector<8x128xf32>
    %c127_i32_919 = arith.constant 127 : i32
    %1492 = tpu.dynamic_rotate %1489 by %c127_i32_919 dim 1 : vector<8x128xf32>, i32 -> vector<8x128xf32>
    %1493 = arith.addf %1491, %1492 : vector<8x128xf32>
    %c0_920 = arith.constant 0 : index
    %c0_921 = arith.constant 0 : index
    %c4_922 = arith.constant 4 : index
    %c0_923 = arith.constant 0 : index
    %1494 = vector.load %arg1[%c0_920, %c0_921, %c4_922, %c0_923] : memref<1x4x14x128xf32, #tpu.memory_space<vmem>>, vector<1x1x8x128xf32>
    %1495 = vector.shape_cast %1494 : vector<1x1x8x128xf32> to vector<8x128xf32>
    %c1_i32_924 = arith.constant 1 : i32
    %1496 = tpu.dynamic_rotate %1495 by %c1_i32_924 dim 1 : vector<8x128xf32>, i32 -> vector<8x128xf32>
    %1497 = arith.mulf %1496, %1493 : vector<8x128xf32>
    %1498 = arith.addf %1468, %1497 : vector<8x128xf32>
    %c0_925 = arith.constant 0 : index
    %c1_926 = arith.constant 1 : index
    %c4_927 = arith.constant 4 : index
    %c0_928 = arith.constant 0 : index
    %1499 = vector.load %arg1[%c0_925, %c1_926, %c4_927, %c0_928] : memref<1x4x14x128xf32, #tpu.memory_space<vmem>>, vector<1x1x8x128xf32>
    %1500 = vector.shape_cast %1499 : vector<1x1x8x128xf32> to vector<8x128xf32>
    %c1_i32_929 = arith.constant 1 : i32
    %1501 = tpu.dynamic_rotate %1500 by %c1_i32_929 dim 1 : vector<8x128xf32>, i32 -> vector<8x128xf32>
    %1502 = arith.mulf %1501, %1493 : vector<8x128xf32>
    %1503 = arith.addf %1473, %1502 : vector<8x128xf32>
    %c0_930 = arith.constant 0 : index
    %c2_931 = arith.constant 2 : index
    %c4_932 = arith.constant 4 : index
    %c0_933 = arith.constant 0 : index
    %1504 = vector.load %arg1[%c0_930, %c2_931, %c4_932, %c0_933] : memref<1x4x14x128xf32, #tpu.memory_space<vmem>>, vector<1x1x8x128xf32>
    %1505 = vector.shape_cast %1504 : vector<1x1x8x128xf32> to vector<8x128xf32>
    %c1_i32_934 = arith.constant 1 : i32
    %1506 = tpu.dynamic_rotate %1505 by %c1_i32_934 dim 1 : vector<8x128xf32>, i32 -> vector<8x128xf32>
    %1507 = arith.mulf %1506, %1493 : vector<8x128xf32>
    %1508 = arith.addf %1478, %1507 : vector<8x128xf32>
    %c0_935 = arith.constant 0 : index
    %c3_936 = arith.constant 3 : index
    %c4_937 = arith.constant 4 : index
    %c0_938 = arith.constant 0 : index
    %1509 = vector.load %arg1[%c0_935, %c3_936, %c4_937, %c0_938] : memref<1x4x14x128xf32, #tpu.memory_space<vmem>>, vector<1x1x8x128xf32>
    %1510 = vector.shape_cast %1509 : vector<1x1x8x128xf32> to vector<8x128xf32>
    %c1_i32_939 = arith.constant 1 : i32
    %1511 = tpu.dynamic_rotate %1510 by %c1_i32_939 dim 1 : vector<8x128xf32>, i32 -> vector<8x128xf32>
    %1512 = arith.mulf %1511, %1493 : vector<8x128xf32>
    %1513 = arith.addf %1483, %1512 : vector<8x128xf32>
    %1514 = arith.mulf %76, %1340 : vector<10x128xf32>
    %1515 = vector.extract_strided_slice %1514 {offsets = [0, 0], sizes = [8, 128], strides = [1, 1]} : vector<10x128xf32> to vector<8x128xf32>
    %1516 = vector.extract_strided_slice %1514 {offsets = [1, 0], sizes = [8, 128], strides = [1, 1]} : vector<10x128xf32> to vector<8x128xf32>
    %1517 = arith.addf %1515, %1516 : vector<8x128xf32>
    %1518 = vector.extract_strided_slice %1514 {offsets = [2, 0], sizes = [8, 128], strides = [1, 1]} : vector<10x128xf32> to vector<8x128xf32>
    %1519 = arith.addf %1517, %1518 : vector<8x128xf32>
    %c1_i32_940 = arith.constant 1 : i32
    %1520 = tpu.dynamic_rotate %1519 by %c1_i32_940 dim 1 : vector<8x128xf32>, i32 -> vector<8x128xf32>
    %1521 = arith.addf %1520, %1519 : vector<8x128xf32>
    %c127_i32_941 = arith.constant 127 : i32
    %1522 = tpu.dynamic_rotate %1519 by %c127_i32_941 dim 1 : vector<8x128xf32>, i32 -> vector<8x128xf32>
    %1523 = arith.addf %1521, %1522 : vector<8x128xf32>
    %c0_942 = arith.constant 0 : index
    %c0_943 = arith.constant 0 : index
    %c4_944 = arith.constant 4 : index
    %c0_945 = arith.constant 0 : index
    %1524 = vector.load %arg1[%c0_942, %c0_943, %c4_944, %c0_945] : memref<1x4x14x128xf32, #tpu.memory_space<vmem>>, vector<1x1x8x128xf32>
    %1525 = vector.shape_cast %1524 : vector<1x1x8x128xf32> to vector<8x128xf32>
    %1526 = arith.mulf %1525, %1523 : vector<8x128xf32>
    %1527 = arith.addf %1498, %1526 : vector<8x128xf32>
    %c0_946 = arith.constant 0 : index
    %c1_947 = arith.constant 1 : index
    %c4_948 = arith.constant 4 : index
    %c0_949 = arith.constant 0 : index
    %1528 = vector.load %arg1[%c0_946, %c1_947, %c4_948, %c0_949] : memref<1x4x14x128xf32, #tpu.memory_space<vmem>>, vector<1x1x8x128xf32>
    %1529 = vector.shape_cast %1528 : vector<1x1x8x128xf32> to vector<8x128xf32>
    %1530 = arith.mulf %1529, %1523 : vector<8x128xf32>
    %1531 = arith.addf %1503, %1530 : vector<8x128xf32>
    %c0_950 = arith.constant 0 : index
    %c2_951 = arith.constant 2 : index
    %c4_952 = arith.constant 4 : index
    %c0_953 = arith.constant 0 : index
    %1532 = vector.load %arg1[%c0_950, %c2_951, %c4_952, %c0_953] : memref<1x4x14x128xf32, #tpu.memory_space<vmem>>, vector<1x1x8x128xf32>
    %1533 = vector.shape_cast %1532 : vector<1x1x8x128xf32> to vector<8x128xf32>
    %1534 = arith.mulf %1533, %1523 : vector<8x128xf32>
    %1535 = arith.addf %1508, %1534 : vector<8x128xf32>
    %c0_954 = arith.constant 0 : index
    %c3_955 = arith.constant 3 : index
    %c4_956 = arith.constant 4 : index
    %c0_957 = arith.constant 0 : index
    %1536 = vector.load %arg1[%c0_954, %c3_955, %c4_956, %c0_957] : memref<1x4x14x128xf32, #tpu.memory_space<vmem>>, vector<1x1x8x128xf32>
    %1537 = vector.shape_cast %1536 : vector<1x1x8x128xf32> to vector<8x128xf32>
    %1538 = arith.mulf %1537, %1523 : vector<8x128xf32>
    %1539 = arith.addf %1513, %1538 : vector<8x128xf32>
    %1540 = arith.mulf %76, %1341 : vector<10x128xf32>
    %1541 = vector.extract_strided_slice %1540 {offsets = [0, 0], sizes = [8, 128], strides = [1, 1]} : vector<10x128xf32> to vector<8x128xf32>
    %1542 = vector.extract_strided_slice %1540 {offsets = [1, 0], sizes = [8, 128], strides = [1, 1]} : vector<10x128xf32> to vector<8x128xf32>
    %1543 = arith.addf %1541, %1542 : vector<8x128xf32>
    %1544 = vector.extract_strided_slice %1540 {offsets = [2, 0], sizes = [8, 128], strides = [1, 1]} : vector<10x128xf32> to vector<8x128xf32>
    %1545 = arith.addf %1543, %1544 : vector<8x128xf32>
    %c1_i32_958 = arith.constant 1 : i32
    %1546 = tpu.dynamic_rotate %1545 by %c1_i32_958 dim 1 : vector<8x128xf32>, i32 -> vector<8x128xf32>
    %1547 = arith.addf %1546, %1545 : vector<8x128xf32>
    %c127_i32_959 = arith.constant 127 : i32
    %1548 = tpu.dynamic_rotate %1545 by %c127_i32_959 dim 1 : vector<8x128xf32>, i32 -> vector<8x128xf32>
    %1549 = arith.addf %1547, %1548 : vector<8x128xf32>
    %c0_960 = arith.constant 0 : index
    %c0_961 = arith.constant 0 : index
    %c4_962 = arith.constant 4 : index
    %c0_963 = arith.constant 0 : index
    %1550 = vector.load %arg1[%c0_960, %c0_961, %c4_962, %c0_963] : memref<1x4x14x128xf32, #tpu.memory_space<vmem>>, vector<1x1x8x128xf32>
    %1551 = vector.shape_cast %1550 : vector<1x1x8x128xf32> to vector<8x128xf32>
    %c127_i32_964 = arith.constant 127 : i32
    %1552 = tpu.dynamic_rotate %1551 by %c127_i32_964 dim 1 : vector<8x128xf32>, i32 -> vector<8x128xf32>
    %1553 = arith.mulf %1552, %1549 : vector<8x128xf32>
    %1554 = arith.addf %1527, %1553 : vector<8x128xf32>
    %c0_965 = arith.constant 0 : index
    %c1_966 = arith.constant 1 : index
    %c4_967 = arith.constant 4 : index
    %c0_968 = arith.constant 0 : index
    %1555 = vector.load %arg1[%c0_965, %c1_966, %c4_967, %c0_968] : memref<1x4x14x128xf32, #tpu.memory_space<vmem>>, vector<1x1x8x128xf32>
    %1556 = vector.shape_cast %1555 : vector<1x1x8x128xf32> to vector<8x128xf32>
    %c127_i32_969 = arith.constant 127 : i32
    %1557 = tpu.dynamic_rotate %1556 by %c127_i32_969 dim 1 : vector<8x128xf32>, i32 -> vector<8x128xf32>
    %1558 = arith.mulf %1557, %1549 : vector<8x128xf32>
    %1559 = arith.addf %1531, %1558 : vector<8x128xf32>
    %c0_970 = arith.constant 0 : index
    %c2_971 = arith.constant 2 : index
    %c4_972 = arith.constant 4 : index
    %c0_973 = arith.constant 0 : index
    %1560 = vector.load %arg1[%c0_970, %c2_971, %c4_972, %c0_973] : memref<1x4x14x128xf32, #tpu.memory_space<vmem>>, vector<1x1x8x128xf32>
    %1561 = vector.shape_cast %1560 : vector<1x1x8x128xf32> to vector<8x128xf32>
    %c127_i32_974 = arith.constant 127 : i32
    %1562 = tpu.dynamic_rotate %1561 by %c127_i32_974 dim 1 : vector<8x128xf32>, i32 -> vector<8x128xf32>
    %1563 = arith.mulf %1562, %1549 : vector<8x128xf32>
    %1564 = arith.addf %1535, %1563 : vector<8x128xf32>
    %c0_975 = arith.constant 0 : index
    %c3_976 = arith.constant 3 : index
    %c4_977 = arith.constant 4 : index
    %c0_978 = arith.constant 0 : index
    %1565 = vector.load %arg1[%c0_975, %c3_976, %c4_977, %c0_978] : memref<1x4x14x128xf32, #tpu.memory_space<vmem>>, vector<1x1x8x128xf32>
    %1566 = vector.shape_cast %1565 : vector<1x1x8x128xf32> to vector<8x128xf32>
    %c127_i32_979 = arith.constant 127 : i32
    %1567 = tpu.dynamic_rotate %1566 by %c127_i32_979 dim 1 : vector<8x128xf32>, i32 -> vector<8x128xf32>
    %1568 = arith.mulf %1567, %1549 : vector<8x128xf32>
    %1569 = arith.addf %1539, %1568 : vector<8x128xf32>
    %1570 = arith.mulf %1554, %567 : vector<8x128xf32>
    %c0_980 = arith.constant 0 : index
    %c0_981 = arith.constant 0 : index
    %c3_982 = arith.constant 3 : index
    %c0_983 = arith.constant 0 : index
    %1571 = vector.load %arg5[%c0_980, %c0_981, %c3_982, %c0_983] : memref<1x4x14x128xf32, #tpu.memory_space<vmem>>, vector<1x1x8x128xf32>
    %1572 = vector.shape_cast %1571 : vector<1x1x8x128xf32> to vector<8x128xf32>
    %1573 = arith.subf %1570, %1572 : vector<8x128xf32>
    %c12 = arith.constant 12 : index
    %c0_984 = arith.constant 0 : index
    %c0_985 = arith.constant 0 : index
    %1574 = vector.load %arg6[%c12, %c0_984, %c0_985] : memref<16x8x128xf32, #tpu.memory_space<vmem>>, vector<1x8x128xf32>
    %1575 = vector.shape_cast %1574 : vector<1x8x128xf32> to vector<8x128xf32>
    %1576 = vector.shape_cast %1573 : vector<8x128xf32> to vector<1x8x128xf32>
    tpu.vector_store %arg6[%c12, %c0_984, %c0_985], %1576 {strides = array<i32>} : memref<16x8x128xf32, #tpu.memory_space<vmem>>, vector<1x8x128xf32>,
    %1577 = arith.mulf %1559, %567 : vector<8x128xf32>
    %c0_986 = arith.constant 0 : index
    %c1_987 = arith.constant 1 : index
    %c3_988 = arith.constant 3 : index
    %c0_989 = arith.constant 0 : index
    %1578 = vector.load %arg5[%c0_986, %c1_987, %c3_988, %c0_989] : memref<1x4x14x128xf32, #tpu.memory_space<vmem>>, vector<1x1x8x128xf32>
    %1579 = vector.shape_cast %1578 : vector<1x1x8x128xf32> to vector<8x128xf32>
    %1580 = arith.subf %1577, %1579 : vector<8x128xf32>
    %c13 = arith.constant 13 : index
    %c0_990 = arith.constant 0 : index
    %c0_991 = arith.constant 0 : index
    %1581 = vector.load %arg6[%c13, %c0_990, %c0_991] : memref<16x8x128xf32, #tpu.memory_space<vmem>>, vector<1x8x128xf32>
    %1582 = vector.shape_cast %1581 : vector<1x8x128xf32> to vector<8x128xf32>
    %1583 = vector.shape_cast %1580 : vector<8x128xf32> to vector<1x8x128xf32>
    tpu.vector_store %arg6[%c13, %c0_990, %c0_991], %1583 {strides = array<i32>} : memref<16x8x128xf32, #tpu.memory_space<vmem>>, vector<1x8x128xf32>,
    %1584 = arith.mulf %1564, %567 : vector<8x128xf32>
    %c0_992 = arith.constant 0 : index
    %c2_993 = arith.constant 2 : index
    %c3_994 = arith.constant 3 : index
    %c0_995 = arith.constant 0 : index
    %1585 = vector.load %arg5[%c0_992, %c2_993, %c3_994, %c0_995] : memref<1x4x14x128xf32, #tpu.memory_space<vmem>>, vector<1x1x8x128xf32>
    %1586 = vector.shape_cast %1585 : vector<1x1x8x128xf32> to vector<8x128xf32>
    %1587 = arith.subf %1584, %1586 : vector<8x128xf32>
    %c14 = arith.constant 14 : index
    %c0_996 = arith.constant 0 : index
    %c0_997 = arith.constant 0 : index
    %1588 = vector.load %arg6[%c14, %c0_996, %c0_997] : memref<16x8x128xf32, #tpu.memory_space<vmem>>, vector<1x8x128xf32>
    %1589 = vector.shape_cast %1588 : vector<1x8x128xf32> to vector<8x128xf32>
    %1590 = vector.shape_cast %1587 : vector<8x128xf32> to vector<1x8x128xf32>
    tpu.vector_store %arg6[%c14, %c0_996, %c0_997], %1590 {strides = array<i32>} : memref<16x8x128xf32, #tpu.memory_space<vmem>>, vector<1x8x128xf32>,
    %1591 = arith.mulf %1569, %567 : vector<8x128xf32>
    %c0_998 = arith.constant 0 : index
    %c3_999 = arith.constant 3 : index
    %c3_1000 = arith.constant 3 : index
    %c0_1001 = arith.constant 0 : index
    %1592 = vector.load %arg5[%c0_998, %c3_999, %c3_1000, %c0_1001] : memref<1x4x14x128xf32, #tpu.memory_space<vmem>>, vector<1x1x8x128xf32>
    %1593 = vector.shape_cast %1592 : vector<1x1x8x128xf32> to vector<8x128xf32>
    %1594 = arith.subf %1591, %1593 : vector<8x128xf32>
    %c15 = arith.constant 15 : index
    %c0_1002 = arith.constant 0 : index
    %c0_1003 = arith.constant 0 : index
    %1595 = vector.load %arg6[%c15, %c0_1002, %c0_1003] : memref<16x8x128xf32, #tpu.memory_space<vmem>>, vector<1x8x128xf32>
    %1596 = vector.shape_cast %1595 : vector<1x8x128xf32> to vector<8x128xf32>
    %1597 = vector.shape_cast %1594 : vector<8x128xf32> to vector<1x8x128xf32>
    tpu.vector_store %arg6[%c15, %c0_1002, %c0_1003], %1597 {strides = array<i32>} : memref<16x8x128xf32, #tpu.memory_space<vmem>>, vector<1x8x128xf32>,
    return
  }
  func.func @transform_0(%arg0: i32) -> (i32, i32, i32, i32) {
    %c0_i32 = arith.constant 0 : i32
    %c0_i32_0 = arith.constant 0 : i32
    %c0_i32_1 = arith.constant 0 : i32
    %c0_i32_2 = arith.constant 0 : i32
    return %arg0, %c0_i32, %c0_i32_0, %c0_i32_1 : i32, i32, i32, i32
  }
  func.func @transform_1(%arg0: i32) -> (i32, i32, i32, i32) {
    %c0_i32 = arith.constant 0 : i32
    %c0_i32_0 = arith.constant 0 : i32
    %c0_i32_1 = arith.constant 0 : i32
    %c0_i32_2 = arith.constant 0 : i32
    return %arg0, %c0_i32, %c0_i32_0, %c0_i32_1 : i32, i32, i32, i32
  }
  func.func @transform_2(%arg0: i32) -> (i32, i32, i32, i32) {
    %c0_i32 = arith.constant 0 : i32
    %c0_i32_0 = arith.constant 0 : i32
    %c0_i32_1 = arith.constant 0 : i32
    %c0_i32_2 = arith.constant 0 : i32
    return %arg0, %c0_i32, %c0_i32_0, %c0_i32_1 : i32, i32, i32, i32
  }
  func.func @transform_3(%arg0: i32) -> (i32, i32, i32, i32) {
    %c0_i32 = arith.constant 0 : i32
    %c0_i32_0 = arith.constant 0 : i32
    %c0_i32_1 = arith.constant 0 : i32
    %c0_i32_2 = arith.constant 0 : i32
    return %arg0, %c0_i32, %c0_i32_0, %c0_i32_1 : i32, i32, i32, i32
  }
  func.func @transform_4(%arg0: i32) -> (i32, i32, i32, i32) {
    %c0_i32 = arith.constant 0 : i32
    %c0_i32_0 = arith.constant 0 : i32
    %c0_i32_1 = arith.constant 0 : i32
    %c0_i32_2 = arith.constant 0 : i32
    return %arg0, %c0_i32, %c0_i32_0, %c0_i32_1 : i32, i32, i32, i32
  }
  func.func @transform_5(%arg0: i32) -> (i32, i32, i32) {
    %c0_i32 = arith.constant 0 : i32
    %c0_i32_0 = arith.constant 0 : i32
    %c0_i32_1 = arith.constant 0 : i32
    return %c0_i32, %arg0, %c0_i32_0 : i32, i32, i32
  }
}

</mosaic_0001>

<llo_original>
// kernel: tpu_custom_call.1
$region0: #{tpu_custom_call.1}
  #allocation0 [shape = 'u32[]', space=smem, size = 0x4, offset = 0x4, fixed_abs, tag = 'smem constant byte address 0x4 - core index']
  #allocation1 [shape = 'u32[144,128]{1,0:T(1,128)}', space=vmem, size = 0x12000, scoped, tag = 'internal scratch']
  %s0 = inlined_call_operand.vmem [shape: f32[3,4,14,128], index: 0, kind: input, shape index: {}]
  %s1 = inlined_call_operand.vmem [shape: f32[3,3,14,128], index: 1, kind: input, shape index: {}]
  %s2 = inlined_call_operand.vmem [shape: f32[3,3,14,128], index: 2, kind: input, shape index: {}]
  %s3 = inlined_call_operand.vmem [shape: f32[3,1,14,128], index: 3, kind: input, shape index: {}]
  %s4 = inlined_call_operand.vmem [shape: f32[3,4,14,128], index: 4, kind: input, shape index: {}]
  %s5 = inlined_call_operand.hbm [shape: f32[16,24,128], index: 5, kind: output, shape index: {}]
  %s6 = sld [smem:[#allocation0]]
  $region53: #{tpu_custom_call.1} parent=0
    _
  %s8 = ssub.s32 1, %s6
  %s9 = scalar_select 0, %s8, %s6
  $region1: #{tpu_custom_call.1} parent=0
    #allocation2 [shape = 'u8[131072]{0}', space=vmem, size = 0x20000, scoped, tag = 'output window, operand 0']
    #allocation3 [shape = 's32[2]{0}', space=sflag, size = 0x8, scoped, tag = 'scoped memory for tpu_custom_call.1']
    %10 = vsyncpa [#allocation3], 0
    %s11 = scalar_lea.sflag [#allocation3], 1
    %12 = vsyncpa %s11, 0
    loop: start=0, step=1, limit=5
    $region2: #{tpu_custom_call.1} parent=1 // loop_pre_header
      _
    $region3: #{tpu_custom_call.1} parent=1 // loop_header
      %s14 = sphi 0, %s18
      %p15 = scmp.ge.s32.totalorder %s14, 5
      %s24 = sphi 0, %s26
      %s27 = sphi 0, %s24
      %s28 = sphi 0, %s27
      %s44 = sphi 0, %s28
      %s50 = sphi 0, %s52
      %s53 = sphi 0, %s50
      %s54 = sphi 0, %s53
      %s70 = sphi 0, %s54
      %s76 = sphi 0, %s78
      %s79 = sphi 0, %s76
      %s80 = sphi 0, %s79
      %s96 = sphi 0, %s80
      %s102 = sphi 0, %s104
      %s105 = sphi 0, %s102
      %s106 = sphi 0, %s105
      %s122 = sphi 0, %s106
      %s128 = sphi 0, %s130
      %s131 = sphi 0, %s128
      %s132 = sphi 0, %s131
      %s148 = sphi 0, %s132
      %s154 = sphi 0, %s156
      %s157 = sphi 0, %s154
      %s158 = sphi 0, %s157
      %s174 = sphi 0, %s158
    $region4: #{tpu_custom_call.1} parent=1 // loop_header_branch
      %17 = sbr.rel (%p15) target = $region8
    $region5: #{tpu_custom_call.1} parent=1 // loop_body
      %s19 = ssub.s32 %s14, 1
      %s20 = ssub.s32 %s14, 2
      %s21 = sadd.s32 %s14, 1
      %s22 = ssub.s32 %s14, %s21
      %p23 = scmp.eq.s32.totalorder %s22, 0
      %s25 = sadd.s32 %s24, 1
      %s26 = scalar_select %p23, %s24, %s25
      %p29 = pneg %p23
      %p30 = scmp.eq.s32.totalorder %s14, 2
      %p31 = por %p29, %p30
      %p32 = scmp.ne.s32.totalorder %s24, %s27
      %p33 = scmp.eq.s32.totalorder %s14, 0
      %p34 = por %p32, %p33
      %p35 = scmp.ne.s32.totalorder %s24, %s27
      %p36 = scmp.eq.s32.totalorder %s19, 2
      %p37 = por %p35, %p36
      %p38 = scmp.ne.s32.totalorder %s27, %s28
      %p39 = scmp.eq.s32.totalorder %s19, 0
      %p40 = por %p38, %p39
      %p41 = scmp.ne.s32.totalorder %s27, %s28
      %p42 = scmp.eq.s32.totalorder %s20, 2
      %p43 = por %p41, %p42
      %p45 = scmp.ne.s32.totalorder %s28, %s44
      %p46 = scmp.eq.s32.totalorder %s20, 0
      %p47 = por %p45, %p46
      %s48 = ssub.s32 %s14, %s21
      %p49 = scmp.eq.s32.totalorder %s48, 0
      %s51 = sadd.s32 %s50, 1
      %s52 = scalar_select %p49, %s50, %s51
      %p55 = pneg %p49
      %p56 = scmp.eq.s32.totalorder %s14, 2
      %p57 = por %p55, %p56
      %p58 = scmp.ne.s32.totalorder %s50, %s53
      %p59 = scmp.eq.s32.totalorder %s14, 0
      %p60 = por %p58, %p59
      %p61 = scmp.ne.s32.totalorder %s50, %s53
      %p62 = scmp.eq.s32.totalorder %s19, 2
      %p63 = por %p61, %p62
      %p64 = scmp.ne.s32.totalorder %s53, %s54
      %p65 = scmp.eq.s32.totalorder %s19, 0
      %p66 = por %p64, %p65
      %p67 = scmp.ne.s32.totalorder %s53, %s54
      %p68 = scmp.eq.s32.totalorder %s20, 2
      %p69 = por %p67, %p68
      %p71 = scmp.ne.s32.totalorder %s54, %s70
      %p72 = scmp.eq.s32.totalorder %s20, 0
      %p73 = por %p71, %p72
      %s74 = ssub.s32 %s14, %s21
      %p75 = scmp.eq.s32.totalorder %s74, 0
      %s77 = sadd.s32 %s76, 1
      %s78 = scalar_select %p75, %s76, %s77
      %p81 = pneg %p75
      %p82 = scmp.eq.s32.totalorder %s14, 2
      %p83 = por %p81, %p82
      %p84 = scmp.ne.s32.totalorder %s76, %s79
      %p85 = scmp.eq.s32.totalorder %s14, 0
      %p86 = por %p84, %p85
      %p87 = scmp.ne.s32.totalorder %s76, %s79
      %p88 = scmp.eq.s32.totalorder %s19, 2
      %p89 = por %p87, %p88
      %p90 = scmp.ne.s32.totalorder %s79, %s80
      %p91 = scmp.eq.s32.totalorder %s19, 0
      %p92 = por %p90, %p91
      %p93 = scmp.ne.s32.totalorder %s79, %s80
      %p94 = scmp.eq.s32.totalorder %s20, 2
      %p95 = por %p93, %p94
      %p97 = scmp.ne.s32.totalorder %s80, %s96
      %p98 = scmp.eq.s32.totalorder %s20, 0
      %p99 = por %p97, %p98
      %s100 = ssub.s32 %s14, %s21
      %p101 = scmp.eq.s32.totalorder %s100, 0
      %s103 = sadd.s32 %s102, 1
      %s104 = scalar_select %p101, %s102, %s103
      %p107 = pneg %p101
      %p108 = scmp.eq.s32.totalorder %s14, 2
      %p109 = por %p107, %p108
      %p110 = scmp.ne.s32.totalorder %s102, %s105
      %p111 = scmp.eq.s32.totalorder %s14, 0
      %p112 = por %p110, %p111
      %p113 = scmp.ne.s32.totalorder %s102, %s105
      %p114 = scmp.eq.s32.totalorder %s19, 2
      %p115 = por %p113, %p114
      %p116 = scmp.ne.s32.totalorder %s105, %s106
      %p117 = scmp.eq.s32.totalorder %s19, 0
      %p118 = por %p116, %p117
      %p119 = scmp.ne.s32.totalorder %s105, %s106
      %p120 = scmp.eq.s32.totalorder %s20, 2
      %p121 = por %p119, %p120
      %p123 = scmp.ne.s32.totalorder %s106, %s122
      %p124 = scmp.eq.s32.totalorder %s20, 0
      %p125 = por %p123, %p124
      %s126 = ssub.s32 %s14, %s21
      %p127 = scmp.eq.s32.totalorder %s126, 0
      %s129 = sadd.s32 %s128, 1
      %s130 = scalar_select %p127, %s128, %s129
      %p133 = pneg %p127
      %p134 = scmp.eq.s32.totalorder %s14, 2
      %p135 = por %p133, %p134
      %p136 = scmp.ne.s32.totalorder %s128, %s131
      %p137 = scmp.eq.s32.totalorder %s14, 0
      %p138 = por %p136, %p137
      %p139 = scmp.ne.s32.totalorder %s128, %s131
      %p140 = scmp.eq.s32.totalorder %s19, 2
      %p141 = por %p139, %p140
      %p142 = scmp.ne.s32.totalorder %s131, %s132
      %p143 = scmp.eq.s32.totalorder %s19, 0
      %p144 = por %p142, %p143
      %p145 = scmp.ne.s32.totalorder %s131, %s132
      %p146 = scmp.eq.s32.totalorder %s20, 2
      %p147 = por %p145, %p146
      %p149 = scmp.ne.s32.totalorder %s132, %s148
      %p150 = scmp.eq.s32.totalorder %s20, 0
      %p151 = por %p149, %p150
      %s152 = ssub.s32 %s14, %s21
      %p153 = scmp.eq.s32.totalorder %s152, 0
      %s155 = sadd.s32 %s154, 1
      %s156 = scalar_select %p153, %s154, %s155
      %p159 = pneg %p153
      %p160 = scmp.eq.s32.totalorder %s14, 2
      %p161 = por %p159, %p160
      %p162 = scmp.ne.s32.totalorder %s154, %s157
      %p163 = scmp.eq.s32.totalorder %s14, 0
      %p164 = por %p162, %p163
      %p165 = scmp.ne.s32.totalorder %s154, %s157
      %p166 = scmp.eq.s32.totalorder %s19, 2
      %p167 = por %p165, %p166
      %p168 = scmp.ne.s32.totalorder %s157, %s158
      %p169 = scmp.eq.s32.totalorder %s19, 0
      %p170 = por %p168, %p169
      %p171 = scmp.ne.s32.totalorder %s157, %s158
      %p172 = scmp.eq.s32.totalorder %s20, 2
      %p173 = por %p171, %p172
      %p175 = scmp.ne.s32.totalorder %s158, %s174
      %p176 = scmp.eq.s32.totalorder %s20, 0
      %p177 = por %p175, %p176
      %p178 = scmp.le.s32.totalorder 1, %s14
      %p179 = scmp.lt.s32.totalorder %s14, 4
      %p180 = pnand %p178, %p179
      %p181 = pneg %p180
      // Predicated region
      $region9: #{tpu_custom_call.1} parent=5 // pred_check
        _
      $region10: #{tpu_custom_call.1} parent=5 // pred_check_branch
        %183 = sbr.rel (%p180) target = $region12
      $region11: #{tpu_custom_call.1} parent=5 // pred_region
        %s184 = ssub.s32 %s14, 1
      $region12: #{tpu_custom_call.1} parent=5 // pred_fallthru
        _
      %p185 = scmp.lt.s32.totalorder %s14, 3
      // Predicated region
      $region13: #{tpu_custom_call.1} parent=5 // pred_check
        %p186 = pneg %p185
      $region14: #{tpu_custom_call.1} parent=5 // pred_check_branch
        %188 = sbr.rel (%p186) target = $region16
      $region15: #{tpu_custom_call.1} parent=5 // pred_region
        // Predicated region
        $region17: #{tpu_custom_call.1} parent=15 // pred_check
          %p189 = pneg %p34
        $region18: #{tpu_custom_call.1} parent=15 // pred_check_branch
          %191 = sbr.rel (%p189) target = $region20
        $region19: #{tpu_custom_call.1} parent=15 // pred_region
          %p192 = scmp.lt.s32.totalorder %s14, 2
          %s193 = scalar_select %p192, %s14, 2
          %s194 = smul.addr %s193, 8
          %s195 = smul.addr %s194, 8
          %s196 = scalar_lea.vmem %s0, %s195
        $region20: #{tpu_custom_call.1} parent=15 // pred_fallthru
          _
        // Predicated region
        $region21: #{tpu_custom_call.1} parent=15 // pred_check
          %p197 = pneg %p60
        $region22: #{tpu_custom_call.1} parent=15 // pred_check_branch
          %199 = sbr.rel (%p197) target = $region24
        $region23: #{tpu_custom_call.1} parent=15 // pred_region
          %p200 = scmp.lt.s32.totalorder %s14, 2
          %s201 = scalar_select %p200, %s14, 2
          %s202 = smul.addr %s201, 6
          %s203 = smul.addr %s202, 8
          %s204 = scalar_lea.vmem %s1, %s203
        $region24: #{tpu_custom_call.1} parent=15 // pred_fallthru
          _
        // Predicated region
        $region25: #{tpu_custom_call.1} parent=15 // pred_check
          %p205 = pneg %p86
        $region26: #{tpu_custom_call.1} parent=15 // pred_check_branch
          %207 = sbr.rel (%p205) target = $region28
        $region27: #{tpu_custom_call.1} parent=15 // pred_region
          %p208 = scmp.lt.s32.totalorder %s14, 2
          %s209 = scalar_select %p208, %s14, 2
          %s210 = smul.addr %s209, 6
          %s211 = smul.addr %s210, 8
          %s212 = scalar_lea.vmem %s2, %s211
        $region28: #{tpu_custom_call.1} parent=15 // pred_fallthru
          _
        // Predicated region
        $region29: #{tpu_custom_call.1} parent=15 // pred_check
          %p213 = pneg %p112
        $region30: #{tpu_custom_call.1} parent=15 // pred_check_branch
          %215 = sbr.rel (%p213) target = $region32
        $region31: #{tpu_custom_call.1} parent=15 // pred_region
          %p216 = scmp.lt.s32.totalorder %s14, 2
          %s217 = scalar_select %p216, %s14, 2
          %s218 = smul.addr %s217, 2
          %s219 = smul.addr %s218, 8
          %s220 = scalar_lea.vmem %s3, %s219
        $region32: #{tpu_custom_call.1} parent=15 // pred_fallthru
          _
        // Predicated region
        $region33: #{tpu_custom_call.1} parent=15 // pred_check
          %p221 = pneg %p138
        $region34: #{tpu_custom_call.1} parent=15 // pred_check_branch
          %223 = sbr.rel (%p221) target = $region36
        $region35: #{tpu_custom_call.1} parent=15 // pred_region
          %p224 = scmp.lt.s32.totalorder %s14, 2
          %s225 = scalar_select %p224, %s14, 2
          %s226 = smul.addr %s225, 8
          %s227 = smul.addr %s226, 8
          %s228 = scalar_lea.vmem %s4, %s227
        $region36: #{tpu_custom_call.1} parent=15 // pred_fallthru
          _
      $region16: #{tpu_custom_call.1} parent=5 // pred_fallthru
        _
      %p229 = scmp.le.s32.totalorder 1, %s14
      %p230 = scmp.lt.s32.totalorder %s14, 4
      %p231 = pnand %p229, %p230
      %p232 = pneg %p231
      // Predicated region
      $region37: #{tpu_custom_call.1} parent=5 // pred_check
        _
      $region38: #{tpu_custom_call.1} parent=5 // pred_check_branch
        %234 = sbr.rel (%p231) target = $region40
      $region39: #{tpu_custom_call.1} parent=5 // pred_region
        %s235 = ssub.s32 %s14, 1
        %p236 = scmp.lt.s32.totalorder %s19, 2
        %s237 = scalar_select %p236, %s19, 2
        %s238 = smul.addr %s237, 8
        %s239 = smul.addr %s238, 8
        %s240 = scalar_lea.vmem %s0, %s239
        %p241 = pneg %p40
        %p242 = pneg %p37
        %p243 = scmp.lt.s32.totalorder %s19, 2
        %s244 = scalar_select %p243, %s19, 2
        %s245 = smul.addr %s244, 6
        %s246 = smul.addr %s245, 8
        %s247 = scalar_lea.vmem %s1, %s246
        %p248 = pneg %p66
        %p249 = pneg %p63
        %p250 = scmp.lt.s32.totalorder %s19, 2
        %s251 = scalar_select %p250, %s19, 2
        %s252 = smul.addr %s251, 6
        %s253 = smul.addr %s252, 8
        %s254 = scalar_lea.vmem %s2, %s253
        %p255 = pneg %p92
        %p256 = pneg %p89
        %p257 = scmp.lt.s32.totalorder %s19, 2
        %s258 = scalar_select %p257, %s19, 2
        %s259 = smul.addr %s258, 2
        %s260 = smul.addr %s259, 8
        %s261 = scalar_lea.vmem %s3, %s260
        %p262 = pneg %p118
        %p263 = pneg %p115
        %p264 = scmp.lt.s32.totalorder %s19, 2
        %s265 = scalar_select %p264, %s19, 2
        %s266 = smul.addr %s265, 8
        %s267 = smul.addr %s266, 8
        %s268 = scalar_lea.vmem %s4, %s267
        %p269 = pneg %p144
        %p270 = pneg %p141
        %p271 = pneg %p170
        %p272 = pneg %p167
        %s273 = sand.u32 %s157, 1
        %s274 = scalar_lea.sflag [#allocation3], %s273
        %s275 = sand.u32 %s157, 1
        %s276 = smul.addr %s275, 128
        %s277 = scalar_lea.vmem [#allocation2], %s276
        %p278 = scmp.lt.s32.totalorder %s19, 2
        %s279 = scalar_select %p278, %s19, 2
        %s280 = smul.addr %s279, 8
        %s281 = smul.addr %s280, 8
        %s282 = scalar_lea.vmem %s0, %s281
        %p283 = scmp.lt.s32.totalorder %s19, 2
        %s284 = scalar_select %p283, %s19, 2
        %s285 = smul.addr %s284, 6
        %s286 = smul.addr %s285, 8
        %s287 = scalar_lea.vmem %s1, %s286
        %p288 = scmp.lt.s32.totalorder %s19, 2
        %s289 = scalar_select %p288, %s19, 2
        %s290 = smul.addr %s289, 6
        %s291 = smul.addr %s290, 8
        %s292 = scalar_lea.vmem %s2, %s291
        %p293 = scmp.lt.s32.totalorder %s19, 2
        %s294 = scalar_select %p293, %s19, 2
        %s295 = smul.addr %s294, 2
        %s296 = smul.addr %s295, 8
        %s297 = scalar_lea.vmem %s3, %s296
        %p298 = scmp.lt.s32.totalorder %s19, 2
        %s299 = scalar_select %p298, %s19, 2
        %s300 = smul.addr %s299, 8
        %s301 = smul.addr %s300, 8
        %s302 = scalar_lea.vmem %s4, %s301
        %s303 = smul.u32 %s19, 8
        %v304 = vld [vmem:[%s297 + $0x1] sm:$0xff]
        %v305 = vld [vmem:[%s297 + $0x9] sm:$0xf]
        %vm308 = vcmask 1046528
        %v309 = vrot.slane %v304, 1
        %v310 = vrot.slane %v305, 1
        %v311 = vsel %vm308, %v309, %v310
        %v314 = vadd.f32 %v304, %v311
        %v315 = vadd.f32 %v305, %v310
        %vm316 = vcmask 1045504
        %v317 = vrot.slane %v304, 2
        %v318 = vrot.slane %v305, 2
        %v319 = vsel %vm316, %v317, %v318
        %v322 = vadd.f32 %v314, %v319
        %v323 = vadd.f32 %v315, %v318
        %324 = vrot.lane.b32.xlu0 %v322, 1
        %v325 = vpop.permute.xlu0 %324
        %326 = vrot.lane.b32.xlu0 %v323, 1
        %v327 = vpop.permute.xlu0 %326
        %v328 = vadd.f32 %v325, %v322
        %v329 = vadd.f32 %v327, %v323
        %330 = vrot.lane.b32.xlu0 %v322, 127
        %v331 = vpop.permute.xlu0 %330
        %332 = vrot.lane.b32.xlu0 %v323, 127
        %v333 = vpop.permute.xlu0 %332
        %v334 = vadd.f32 %v328, %v331
        %v335 = vadd.f32 %v329, %v333
        %v336 = vmul.f32 %v334, -0.11111111
        %v337 = vmul.f32 %v335, -0.11111111
        %v338 = vmul.f32 %v336, 1.442695
        %v339 = vpow.pop %v338
        %v340 = vmul.f32 %v337, 1.442695
        %v341 = vpow.pop %v340
        %v342 = vsub.f32 0.0, %v339
        %v343 = vsub.f32 0.0, %v341
        %v344 = vld [vmem:[%s292 + $0x1] sm:$0xff]
        %v345 = vld [vmem:[%s292 + $0x9] sm:$0xf]
        %v346 = vmul.f32 %v344, %v344
        %v347 = vmul.f32 %v345, %v345
        %s348 = scalar_lea.vmem %s292, 16
        %v349 = vld [vmem:[%s348 + $0x1] sm:$0xff]
        %v350 = vld [vmem:[%s348 + $0x9] sm:$0xf]
        %v351 = vmul.f32 %v349, %v349
        %v352 = vmul.f32 %v350, %v350
        %v353 = vadd.f32 %v346, %v351
        %v354 = vadd.f32 %v347, %v352
        %s355 = scalar_lea.vmem %s292, 32
        %v356 = vld [vmem:[%s355 + $0x1] sm:$0xff]
        %v357 = vld [vmem:[%s355 + $0x9] sm:$0xf]
        %v358 = vmul.f32 %v356, %v356
        %v359 = vmul.f32 %v357, %v357
        %v360 = vadd.f32 %v353, %v358
        %v361 = vadd.f32 %v354, %v359
        %v364 = vrot.slane %v360, 1
        %v365 = vrot.slane %v361, 1
        %v366 = vsel %vm308, %v364, %v365
        %v369 = vadd.f32 %v360, %v366
        %v370 = vadd.f32 %v361, %v365
        %v371 = vrot.slane %v360, 2
        %v372 = vrot.slane %v361, 2
        %v373 = vsel %vm316, %v371, %v372
        %v376 = vadd.f32 %v369, %v373
        %v377 = vadd.f32 %v370, %v372
        %378 = vrot.lane.b32.xlu0 %v376, 1
        %v379 = vpop.permute.xlu0 %378
        %380 = vrot.lane.b32.xlu0 %v377, 1
        %v381 = vpop.permute.xlu0 %380
        %v382 = vadd.f32 %v379, %v376
        %v383 = vadd.f32 %v381, %v377
        %384 = vrot.lane.b32.xlu0 %v376, 127
        %v385 = vpop.permute.xlu0 %384
        %386 = vrot.lane.b32.xlu0 %v377, 127
        %v387 = vpop.permute.xlu0 %386
        %v388 = vadd.f32 %v382, %v385
        %v389 = vadd.f32 %v383, %v387
        %v390 = vld [vmem:[%s287] sm:$0xff]
        %v391 = vld [vmem:[%s287 + $0x8] sm:$0x3f]
        %v392 = vmul.f32 %v390, %v390
        %v393 = vmul.f32 %v391, %v391
        %s394 = scalar_lea.vmem %s287, 16
        %v395 = vld [vmem:[%s394] sm:$0xff]
        %v396 = vld [vmem:[%s394 + $0x8] sm:$0x3f]
        %v397 = vmul.f32 %v395, %v395
        %v398 = vmul.f32 %v396, %v396
        %v399 = vadd.f32 %v392, %v397
        %v400 = vadd.f32 %v393, %v398
        %s401 = scalar_lea.vmem %s287, 32
        %v402 = vld [vmem:[%s401] sm:$0xff]
        %v403 = vld [vmem:[%s401 + $0x8] sm:$0x3f]
        %v404 = vmul.f32 %v402, %v402
        %v405 = vmul.f32 %v403, %v403
        %v406 = vadd.f32 %v399, %v404
        %v407 = vadd.f32 %v400, %v405
        %v410 = vrot.slane %v406, 1
        %v411 = vrot.slane %v407, 1
        %v412 = vsel %vm308, %v410, %v411
        %v415 = vadd.f32 %v406, %v412
        %v416 = vadd.f32 %v407, %v411
        %v417 = vrot.slane %v406, 2
        %v418 = vrot.slane %v407, 2
        %v419 = vsel %vm316, %v417, %v418
        %v422 = vadd.f32 %v415, %v419
        %v423 = vadd.f32 %v416, %v418
        %424 = vrot.lane.b32.xlu0 %v422, 1
        %v425 = vpop.permute.xlu0 %424
        %426 = vrot.lane.b32.xlu0 %v423, 1
        %v427 = vpop.permute.xlu0 %426
        %v428 = vadd.f32 %v425, %v422
        %v429 = vadd.f32 %v427, %v423
        %430 = vrot.lane.b32.xlu0 %v422, 127
        %v431 = vpop.permute.xlu0 %430
        %432 = vrot.lane.b32.xlu0 %v423, 127
        %v433 = vpop.permute.xlu0 %432
        %v434 = vadd.f32 %v428, %v431
        %v435 = vadd.f32 %v429, %v433
        %s436 = ssub.s32 %s303, 1
        %v437 = vlaneseq
        %v438 = vshrl.u32 %v437, 7
        %v439 = vadd.s32 %v438, 8
        %v440 = vstv %s436
        %v441 = vadd.s32 %v440, %v438
        %v442 = vadd.s32 %v440, %v439
        %v443 = vlaneseq
        %v444 = vand.u32 %v443, 127
        %v445 = vsub.s32 %v444, 2
        %vm446 = vcmp.ge.s32.totalorder %v441, 0
        %vm447 = vcmp.ge.s32.totalorder %v442, 0
        %vm448 = vcmp.lt.s32.totalorder %v441, 18
        %vm449 = vcmp.lt.s32.totalorder %v442, 18
        %vm450 = vmand %vm446, %vm448
        %vm451 = vmand %vm447, %vm449
        %vm452 = vcmp.ge.s32.totalorder %v445, 0
        %vm453 = vmand %vm450, %vm452
        %vm454 = vmand %vm451, %vm452
        %vm455 = vcmp.lt.s32.totalorder %v445, 18
        %vm456 = vmand %vm453, %vm455
        %vm457 = vmand %vm454, %vm455
        %v458 = vsel %vm456, 1, 0
        %v459 = vsel %vm457, 1, 0
        %v460 = vcvt.s32.f32 %v458
        %v461 = vcvt.s32.f32 %v459
        %v462 = vld [vmem:[%s287] sm:$0xff]
        %v463 = vld [vmem:[%s287 + $0x8] sm:$0xf]
        %464 = vrot.lane.b32.xlu0 %v462, 1
        %v465 = vpop.permute.xlu0 %464
        %466 = vrot.lane.b32.xlu0 %v463, 1
        %v467 = vpop.permute.xlu0 %466
        %v468 = vmul.f32 %v344, %v465
        %v469 = vmul.f32 %v345, %v467
        %v470 = vld [vmem:[%s394] sm:$0xff]
        %v471 = vld [vmem:[%s394 + $0x8] sm:$0xf]
        %472 = vrot.lane.b32.xlu0 %v470, 1
        %v473 = vpop.permute.xlu0 %472
        %474 = vrot.lane.b32.xlu0 %v471, 1
        %v475 = vpop.permute.xlu0 %474
        %v476 = vmul.f32 %v349, %v473
        %v477 = vmul.f32 %v350, %v475
        %v478 = vadd.f32 %v468, %v476
        %v479 = vadd.f32 %v469, %v477
        %v480 = vld [vmem:[%s401] sm:$0xff]
        %v481 = vld [vmem:[%s401 + $0x8] sm:$0xf]
        %482 = vrot.lane.b32.xlu0 %v480, 1
        %v483 = vpop.permute.xlu0 %482
        %484 = vrot.lane.b32.xlu0 %v481, 1
        %v485 = vpop.permute.xlu0 %484
        %v486 = vmul.f32 %v356, %v483
        %v487 = vmul.f32 %v357, %v485
        %v488 = vadd.f32 %v478, %v486
        %v489 = vadd.f32 %v479, %v487
        %490 = vrot.lane.b32.xlu0 %v434, 1
        %v491 = vpop.permute.xlu0 %490
        %492 = vrot.lane.b32.xlu0 %v435, 1
        %v493 = vpop.permute.xlu0 %492
        %v494 = vadd.f32 %v388, %v491
        %v495 = vadd.f32 %v389, %v493
        %v498 = vrot.slane %v488, 1
        %v499 = vrot.slane %v489, 1
        %v500 = vsel %vm308, %v498, %v499
        %v503 = vadd.f32 %v488, %v500
        %v504 = vadd.f32 %v489, %v499
        %v505 = vrot.slane %v488, 2
        %v506 = vrot.slane %v489, 2
        %v507 = vsel %vm316, %v505, %v506
        %v510 = vadd.f32 %v503, %v507
        %v511 = vadd.f32 %v504, %v506
        %512 = vrot.lane.b32.xlu0 %v510, 1
        %v513 = vpop.permute.xlu0 %512
        %514 = vrot.lane.b32.xlu0 %v511, 1
        %v515 = vpop.permute.xlu0 %514
        %v516 = vadd.f32 %v513, %v510
        %v517 = vadd.f32 %v515, %v511
        %518 = vrot.lane.b32.xlu0 %v510, 127
        %v519 = vpop.permute.xlu0 %518
        %520 = vrot.lane.b32.xlu0 %v511, 127
        %v521 = vpop.permute.xlu0 %520
        %v522 = vadd.f32 %v516, %v519
        %v523 = vadd.f32 %v517, %v521
        %v524 = vmul.f32 %v522, 2.0
        %v525 = vmul.f32 %v523, 2.0
        %v526 = vsub.f32 %v494, %v524
        %v527 = vsub.f32 %v495, %v525
        %v528 = vadd.s32 %v441, 4294967295
        %v529 = vadd.s32 %v442, 4294967295
        %vm530 = vcmp.ge.s32.totalorder %v528, 0
        %vm531 = vcmp.ge.s32.totalorder %v529, 0
        %vm532 = vcmp.lt.s32.totalorder %v528, 18
        %vm533 = vcmp.lt.s32.totalorder %v529, 18
        %vm534 = vmand %vm530, %vm532
        %vm535 = vmand %vm531, %vm533
        %v536 = vadd.s32 %v445, 4294967295
        %vm537 = vcmp.ge.s32.totalorder %v536, 0
        %vm538 = vmand %vm534, %vm537
        %vm539 = vmand %vm535, %vm537
        %vm540 = vcmp.lt.s32.totalorder %v536, 18
        %vm541 = vmand %vm538, %vm540
        %vm542 = vmand %vm539, %vm540
        %v543 = vmul.f32 %v526, %v342
        %v544 = vmul.f32 %v527, %v343
        %v545 = vsel %vm541, %v543, -1e+30
        %v546 = vsel %vm542, %v544, -1e+30
        %v547 = vmul.f32 %v344, %v462
        %v548 = vmul.f32 %v345, %v463
        %v549 = vmul.f32 %v349, %v470
        %v550 = vmul.f32 %v350, %v471
        %v551 = vadd.f32 %v547, %v549
        %v552 = vadd.f32 %v548, %v550
        %v553 = vmul.f32 %v356, %v480
        %v554 = vmul.f32 %v357, %v481
        %v555 = vadd.f32 %v551, %v553
        %v556 = vadd.f32 %v552, %v554
        %v557 = vadd.f32 %v388, %v434
        %v558 = vadd.f32 %v389, %v435
        %v561 = vrot.slane %v555, 1
        %v562 = vrot.slane %v556, 1
        %v563 = vsel %vm308, %v561, %v562
        %v566 = vadd.f32 %v555, %v563
        %v567 = vadd.f32 %v556, %v562
        %v568 = vrot.slane %v555, 2
        %v569 = vrot.slane %v556, 2
        %v570 = vsel %vm316, %v568, %v569
        %v573 = vadd.f32 %v566, %v570
        %v574 = vadd.f32 %v567, %v569
        %575 = vrot.lane.b32.xlu0 %v573, 1
        %v576 = vpop.permute.xlu0 %575
        %577 = vrot.lane.b32.xlu0 %v574, 1
        %v578 = vpop.permute.xlu0 %577
        %v579 = vadd.f32 %v576, %v573
        %v580 = vadd.f32 %v578, %v574
        %581 = vrot.lane.b32.xlu0 %v573, 127
        %v582 = vpop.permute.xlu0 %581
        %583 = vrot.lane.b32.xlu0 %v574, 127
        %v584 = vpop.permute.xlu0 %583
        %v585 = vadd.f32 %v579, %v582
        %v586 = vadd.f32 %v580, %v584
        %v587 = vmul.f32 %v585, 2.0
        %v588 = vmul.f32 %v586, 2.0
        %v589 = vsub.f32 %v557, %v587
        %v590 = vsub.f32 %v558, %v588
        %vm591 = vmand %vm534, %vm452
        %vm592 = vmand %vm535, %vm452
        %vm593 = vmand %vm591, %vm455
        %vm594 = vmand %vm592, %vm455
        %v595 = vmul.f32 %v589, %v342
        %v596 = vmul.f32 %v590, %v343
        %v597 = vsel %vm593, %v595, -1e+30
        %v598 = vsel %vm594, %v596, -1e+30
        %599 = vrot.lane.b32.xlu0 %v462, 127
        %v600 = vpop.permute.xlu0 %599
        %601 = vrot.lane.b32.xlu0 %v463, 127
        %v602 = vpop.permute.xlu0 %601
        %v603 = vmul.f32 %v344, %v600
        %v604 = vmul.f32 %v345, %v602
        %605 = vrot.lane.b32.xlu0 %v470, 127
        %v606 = vpop.permute.xlu0 %605
        %607 = vrot.lane.b32.xlu0 %v471, 127
        %v608 = vpop.permute.xlu0 %607
        %v609 = vmul.f32 %v349, %v606
        %v610 = vmul.f32 %v350, %v608
        %v611 = vadd.f32 %v603, %v609
        %v612 = vadd.f32 %v604, %v610
        %613 = vrot.lane.b32.xlu0 %v480, 127
        %v614 = vpop.permute.xlu0 %613
        %615 = vrot.lane.b32.xlu0 %v481, 127
        %v616 = vpop.permute.xlu0 %615
        %v617 = vmul.f32 %v356, %v614
        %v618 = vmul.f32 %v357, %v616
        %v619 = vadd.f32 %v611, %v617
        %v620 = vadd.f32 %v612, %v618
        %621 = vrot.lane.b32.xlu0 %v434, 127
        %v622 = vpop.permute.xlu0 %621
        %623 = vrot.lane.b32.xlu0 %v435, 127
        %v624 = vpop.permute.xlu0 %623
        %v625 = vadd.f32 %v388, %v622
        %v626 = vadd.f32 %v389, %v624
        %v629 = vrot.slane %v619, 1
        %v630 = vrot.slane %v620, 1
        %v631 = vsel %vm308, %v629, %v630
        %v634 = vadd.f32 %v619, %v631
        %v635 = vadd.f32 %v620, %v630
        %v636 = vrot.slane %v619, 2
        %v637 = vrot.slane %v620, 2
        %v638 = vsel %vm316, %v636, %v637
        %v641 = vadd.f32 %v634, %v638
        %v642 = vadd.f32 %v635, %v637
        %643 = vrot.lane.b32.xlu0 %v641, 1
        %v644 = vpop.permute.xlu0 %643
        %645 = vrot.lane.b32.xlu0 %v642, 1
        %v646 = vpop.permute.xlu0 %645
        %v647 = vadd.f32 %v644, %v641
        %v648 = vadd.f32 %v646, %v642
        %649 = vrot.lane.b32.xlu0 %v641, 127
        %v650 = vpop.permute.xlu0 %649
        %651 = vrot.lane.b32.xlu0 %v642, 127
        %v652 = vpop.permute.xlu0 %651
        %v653 = vadd.f32 %v647, %v650
        %v654 = vadd.f32 %v648, %v652
        %v655 = vmul.f32 %v653, 2.0
        %v656 = vmul.f32 %v654, 2.0
        %v657 = vsub.f32 %v625, %v655
        %v658 = vsub.f32 %v626, %v656
        %v659 = vadd.s32 %v445, 1
        %vm660 = vcmp.ge.s32.totalorder %v659, 0
        %vm661 = vmand %vm534, %vm660
        %vm662 = vmand %vm535, %vm660
        %vm663 = vcmp.lt.s32.totalorder %v659, 18
        %vm664 = vmand %vm661, %vm663
        %vm665 = vmand %vm662, %vm663
        %v666 = vmul.f32 %v657, %v342
        %v667 = vmul.f32 %v658, %v343
        %v668 = vsel %vm664, %v666, -1e+30
        %v669 = vsel %vm665, %v667, -1e+30
        %v670 = vld [vmem:[%s287 + $0x1] sm:$0xff]
        %v671 = vld [vmem:[%s287 + $0x9] sm:$0xf]
        %672 = vrot.lane.b32.xlu0 %v670, 1
        %v673 = vpop.permute.xlu0 %672
        %674 = vrot.lane.b32.xlu0 %v671, 1
        %v675 = vpop.permute.xlu0 %674
        %v676 = vmul.f32 %v344, %v673
        %v677 = vmul.f32 %v345, %v675
        %v678 = vld [vmem:[%s394 + $0x1] sm:$0xff]
        %v679 = vld [vmem:[%s394 + $0x9] sm:$0xf]
        %680 = vrot.lane.b32.xlu0 %v678, 1
        %v681 = vpop.permute.xlu0 %680
        %682 = vrot.lane.b32.xlu0 %v679, 1
        %v683 = vpop.permute.xlu0 %682
        %v684 = vmul.f32 %v349, %v681
        %v685 = vmul.f32 %v350, %v683
        %v686 = vadd.f32 %v676, %v684
        %v687 = vadd.f32 %v677, %v685
        %v688 = vld [vmem:[%s401 + $0x1] sm:$0xff]
        %v689 = vld [vmem:[%s401 + $0x9] sm:$0xf]
        %690 = vrot.lane.b32.xlu0 %v688, 1
        %v691 = vpop.permute.xlu0 %690
        %692 = vrot.lane.b32.xlu0 %v689, 1
        %v693 = vpop.permute.xlu0 %692
        %v694 = vmul.f32 %v356, %v691
        %v695 = vmul.f32 %v357, %v693
        %v696 = vadd.f32 %v686, %v694
        %v697 = vadd.f32 %v687, %v695
        %v700 = vrot.slane %v434, 1
        %v701 = vrot.slane %v435, 1
        %v702 = vsel %vm308, %v700, %v701
        %705 = vrot.lane.b32.xlu0 %v702, 1
        %v706 = vpop.permute.xlu0 %705
        %707 = vrot.lane.b32.xlu0 %v701, 1
        %v708 = vpop.permute.xlu0 %707
        %v709 = vadd.f32 %v388, %v706
        %v710 = vadd.f32 %v389, %v708
        %v713 = vrot.slane %v696, 1
        %v714 = vrot.slane %v697, 1
        %v715 = vsel %vm308, %v713, %v714
        %v718 = vadd.f32 %v696, %v715
        %v719 = vadd.f32 %v697, %v714
        %v720 = vrot.slane %v696, 2
        %v721 = vrot.slane %v697, 2
        %v722 = vsel %vm316, %v720, %v721
        %v725 = vadd.f32 %v718, %v722
        %v726 = vadd.f32 %v719, %v721
        %727 = vrot.lane.b32.xlu0 %v725, 1
        %v728 = vpop.permute.xlu0 %727
        %729 = vrot.lane.b32.xlu0 %v726, 1
        %v730 = vpop.permute.xlu0 %729
        %v731 = vadd.f32 %v728, %v725
        %v732 = vadd.f32 %v730, %v726
        %733 = vrot.lane.b32.xlu0 %v725, 127
        %v734 = vpop.permute.xlu0 %733
        %735 = vrot.lane.b32.xlu0 %v726, 127
        %v736 = vpop.permute.xlu0 %735
        %v737 = vadd.f32 %v731, %v734
        %v738 = vadd.f32 %v732, %v736
        %v739 = vmul.f32 %v737, 2.0
        %v740 = vmul.f32 %v738, 2.0
        %v741 = vsub.f32 %v709, %v739
        %v742 = vsub.f32 %v710, %v740
        %vm743 = vmand %vm450, %vm537
        %vm744 = vmand %vm451, %vm537
        %vm745 = vmand %vm743, %vm540
        %vm746 = vmand %vm744, %vm540
        %v747 = vmul.f32 %v741, %v342
        %v748 = vmul.f32 %v742, %v343
        %v749 = vsel %vm745, %v747, -1e+30
        %v750 = vsel %vm746, %v748, -1e+30
        %751 = vrot.lane.b32.xlu0 %v670, 127
        %v752 = vpop.permute.xlu0 %751
        %753 = vrot.lane.b32.xlu0 %v671, 127
        %v754 = vpop.permute.xlu0 %753
        %v755 = vmul.f32 %v344, %v752
        %v756 = vmul.f32 %v345, %v754
        %757 = vrot.lane.b32.xlu0 %v678, 127
        %v758 = vpop.permute.xlu0 %757
        %759 = vrot.lane.b32.xlu0 %v679, 127
        %v760 = vpop.permute.xlu0 %759
        %v761 = vmul.f32 %v349, %v758
        %v762 = vmul.f32 %v350, %v760
        %v763 = vadd.f32 %v755, %v761
        %v764 = vadd.f32 %v756, %v762
        %765 = vrot.lane.b32.xlu0 %v688, 127
        %v766 = vpop.permute.xlu0 %765
        %767 = vrot.lane.b32.xlu0 %v689, 127
        %v768 = vpop.permute.xlu0 %767
        %v769 = vmul.f32 %v356, %v766
        %v770 = vmul.f32 %v357, %v768
        %v771 = vadd.f32 %v763, %v769
        %v772 = vadd.f32 %v764, %v770
        %773 = vrot.lane.b32.xlu0 %v702, 127
        %v774 = vpop.permute.xlu0 %773
        %775 = vrot.lane.b32.xlu0 %v701, 127
        %v776 = vpop.permute.xlu0 %775
        %v777 = vadd.f32 %v388, %v774
        %v778 = vadd.f32 %v389, %v776
        %v781 = vrot.slane %v771, 1
        %v782 = vrot.slane %v772, 1
        %v783 = vsel %vm308, %v781, %v782
        %v786 = vadd.f32 %v771, %v783
        %v787 = vadd.f32 %v772, %v782
        %v788 = vrot.slane %v771, 2
        %v789 = vrot.slane %v772, 2
        %v790 = vsel %vm316, %v788, %v789
        %v793 = vadd.f32 %v786, %v790
        %v794 = vadd.f32 %v787, %v789
        %795 = vrot.lane.b32.xlu0 %v793, 1
        %v796 = vpop.permute.xlu0 %795
        %797 = vrot.lane.b32.xlu0 %v794, 1
        %v798 = vpop.permute.xlu0 %797
        %v799 = vadd.f32 %v796, %v793
        %v800 = vadd.f32 %v798, %v794
        %801 = vrot.lane.b32.xlu0 %v793, 127
        %v802 = vpop.permute.xlu0 %801
        %803 = vrot.lane.b32.xlu0 %v794, 127
        %v804 = vpop.permute.xlu0 %803
        %v805 = vadd.f32 %v799, %v802
        %v806 = vadd.f32 %v800, %v804
        %v807 = vmul.f32 %v805, 2.0
        %v808 = vmul.f32 %v806, 2.0
        %v809 = vsub.f32 %v777, %v807
        %v810 = vsub.f32 %v778, %v808
        %vm811 = vmand %vm450, %vm660
        %vm812 = vmand %vm451, %vm660
        %vm813 = vmand %vm811, %vm663
        %vm814 = vmand %vm812, %vm663
        %v815 = vmul.f32 %v809, %v342
        %v816 = vmul.f32 %v810, %v343
        %v817 = vsel %vm813, %v815, -1e+30
        %v818 = vsel %vm814, %v816, -1e+30
        %v819 = vld [vmem:[%s287 + $0x2] sm:$0xff]
        %v820 = vld [vmem:[%s287 + $0xa] sm:$0xf]
        %821 = vrot.lane.b32.xlu0 %v819, 1
        %v822 = vpop.permute.xlu0 %821
        %823 = vrot.lane.b32.xlu0 %v820, 1
        %v824 = vpop.permute.xlu0 %823
        %v825 = vmul.f32 %v344, %v822
        %v826 = vmul.f32 %v345, %v824
        %v827 = vld [vmem:[%s394 + $0x2] sm:$0xff]
        %v828 = vld [vmem:[%s394 + $0xa] sm:$0xf]
        %829 = vrot.lane.b32.xlu0 %v827, 1
        %v830 = vpop.permute.xlu0 %829
        %831 = vrot.lane.b32.xlu0 %v828, 1
        %v832 = vpop.permute.xlu0 %831
        %v833 = vmul.f32 %v349, %v830
        %v834 = vmul.f32 %v350, %v832
        %v835 = vadd.f32 %v825, %v833
        %v836 = vadd.f32 %v826, %v834
        %v837 = vld [vmem:[%s401 + $0x2] sm:$0xff]
        %v838 = vld [vmem:[%s401 + $0xa] sm:$0xf]
        %839 = vrot.lane.b32.xlu0 %v837, 1
        %v840 = vpop.permute.xlu0 %839
        %841 = vrot.lane.b32.xlu0 %v838, 1
        %v842 = vpop.permute.xlu0 %841
        %v843 = vmul.f32 %v356, %v840
        %v844 = vmul.f32 %v357, %v842
        %v845 = vadd.f32 %v835, %v843
        %v846 = vadd.f32 %v836, %v844
        %v847 = vrot.slane %v434, 2
        %v848 = vrot.slane %v435, 2
        %v849 = vsel %vm316, %v847, %v848
        %852 = vrot.lane.b32.xlu0 %v849, 1
        %v853 = vpop.permute.xlu0 %852
        %854 = vrot.lane.b32.xlu0 %v848, 1
        %v855 = vpop.permute.xlu0 %854
        %v856 = vadd.f32 %v388, %v853
        %v857 = vadd.f32 %v389, %v855
        %v860 = vrot.slane %v845, 1
        %v861 = vrot.slane %v846, 1
        %v862 = vsel %vm308, %v860, %v861
        %v865 = vadd.f32 %v845, %v862
        %v866 = vadd.f32 %v846, %v861
        %v867 = vrot.slane %v845, 2
        %v868 = vrot.slane %v846, 2
        %v869 = vsel %vm316, %v867, %v868
        %v872 = vadd.f32 %v865, %v869
        %v873 = vadd.f32 %v866, %v868
        %874 = vrot.lane.b32.xlu0 %v872, 1
        %v875 = vpop.permute.xlu0 %874
        %876 = vrot.lane.b32.xlu0 %v873, 1
        %v877 = vpop.permute.xlu0 %876
        %v878 = vadd.f32 %v875, %v872
        %v879 = vadd.f32 %v877, %v873
        %880 = vrot.lane.b32.xlu0 %v872, 127
        %v881 = vpop.permute.xlu0 %880
        %882 = vrot.lane.b32.xlu0 %v873, 127
        %v883 = vpop.permute.xlu0 %882
        %v884 = vadd.f32 %v878, %v881
        %v885 = vadd.f32 %v879, %v883
        %v886 = vmul.f32 %v884, 2.0
        %v887 = vmul.f32 %v885, 2.0
        %v888 = vsub.f32 %v856, %v886
        %v889 = vsub.f32 %v857, %v887
        %v890 = vadd.s32 %v441, 1
        %v891 = vadd.s32 %v442, 1
        %vm892 = vcmp.ge.s32.totalorder %v890, 0
        %vm893 = vcmp.ge.s32.totalorder %v891, 0
        %vm894 = vcmp.lt.s32.totalorder %v890, 18
        %vm895 = vcmp.lt.s32.totalorder %v891, 18
        %vm896 = vmand %vm892, %vm894
        %vm897 = vmand %vm893, %vm895
        %vm898 = vmand %vm896, %vm537
        %vm899 = vmand %vm897, %vm537
        %vm900 = vmand %vm898, %vm540
        %vm901 = vmand %vm899, %vm540
        %v902 = vmul.f32 %v888, %v342
        %v903 = vmul.f32 %v889, %v343
        %v904 = vsel %vm900, %v902, -1e+30
        %v905 = vsel %vm901, %v903, -1e+30
        %v906 = vmul.f32 %v344, %v819
        %v907 = vmul.f32 %v345, %v820
        %v908 = vmul.f32 %v349, %v827
        %v909 = vmul.f32 %v350, %v828
        %v910 = vadd.f32 %v906, %v908
        %v911 = vadd.f32 %v907, %v909
        %v912 = vmul.f32 %v356, %v837
        %v913 = vmul.f32 %v357, %v838
        %v914 = vadd.f32 %v910, %v912
        %v915 = vadd.f32 %v911, %v913
        %v916 = vadd.f32 %v388, %v849
        %v917 = vadd.f32 %v389, %v848
        %v920 = vrot.slane %v914, 1
        %v921 = vrot.slane %v915, 1
        %v922 = vsel %vm308, %v920, %v921
        %v925 = vadd.f32 %v914, %v922
        %v926 = vadd.f32 %v915, %v921
        %v927 = vrot.slane %v914, 2
        %v928 = vrot.slane %v915, 2
        %v929 = vsel %vm316, %v927, %v928
        %v932 = vadd.f32 %v925, %v929
        %v933 = vadd.f32 %v926, %v928
        %934 = vrot.lane.b32.xlu0 %v932, 1
        %v935 = vpop.permute.xlu0 %934
        %936 = vrot.lane.b32.xlu0 %v933, 1
        %v937 = vpop.permute.xlu0 %936
        %v938 = vadd.f32 %v935, %v932
        %v939 = vadd.f32 %v937, %v933
        %940 = vrot.lane.b32.xlu0 %v932, 127
        %v941 = vpop.permute.xlu0 %940
        %942 = vrot.lane.b32.xlu0 %v933, 127
        %v943 = vpop.permute.xlu0 %942
        %v944 = vadd.f32 %v938, %v941
        %v945 = vadd.f32 %v939, %v943
        %v946 = vmul.f32 %v944, 2.0
        %v947 = vmul.f32 %v945, 2.0
        %v948 = vsub.f32 %v916, %v946
        %v949 = vsub.f32 %v917, %v947
        %vm950 = vmand %vm896, %vm452
        %vm951 = vmand %vm897, %vm452
        %vm952 = vmand %vm950, %vm455
        %vm953 = vmand %vm951, %vm455
        %v954 = vmul.f32 %v948, %v342
        %v955 = vmul.f32 %v949, %v343
        %v956 = vsel %vm952, %v954, -1e+30
        %v957 = vsel %vm953, %v955, -1e+30
        %958 = vrot.lane.b32.xlu0 %v819, 127
        %v959 = vpop.permute.xlu0 %958
        %960 = vrot.lane.b32.xlu0 %v820, 127
        %v961 = vpop.permute.xlu0 %960
        %v962 = vmul.f32 %v344, %v959
        %v963 = vmul.f32 %v345, %v961
        %964 = vrot.lane.b32.xlu0 %v827, 127
        %v965 = vpop.permute.xlu0 %964
        %966 = vrot.lane.b32.xlu0 %v828, 127
        %v967 = vpop.permute.xlu0 %966
        %v968 = vmul.f32 %v349, %v965
        %v969 = vmul.f32 %v350, %v967
        %v970 = vadd.f32 %v962, %v968
        %v971 = vadd.f32 %v963, %v969
        %972 = vrot.lane.b32.xlu0 %v837, 127
        %v973 = vpop.permute.xlu0 %972
        %974 = vrot.lane.b32.xlu0 %v838, 127
        %v975 = vpop.permute.xlu0 %974
        %v976 = vmul.f32 %v356, %v973
        %v977 = vmul.f32 %v357, %v975
        %v978 = vadd.f32 %v970, %v976
        %v979 = vadd.f32 %v971, %v977
        %980 = vrot.lane.b32.xlu0 %v849, 127
        %v981 = vpop.permute.xlu0 %980
        %982 = vrot.lane.b32.xlu0 %v848, 127
        %v983 = vpop.permute.xlu0 %982
        %v984 = vadd.f32 %v388, %v981
        %v985 = vadd.f32 %v389, %v983
        %v988 = vrot.slane %v978, 1
        %v989 = vrot.slane %v979, 1
        %v990 = vsel %vm308, %v988, %v989
        %v993 = vadd.f32 %v978, %v990
        %v994 = vadd.f32 %v979, %v989
        %v995 = vrot.slane %v978, 2
        %v996 = vrot.slane %v979, 2
        %v997 = vsel %vm316, %v995, %v996
        %v1000 = vadd.f32 %v993, %v997
        %v1001 = vadd.f32 %v994, %v996
        %1002 = vrot.lane.b32.xlu0 %v1000, 1
        %v1003 = vpop.permute.xlu0 %1002
        %1004 = vrot.lane.b32.xlu0 %v1001, 1
        %v1005 = vpop.permute.xlu0 %1004
        %v1006 = vadd.f32 %v1003, %v1000
        %v1007 = vadd.f32 %v1005, %v1001
        %1008 = vrot.lane.b32.xlu0 %v1000, 127
        %v1009 = vpop.permute.xlu0 %1008
        %1010 = vrot.lane.b32.xlu0 %v1001, 127
        %v1011 = vpop.permute.xlu0 %1010
        %v1012 = vadd.f32 %v1006, %v1009
        %v1013 = vadd.f32 %v1007, %v1011
        %v1014 = vmul.f32 %v1012, 2.0
        %v1015 = vmul.f32 %v1013, 2.0
        %v1016 = vsub.f32 %v984, %v1014
        %v1017 = vsub.f32 %v985, %v1015
        %vm1018 = vmand %vm896, %vm660
        %vm1019 = vmand %vm897, %vm660
        %vm1020 = vmand %vm1018, %vm663
        %vm1021 = vmand %vm1019, %vm663
        %v1022 = vmul.f32 %v1016, %v342
        %v1023 = vmul.f32 %v1017, %v343
        %v1024 = vsel %vm1020, %v1022, -1e+30
        %v1025 = vsel %vm1021, %v1023, -1e+30
        %v1026 = vstv %s303
        %v1027 = vadd.s32 %v1026, %v438
        %v1028 = vadd.s32 %v1027, 1
        %vm1029 = vcmp.lt.s32.totalorder %v1028, 2
        %v1030 = vsel %vm1029, %v1028, 2
        %v1031 = vsub.s32 %v1028, 18
        %v1032 = vadd.s32 %v1031, 1
        %vm1033 = vcmp.gt.s32.totalorder %v1032, 0
        %v1034 = vsel %vm1033, %v1032, 0
        %v1035 = vsub.s32 %v1030, %v1034
        %v1036 = vadd.s32 %v1035, 1
        %vm1037 = vcmp.lt.s32.totalorder %v659, 2
        %v1038 = vsel %vm1037, %v659, 2
        %v1039 = vsub.s32 %v659, 18
        %v1040 = vadd.s32 %v1039, 1
        %vm1041 = vcmp.gt.s32.totalorder %v1040, 0
        %v1042 = vsel %vm1041, %v1040, 0
        %v1043 = vsub.s32 %v1038, %v1042
        %v1044 = vadd.s32 %v1043, 1
        %v1045 = vmul.u32 %v1036, %v1044
        %v1046 = vcvt.s32.f32 %v1045
        %v1047 = vmax.f32 %v1046, 1.0
        %v1048 = vrcp.pop %v1047
        %v1049 = vmul.f32 1.0, %v1048
        %v1050 = vld [vmem:[%s302 + $0x3] sm:$0xff]
        %1051 = vst [vmem:[%s277] sm:$0xff] %v1050
        %s1052 = scalar_lea.vmem %s302, 16
        %v1053 = vld [vmem:[%s1052 + $0x3] sm:$0xff]
        %s1054 = scalar_lea.vmem %s277, 8 [#allocation2]
        %1055 = vst [vmem:[%s1054] sm:$0xff] %v1053
        %s1056 = scalar_lea.vmem %s302, 32
        %v1057 = vld [vmem:[%s1056 + $0x3] sm:$0xff]
        %s1058 = scalar_lea.vmem %s277, 16 [#allocation2]
        %1059 = vst [vmem:[%s1058] sm:$0xff] %v1057
        %s1060 = scalar_lea.vmem %s302, 48
        %v1061 = vld [vmem:[%s1060 + $0x3] sm:$0xff]
        %s1062 = scalar_lea.vmem %s277, 24 [#allocation2]
        %1063 = vst [vmem:[%s1062] sm:$0xff] %v1061
        %v1064 = vmax.f32 %v545, %v597
        %v1065 = vmax.f32 %v546, %v598
        %v1066 = vmax.f32 %v668, %v749
        %v1067 = vmax.f32 %v669, %v750
        %v1068 = vmax.f32 %v817, -1e+30
        %v1069 = vmax.f32 %v818, -1e+30
        %v1070 = vmax.f32 %v904, %v956
        %v1071 = vmax.f32 %v905, %v957
        %v1072 = vmax.f32 %v1064, %v1066
        %v1073 = vmax.f32 %v1065, %v1067
        %v1074 = vmax.f32 %v1068, %v1070
        %v1075 = vmax.f32 %v1069, %v1071
        %v1076 = vmax.f32 %v1072, %v1074
        %v1077 = vmax.f32 %v1073, %v1075
        %v1078 = vmax.f32 %v1076, %v1024
        %v1079 = vmax.f32 %v1077, %v1025
        %v1080 = vsub.f32 %v545, %v1078
        %v1081 = vsub.f32 %v546, %v1079
        %v1082 = vmul.f32 %v1080, 1.442695
        %v1083 = vpow.pop %v1082
        %v1084 = vmul.f32 %v1081, 1.442695
        %v1085 = vpow.pop %v1084
        %v1086 = vsub.f32 %v597, %v1078
        %v1087 = vsub.f32 %v598, %v1079
        %v1088 = vmul.f32 %v1086, 1.442695
        %v1089 = vpow.pop %v1088
        %v1090 = vmul.f32 %v1087, 1.442695
        %v1091 = vpow.pop %v1090
        %v1092 = vsub.f32 %v668, %v1078
        %v1093 = vsub.f32 %v669, %v1079
        %v1094 = vmul.f32 %v1092, 1.442695
        %v1095 = vpow.pop %v1094
        %v1096 = vmul.f32 %v1093, 1.442695
        %v1097 = vpow.pop %v1096
        %v1098 = vsub.f32 %v749, %v1078
        %v1099 = vsub.f32 %v750, %v1079
        %v1100 = vmul.f32 %v1098, 1.442695
        %v1101 = vpow.pop %v1100
        %v1102 = vmul.f32 %v1099, 1.442695
        %v1103 = vpow.pop %v1102
        %v1104 = vsub.f32 -1e+30, %v1078
        %v1105 = vsub.f32 -1e+30, %v1079
        %v1106 = vmul.f32 %v1104, 1.442695
        %v1107 = vpow.pop %v1106
        %v1108 = vmul.f32 %v1105, 1.442695
        %v1109 = vpow.pop %v1108
        %v1110 = vsub.f32 %v817, %v1078
        %v1111 = vsub.f32 %v818, %v1079
        %v1112 = vmul.f32 %v1110, 1.442695
        %v1113 = vpow.pop %v1112
        %v1114 = vmul.f32 %v1111, 1.442695
        %v1115 = vpow.pop %v1114
        %v1116 = vsub.f32 %v904, %v1078
        %v1117 = vsub.f32 %v905, %v1079
        %v1118 = vmul.f32 %v1116, 1.442695
        %v1119 = vpow.pop %v1118
        %v1120 = vmul.f32 %v1117, 1.442695
        %v1121 = vpow.pop %v1120
        %v1122 = vsub.f32 %v956, %v1078
        %v1123 = vsub.f32 %v957, %v1079
        %v1124 = vmul.f32 %v1122, 1.442695
        %v1125 = vpow.pop %v1124
        %v1126 = vmul.f32 %v1123, 1.442695
        %v1127 = vpow.pop %v1126
        %v1128 = vsub.f32 %v1024, %v1078
        %v1129 = vsub.f32 %v1025, %v1079
        %v1130 = vmul.f32 %v1128, 1.442695
        %v1131 = vpow.pop %v1130
        %v1132 = vmul.f32 %v1129, 1.442695
        %v1133 = vpow.pop %v1132
        %v1134 = vadd.f32 %v1083, %v1089
        %v1135 = vadd.f32 %v1085, %v1091
        %v1136 = vadd.f32 %v1095, %v1101
        %v1137 = vadd.f32 %v1097, %v1103
        %v1138 = vadd.f32 %v1107, %v1113
        %v1139 = vadd.f32 %v1109, %v1115
        %v1140 = vadd.f32 %v1119, %v1125
        %v1141 = vadd.f32 %v1121, %v1127
        %v1142 = vadd.f32 %v1134, %v1136
        %v1143 = vadd.f32 %v1135, %v1137
        %v1144 = vadd.f32 %v1138, %v1140
        %v1145 = vadd.f32 %v1139, %v1141
        %v1146 = vadd.f32 %v1142, %v1144
        %v1147 = vadd.f32 %v1143, %v1145
        %v1148 = vadd.f32 %v1146, %v1131
        %v1149 = vadd.f32 %v1147, %v1133
        %v1150 = vrcp.pop %v1148
        %v1151 = vmul.f32 1.0, %v1150
        %v1152 = vrcp.pop %v1149
        %v1153 = vmul.f32 1.0, %v1152
        %v1154 = vmul.f32 %v1083, %v1151
        %v1155 = vmul.f32 %v1085, %v1153
        %v1156 = vmul.f32 %v1089, %v1151
        %v1157 = vmul.f32 %v1091, %v1153
        %v1158 = vmul.f32 %v1095, %v1151
        %v1159 = vmul.f32 %v1097, %v1153
        %v1160 = vmul.f32 %v1101, %v1151
        %v1161 = vmul.f32 %v1103, %v1153
        %v1162 = vmul.f32 %v1107, %v1151
        %v1163 = vmul.f32 %v1109, %v1153
        %v1164 = vmul.f32 %v1113, %v1151
        %v1165 = vmul.f32 %v1115, %v1153
        %v1166 = vmul.f32 %v1119, %v1151
        %v1167 = vmul.f32 %v1121, %v1153
        %v1168 = vmul.f32 %v1125, %v1151
        %v1169 = vmul.f32 %v1127, %v1153
        %v1170 = vmul.f32 %v1131, %v1151
        %v1171 = vmul.f32 %v1133, %v1153
        %v1172 = vsub.f32 1.0, %v1154
        %v1173 = vsub.f32 1.0, %v1155
        %v1174 = vmax.f32 %v1172, 1e-12
        %v1175 = vmax.f32 %v1173, 1e-12
        %v1176 = vlog2.pop %v1174
        %v1177 = vmul.f32 %v1176, 0.6931472
        %v1178 = vlog2.pop %v1175
        %v1179 = vmul.f32 %v1178, 0.6931472
        %v1180 = vadd.f32 %v545, %v1177
        %v1181 = vadd.f32 %v546, %v1179
        %v1182 = vsub.f32 1.0, %v1156
        %v1183 = vsub.f32 1.0, %v1157
        %v1184 = vmax.f32 %v1182, 1e-12
        %v1185 = vmax.f32 %v1183, 1e-12
        %v1186 = vlog2.pop %v1184
        %v1187 = vmul.f32 %v1186, 0.6931472
        %v1188 = vlog2.pop %v1185
        %v1189 = vmul.f32 %v1188, 0.6931472
        %v1190 = vadd.f32 %v597, %v1187
        %v1191 = vadd.f32 %v598, %v1189
        %v1192 = vsub.f32 1.0, %v1158
        %v1193 = vsub.f32 1.0, %v1159
        %v1194 = vmax.f32 %v1192, 1e-12
        %v1195 = vmax.f32 %v1193, 1e-12
        %v1196 = vlog2.pop %v1194
        %v1197 = vmul.f32 %v1196, 0.6931472
        %v1198 = vlog2.pop %v1195
        %v1199 = vmul.f32 %v1198, 0.6931472
        %v1200 = vadd.f32 %v668, %v1197
        %v1201 = vadd.f32 %v669, %v1199
        %v1202 = vsub.f32 1.0, %v1160
        %v1203 = vsub.f32 1.0, %v1161
        %v1204 = vmax.f32 %v1202, 1e-12
        %v1205 = vmax.f32 %v1203, 1e-12
        %v1206 = vlog2.pop %v1204
        %v1207 = vmul.f32 %v1206, 0.6931472
        %v1208 = vlog2.pop %v1205
        %v1209 = vmul.f32 %v1208, 0.6931472
        %v1210 = vadd.f32 %v749, %v1207
        %v1211 = vadd.f32 %v750, %v1209
        %v1212 = vsub.f32 1.0, %v1162
        %v1213 = vsub.f32 1.0, %v1163
        %v1214 = vmax.f32 %v1212, 1e-12
        %v1215 = vmax.f32 %v1213, 1e-12
        %v1216 = vlog2.pop %v1214
        %v1217 = vmul.f32 %v1216, 0.6931472
        %v1218 = vlog2.pop %v1215
        %v1219 = vmul.f32 %v1218, 0.6931472
        %v1220 = vadd.f32 %v1217, -1e+30
        %v1221 = vadd.f32 %v1219, -1e+30
        %v1222 = vsub.f32 1.0, %v1164
        %v1223 = vsub.f32 1.0, %v1165
        %v1224 = vmax.f32 %v1222, 1e-12
        %v1225 = vmax.f32 %v1223, 1e-12
        %v1226 = vlog2.pop %v1224
        %v1227 = vmul.f32 %v1226, 0.6931472
        %v1228 = vlog2.pop %v1225
        %v1229 = vmul.f32 %v1228, 0.6931472
        %v1230 = vadd.f32 %v817, %v1227
        %v1231 = vadd.f32 %v818, %v1229
        %v1232 = vsub.f32 1.0, %v1166
        %v1233 = vsub.f32 1.0, %v1167
        %v1234 = vmax.f32 %v1232, 1e-12
        %v1235 = vmax.f32 %v1233, 1e-12
        %v1236 = vlog2.pop %v1234
        %v1237 = vmul.f32 %v1236, 0.6931472
        %v1238 = vlog2.pop %v1235
        %v1239 = vmul.f32 %v1238, 0.6931472
        %v1240 = vadd.f32 %v904, %v1237
        %v1241 = vadd.f32 %v905, %v1239
        %v1242 = vsub.f32 1.0, %v1168
        %v1243 = vsub.f32 1.0, %v1169
        %v1244 = vmax.f32 %v1242, 1e-12
        %v1245 = vmax.f32 %v1243, 1e-12
        %v1246 = vlog2.pop %v1244
        %v1247 = vmul.f32 %v1246, 0.6931472
        %v1248 = vlog2.pop %v1245
        %v1249 = vmul.f32 %v1248, 0.6931472
        %v1250 = vadd.f32 %v956, %v1247
        %v1251 = vadd.f32 %v957, %v1249
        %v1252 = vsub.f32 1.0, %v1170
        %v1253 = vsub.f32 1.0, %v1171
        %v1254 = vmax.f32 %v1252, 1e-12
        %v1255 = vmax.f32 %v1253, 1e-12
        %v1256 = vlog2.pop %v1254
        %v1257 = vmul.f32 %v1256, 0.6931472
        %v1258 = vlog2.pop %v1255
        %v1259 = vmul.f32 %v1258, 0.6931472
        %v1260 = vadd.f32 %v1024, %v1257
        %v1261 = vadd.f32 %v1025, %v1259
        %v1262 = vmul.f32 %v460, %v1154
        %v1263 = vmul.f32 %v461, %v1155
        %v1266 = vrot.slane %v1262, 1
        %v1267 = vrot.slane %v1263, 1
        %v1268 = vsel %vm308, %v1266, %v1267
        %v1270 = vadd.f32 %v1262, %v1268
        %v1271 = vrot.slane %v1262, 2
        %v1272 = vrot.slane %v1263, 2
        %v1273 = vsel %vm316, %v1271, %v1272
        %v1275 = vadd.f32 %v1270, %v1273
        %1276 = vrot.lane.b32.xlu0 %v1275, 1
        %v1277 = vpop.permute.xlu0 %1276
        %v1278 = vadd.f32 %v1277, %v1275
        %1279 = vrot.lane.b32.xlu0 %v1275, 127
        %v1280 = vpop.permute.xlu0 %1279
        %v1281 = vadd.f32 %v1278, %v1280
        %v1282 = vld [vmem:[%s282 + $0x2] sm:$0xff]
        %1283 = vrot.lane.b32.xlu0 %v1282, 1
        %v1284 = vpop.permute.xlu0 %1283
        %v1285 = vmul.f32 %v1284, %v1281
        %s1286 = scalar_lea.vmem %s282, 16
        %v1287 = vld [vmem:[%s1286 + $0x2] sm:$0xff]
        %1288 = vrot.lane.b32.xlu0 %v1287, 1
        %v1289 = vpop.permute.xlu0 %1288
        %v1290 = vmul.f32 %v1289, %v1281
        %s1291 = scalar_lea.vmem %s282, 32
        %v1292 = vld [vmem:[%s1291 + $0x2] sm:$0xff]
        %1293 = vrot.lane.b32.xlu0 %v1292, 1
        %v1294 = vpop.permute.xlu0 %1293
        %v1295 = vmul.f32 %v1294, %v1281
        %s1296 = scalar_lea.vmem %s282, 48
        %v1297 = vld [vmem:[%s1296 + $0x2] sm:$0xff]
        %1298 = vrot.lane.b32.xlu0 %v1297, 1
        %v1299 = vpop.permute.xlu0 %1298
        %v1300 = vmul.f32 %v1299, %v1281
        %v1301 = vmul.f32 %v460, %v1156
        %v1302 = vmul.f32 %v461, %v1157
        %v1305 = vrot.slane %v1301, 1
        %v1306 = vrot.slane %v1302, 1
        %v1307 = vsel %vm308, %v1305, %v1306
        %v1309 = vadd.f32 %v1301, %v1307
        %v1310 = vrot.slane %v1301, 2
        %v1311 = vrot.slane %v1302, 2
        %v1312 = vsel %vm316, %v1310, %v1311
        %v1314 = vadd.f32 %v1309, %v1312
        %1315 = vrot.lane.b32.xlu0 %v1314, 1
        %v1316 = vpop.permute.xlu0 %1315
        %v1317 = vadd.f32 %v1316, %v1314
        %1318 = vrot.lane.b32.xlu0 %v1314, 127
        %v1319 = vpop.permute.xlu0 %1318
        %v1320 = vadd.f32 %v1317, %v1319
        %v1321 = vmul.f32 %v1282, %v1320
        %v1322 = vadd.f32 %v1285, %v1321
        %v1323 = vmul.f32 %v1287, %v1320
        %v1324 = vadd.f32 %v1290, %v1323
        %v1325 = vmul.f32 %v1292, %v1320
        %v1326 = vadd.f32 %v1295, %v1325
        %v1327 = vmul.f32 %v1297, %v1320
        %v1328 = vadd.f32 %v1300, %v1327
        %v1329 = vmul.f32 %v460, %v1158
        %v1330 = vmul.f32 %v461, %v1159
        %v1333 = vrot.slane %v1329, 1
        %v1334 = vrot.slane %v1330, 1
        %v1335 = vsel %vm308, %v1333, %v1334
        %v1337 = vadd.f32 %v1329, %v1335
        %v1338 = vrot.slane %v1329, 2
        %v1339 = vrot.slane %v1330, 2
        %v1340 = vsel %vm316, %v1338, %v1339
        %v1342 = vadd.f32 %v1337, %v1340
        %1343 = vrot.lane.b32.xlu0 %v1342, 1
        %v1344 = vpop.permute.xlu0 %1343
        %v1345 = vadd.f32 %v1344, %v1342
        %1346 = vrot.lane.b32.xlu0 %v1342, 127
        %v1347 = vpop.permute.xlu0 %1346
        %v1348 = vadd.f32 %v1345, %v1347
        %1349 = vrot.lane.b32.xlu0 %v1282, 127
        %v1350 = vpop.permute.xlu0 %1349
        %v1351 = vmul.f32 %v1350, %v1348
        %v1352 = vadd.f32 %v1322, %v1351
        %1353 = vrot.lane.b32.xlu0 %v1287, 127
        %v1354 = vpop.permute.xlu0 %1353
        %v1355 = vmul.f32 %v1354, %v1348
        %v1356 = vadd.f32 %v1324, %v1355
        %1357 = vrot.lane.b32.xlu0 %v1292, 127
        %v1358 = vpop.permute.xlu0 %1357
        %v1359 = vmul.f32 %v1358, %v1348
        %v1360 = vadd.f32 %v1326, %v1359
        %1361 = vrot.lane.b32.xlu0 %v1297, 127
        %v1362 = vpop.permute.xlu0 %1361
        %v1363 = vmul.f32 %v1362, %v1348
        %v1364 = vadd.f32 %v1328, %v1363
        %v1365 = vmul.f32 %v460, %v1160
        %v1366 = vmul.f32 %v461, %v1161
        %v1369 = vrot.slane %v1365, 1
        %v1370 = vrot.slane %v1366, 1
        %v1371 = vsel %vm308, %v1369, %v1370
        %v1373 = vadd.f32 %v1365, %v1371
        %v1374 = vrot.slane %v1365, 2
        %v1375 = vrot.slane %v1366, 2
        %v1376 = vsel %vm316, %v1374, %v1375
        %v1378 = vadd.f32 %v1373, %v1376
        %1379 = vrot.lane.b32.xlu0 %v1378, 1
        %v1380 = vpop.permute.xlu0 %1379
        %v1381 = vadd.f32 %v1380, %v1378
        %1382 = vrot.lane.b32.xlu0 %v1378, 127
        %v1383 = vpop.permute.xlu0 %1382
        %v1384 = vadd.f32 %v1381, %v1383
        %v1385 = vld [vmem:[%s282 + $0x3] sm:$0xff]
        %1386 = vrot.lane.b32.xlu0 %v1385, 1
        %v1387 = vpop.permute.xlu0 %1386
        %v1388 = vmul.f32 %v1387, %v1384
        %v1389 = vadd.f32 %v1352, %v1388
        %v1390 = vld [vmem:[%s1286 + $0x3] sm:$0xff]
        %1391 = vrot.lane.b32.xlu0 %v1390, 1
        %v1392 = vpop.permute.xlu0 %1391
        %v1393 = vmul.f32 %v1392, %v1384
        %v1394 = vadd.f32 %v1356, %v1393
        %v1395 = vld [vmem:[%s1291 + $0x3] sm:$0xff]
        %1396 = vrot.lane.b32.xlu0 %v1395, 1
        %v1397 = vpop.permute.xlu0 %1396
        %v1398 = vmul.f32 %v1397, %v1384
        %v1399 = vadd.f32 %v1360, %v1398
        %v1400 = vld [vmem:[%s1296 + $0x3] sm:$0xff]
        %1401 = vrot.lane.b32.xlu0 %v1400, 1
        %v1402 = vpop.permute.xlu0 %1401
        %v1403 = vmul.f32 %v1402, %v1384
        %v1404 = vadd.f32 %v1364, %v1403
        %v1405 = vmul.f32 %v460, %v1164
        %v1406 = vmul.f32 %v461, %v1165
        %v1409 = vrot.slane %v1405, 1
        %v1410 = vrot.slane %v1406, 1
        %v1411 = vsel %vm308, %v1409, %v1410
        %v1413 = vadd.f32 %v1405, %v1411
        %v1414 = vrot.slane %v1405, 2
        %v1415 = vrot.slane %v1406, 2
        %v1416 = vsel %vm316, %v1414, %v1415
        %v1418 = vadd.f32 %v1413, %v1416
        %1419 = vrot.lane.b32.xlu0 %v1418, 1
        %v1420 = vpop.permute.xlu0 %1419
        %v1421 = vadd.f32 %v1420, %v1418
        %1422 = vrot.lane.b32.xlu0 %v1418, 127
        %v1423 = vpop.permute.xlu0 %1422
        %v1424 = vadd.f32 %v1421, %v1423
        %1425 = vrot.lane.b32.xlu0 %v1385, 127
        %v1426 = vpop.permute.xlu0 %1425
        %v1427 = vmul.f32 %v1426, %v1424
        %v1428 = vadd.f32 %v1389, %v1427
        %1429 = vrot.lane.b32.xlu0 %v1390, 127
        %v1430 = vpop.permute.xlu0 %1429
        %v1431 = vmul.f32 %v1430, %v1424
        %v1432 = vadd.f32 %v1394, %v1431
        %1433 = vrot.lane.b32.xlu0 %v1395, 127
        %v1434 = vpop.permute.xlu0 %1433
        %v1435 = vmul.f32 %v1434, %v1424
        %v1436 = vadd.f32 %v1399, %v1435
        %1437 = vrot.lane.b32.xlu0 %v1400, 127
        %v1438 = vpop.permute.xlu0 %1437
        %v1439 = vmul.f32 %v1438, %v1424
        %v1440 = vadd.f32 %v1404, %v1439
        %v1441 = vmul.f32 %v460, %v1166
        %v1442 = vmul.f32 %v461, %v1167
        %v1445 = vrot.slane %v1441, 1
        %v1446 = vrot.slane %v1442, 1
        %v1447 = vsel %vm308, %v1445, %v1446
        %v1449 = vadd.f32 %v1441, %v1447
        %v1450 = vrot.slane %v1441, 2
        %v1451 = vrot.slane %v1442, 2
        %v1452 = vsel %vm316, %v1450, %v1451
        %v1454 = vadd.f32 %v1449, %v1452
        %1455 = vrot.lane.b32.xlu0 %v1454, 1
        %v1456 = vpop.permute.xlu0 %1455
        %v1457 = vadd.f32 %v1456, %v1454
        %1458 = vrot.lane.b32.xlu0 %v1454, 127
        %v1459 = vpop.permute.xlu0 %1458
        %v1460 = vadd.f32 %v1457, %v1459
        %v1461 = vld [vmem:[%s282 + $0x4] sm:$0xff]
        %1462 = vrot.lane.b32.xlu0 %v1461, 1
        %v1463 = vpop.permute.xlu0 %1462
        %v1464 = vmul.f32 %v1463, %v1460
        %v1465 = vadd.f32 %v1428, %v1464
        %v1466 = vld [vmem:[%s1286 + $0x4] sm:$0xff]
        %1467 = vrot.lane.b32.xlu0 %v1466, 1
        %v1468 = vpop.permute.xlu0 %1467
        %v1469 = vmul.f32 %v1468, %v1460
        %v1470 = vadd.f32 %v1432, %v1469
        %v1471 = vld [vmem:[%s1291 + $0x4] sm:$0xff]
        %1472 = vrot.lane.b32.xlu0 %v1471, 1
        %v1473 = vpop.permute.xlu0 %1472
        %v1474 = vmul.f32 %v1473, %v1460
        %v1475 = vadd.f32 %v1436, %v1474
        %v1476 = vld [vmem:[%s1296 + $0x4] sm:$0xff]
        %1477 = vrot.lane.b32.xlu0 %v1476, 1
        %v1478 = vpop.permute.xlu0 %1477
        %v1479 = vmul.f32 %v1478, %v1460
        %v1480 = vadd.f32 %v1440, %v1479
        %v1481 = vmul.f32 %v460, %v1168
        %v1482 = vmul.f32 %v461, %v1169
        %v1485 = vrot.slane %v1481, 1
        %v1486 = vrot.slane %v1482, 1
        %v1487 = vsel %vm308, %v1485, %v1486
        %v1489 = vadd.f32 %v1481, %v1487
        %v1490 = vrot.slane %v1481, 2
        %v1491 = vrot.slane %v1482, 2
        %v1492 = vsel %vm316, %v1490, %v1491
        %v1494 = vadd.f32 %v1489, %v1492
        %1495 = vrot.lane.b32.xlu0 %v1494, 1
        %v1496 = vpop.permute.xlu0 %1495
        %v1497 = vadd.f32 %v1496, %v1494
        %1498 = vrot.lane.b32.xlu0 %v1494, 127
        %v1499 = vpop.permute.xlu0 %1498
        %v1500 = vadd.f32 %v1497, %v1499
        %v1501 = vmul.f32 %v1461, %v1500
        %v1502 = vadd.f32 %v1465, %v1501
        %v1503 = vmul.f32 %v1466, %v1500
        %v1504 = vadd.f32 %v1470, %v1503
        %v1505 = vmul.f32 %v1471, %v1500
        %v1506 = vadd.f32 %v1475, %v1505
        %v1507 = vmul.f32 %v1476, %v1500
        %v1508 = vadd.f32 %v1480, %v1507
        %v1509 = vmul.f32 %v460, %v1170
        %v1510 = vmul.f32 %v461, %v1171
        %v1513 = vrot.slane %v1509, 1
        %v1514 = vrot.slane %v1510, 1
        %v1515 = vsel %vm308, %v1513, %v1514
        %v1517 = vadd.f32 %v1509, %v1515
        %v1518 = vrot.slane %v1509, 2
        %v1519 = vrot.slane %v1510, 2
        %v1520 = vsel %vm316, %v1518, %v1519
        %v1522 = vadd.f32 %v1517, %v1520
        %1523 = vrot.lane.b32.xlu0 %v1522, 1
        %v1524 = vpop.permute.xlu0 %1523
        %v1525 = vadd.f32 %v1524, %v1522
        %1526 = vrot.lane.b32.xlu0 %v1522, 127
        %v1527 = vpop.permute.xlu0 %1526
        %v1528 = vadd.f32 %v1525, %v1527
        %1529 = vrot.lane.b32.xlu0 %v1461, 127
        %v1530 = vpop.permute.xlu0 %1529
        %v1531 = vmul.f32 %v1530, %v1528
        %v1532 = vadd.f32 %v1502, %v1531
        %1533 = vrot.lane.b32.xlu0 %v1466, 127
        %v1534 = vpop.permute.xlu0 %1533
        %v1535 = vmul.f32 %v1534, %v1528
        %v1536 = vadd.f32 %v1504, %v1535
        %1537 = vrot.lane.b32.xlu0 %v1471, 127
        %v1538 = vpop.permute.xlu0 %1537
        %v1539 = vmul.f32 %v1538, %v1528
        %v1540 = vadd.f32 %v1506, %v1539
        %1541 = vrot.lane.b32.xlu0 %v1476, 127
        %v1542 = vpop.permute.xlu0 %1541
        %v1543 = vmul.f32 %v1542, %v1528
        %v1544 = vadd.f32 %v1508, %v1543
        %v1545 = vmul.f32 %v1532, %v1049
        %v1546 = vld [vmem:[%s302 + $0x3] sm:$0xff]
        %v1547 = vsub.f32 %v1545, %v1546
        %s1548 = scalar_lea.vmem %s277, 32 [#allocation2]
        %1549 = vst [vmem:[%s1548] sm:$0xff] %v1547
        %v1550 = vmul.f32 %v1536, %v1049
        %v1551 = vld [vmem:[%s1052 + $0x3] sm:$0xff]
        %v1552 = vsub.f32 %v1550, %v1551
        %s1553 = scalar_lea.vmem %s277, 40 [#allocation2]
        %1554 = vst [vmem:[%s1553] sm:$0xff] %v1552
        %v1555 = vmul.f32 %v1540, %v1049
        %v1556 = vld [vmem:[%s1056 + $0x3] sm:$0xff]
        %v1557 = vsub.f32 %v1555, %v1556
        %s1558 = scalar_lea.vmem %s277, 48 [#allocation2]
        %1559 = vst [vmem:[%s1558] sm:$0xff] %v1557
        %v1560 = vmul.f32 %v1544, %v1049
        %v1561 = vld [vmem:[%s1060 + $0x3] sm:$0xff]
        %v1562 = vsub.f32 %v1560, %v1561
        %s1563 = scalar_lea.vmem %s277, 56 [#allocation2]
        %1564 = vst [vmem:[%s1563] sm:$0xff] %v1562
        %v1565 = vmax.f32 %v1180, %v1190
        %v1566 = vmax.f32 %v1181, %v1191
        %v1567 = vmax.f32 %v1200, %v1210
        %v1568 = vmax.f32 %v1201, %v1211
        %v1569 = vmax.f32 %v1220, %v1230
        %v1570 = vmax.f32 %v1221, %v1231
        %v1571 = vmax.f32 %v1240, %v1250
        %v1572 = vmax.f32 %v1241, %v1251
        %v1573 = vmax.f32 %v1565, %v1567
        %v1574 = vmax.f32 %v1566, %v1568
        %v1575 = vmax.f32 %v1569, %v1571
        %v1576 = vmax.f32 %v1570, %v1572
        %v1577 = vmax.f32 %v1573, %v1575
        %v1578 = vmax.f32 %v1574, %v1576
        %v1579 = vmax.f32 %v1577, %v1260
        %v1580 = vmax.f32 %v1578, %v1261
        %v1581 = vsub.f32 %v1180, %v1579
        %v1582 = vsub.f32 %v1181, %v1580
        %v1583 = vmul.f32 %v1581, 1.442695
        %v1584 = vpow.pop %v1583
        %v1585 = vmul.f32 %v1582, 1.442695
        %v1586 = vpow.pop %v1585
        %v1587 = vsub.f32 %v1190, %v1579
        %v1588 = vsub.f32 %v1191, %v1580
        %v1589 = vmul.f32 %v1587, 1.442695
        %v1590 = vpow.pop %v1589
        %v1591 = vmul.f32 %v1588, 1.442695
        %v1592 = vpow.pop %v1591
        %v1593 = vsub.f32 %v1200, %v1579
        %v1594 = vsub.f32 %v1201, %v1580
        %v1595 = vmul.f32 %v1593, 1.442695
        %v1596 = vpow.pop %v1595
        %v1597 = vmul.f32 %v1594, 1.442695
        %v1598 = vpow.pop %v1597
        %v1599 = vsub.f32 %v1210, %v1579
        %v1600 = vsub.f32 %v1211, %v1580
        %v1601 = vmul.f32 %v1599, 1.442695
        %v1602 = vpow.pop %v1601
        %v1603 = vmul.f32 %v1600, 1.442695
        %v1604 = vpow.pop %v1603
        %v1605 = vsub.f32 %v1220, %v1579
        %v1606 = vsub.f32 %v1221, %v1580
        %v1607 = vmul.f32 %v1605, 1.442695
        %v1608 = vpow.pop %v1607
        %v1609 = vmul.f32 %v1606, 1.442695
        %v1610 = vpow.pop %v1609
        %v1611 = vsub.f32 %v1230, %v1579
        %v1612 = vsub.f32 %v1231, %v1580
        %v1613 = vmul.f32 %v1611, 1.442695
        %v1614 = vpow.pop %v1613
        %v1615 = vmul.f32 %v1612, 1.442695
        %v1616 = vpow.pop %v1615
        %v1617 = vsub.f32 %v1240, %v1579
        %v1618 = vsub.f32 %v1241, %v1580
        %v1619 = vmul.f32 %v1617, 1.442695
        %v1620 = vpow.pop %v1619
        %v1621 = vmul.f32 %v1618, 1.442695
        %v1622 = vpow.pop %v1621
        %v1623 = vsub.f32 %v1250, %v1579
        %v1624 = vsub.f32 %v1251, %v1580
        %v1625 = vmul.f32 %v1623, 1.442695
        %v1626 = vpow.pop %v1625
        %v1627 = vmul.f32 %v1624, 1.442695
        %v1628 = vpow.pop %v1627
        %v1629 = vsub.f32 %v1260, %v1579
        %v1630 = vsub.f32 %v1261, %v1580
        %v1631 = vmul.f32 %v1629, 1.442695
        %v1632 = vpow.pop %v1631
        %v1633 = vmul.f32 %v1630, 1.442695
        %v1634 = vpow.pop %v1633
        %v1635 = vadd.f32 %v1584, %v1590
        %v1636 = vadd.f32 %v1586, %v1592
        %v1637 = vadd.f32 %v1596, %v1602
        %v1638 = vadd.f32 %v1598, %v1604
        %v1639 = vadd.f32 %v1608, %v1614
        %v1640 = vadd.f32 %v1610, %v1616
        %v1641 = vadd.f32 %v1620, %v1626
        %v1642 = vadd.f32 %v1622, %v1628
        %v1643 = vadd.f32 %v1635, %v1637
        %v1644 = vadd.f32 %v1636, %v1638
        %v1645 = vadd.f32 %v1639, %v1641
        %v1646 = vadd.f32 %v1640, %v1642
        %v1647 = vadd.f32 %v1643, %v1645
        %v1648 = vadd.f32 %v1644, %v1646
        %v1649 = vadd.f32 %v1647, %v1632
        %v1650 = vadd.f32 %v1648, %v1634
        %v1651 = vrcp.pop %v1649
        %v1652 = vmul.f32 1.0, %v1651
        %v1653 = vrcp.pop %v1650
        %v1654 = vmul.f32 1.0, %v1653
        %v1655 = vmul.f32 %v1584, %v1652
        %v1656 = vmul.f32 %v1586, %v1654
        %v1657 = vmul.f32 %v1590, %v1652
        %v1658 = vmul.f32 %v1592, %v1654
        %v1659 = vmul.f32 %v1596, %v1652
        %v1660 = vmul.f32 %v1598, %v1654
        %v1661 = vmul.f32 %v1602, %v1652
        %v1662 = vmul.f32 %v1604, %v1654
        %v1663 = vmul.f32 %v1608, %v1652
        %v1664 = vmul.f32 %v1610, %v1654
        %v1665 = vmul.f32 %v1614, %v1652
        %v1666 = vmul.f32 %v1616, %v1654
        %v1667 = vmul.f32 %v1620, %v1652
        %v1668 = vmul.f32 %v1622, %v1654
        %v1669 = vmul.f32 %v1626, %v1652
        %v1670 = vmul.f32 %v1628, %v1654
        %v1671 = vmul.f32 %v1632, %v1652
        %v1672 = vmul.f32 %v1634, %v1654
        %v1673 = vsub.f32 1.0, %v1655
        %v1674 = vsub.f32 1.0, %v1656
        %v1675 = vmax.f32 %v1673, 1e-12
        %v1676 = vmax.f32 %v1674, 1e-12
        %v1677 = vlog2.pop %v1675
        %v1678 = vmul.f32 %v1677, 0.6931472
        %v1679 = vlog2.pop %v1676
        %v1680 = vmul.f32 %v1679, 0.6931472
        %v1681 = vadd.f32 %v1180, %v1678
        %v1682 = vadd.f32 %v1181, %v1680
        %v1683 = vsub.f32 1.0, %v1657
        %v1684 = vsub.f32 1.0, %v1658
        %v1685 = vmax.f32 %v1683, 1e-12
        %v1686 = vmax.f32 %v1684, 1e-12
        %v1687 = vlog2.pop %v1685
        %v1688 = vmul.f32 %v1687, 0.6931472
        %v1689 = vlog2.pop %v1686
        %v1690 = vmul.f32 %v1689, 0.6931472
        %v1691 = vadd.f32 %v1190, %v1688
        %v1692 = vadd.f32 %v1191, %v1690
        %v1693 = vsub.f32 1.0, %v1659
        %v1694 = vsub.f32 1.0, %v1660
        %v1695 = vmax.f32 %v1693, 1e-12
        %v1696 = vmax.f32 %v1694, 1e-12
        %v1697 = vlog2.pop %v1695
        %v1698 = vmul.f32 %v1697, 0.6931472
        %v1699 = vlog2.pop %v1696
        %v1700 = vmul.f32 %v1699, 0.6931472
        %v1701 = vadd.f32 %v1200, %v1698
        %v1702 = vadd.f32 %v1201, %v1700
        %v1703 = vsub.f32 1.0, %v1661
        %v1704 = vsub.f32 1.0, %v1662
        %v1705 = vmax.f32 %v1703, 1e-12
        %v1706 = vmax.f32 %v1704, 1e-12
        %v1707 = vlog2.pop %v1705
        %v1708 = vmul.f32 %v1707, 0.6931472
        %v1709 = vlog2.pop %v1706
        %v1710 = vmul.f32 %v1709, 0.6931472
        %v1711 = vadd.f32 %v1210, %v1708
        %v1712 = vadd.f32 %v1211, %v1710
        %v1713 = vsub.f32 1.0, %v1663
        %v1714 = vsub.f32 1.0, %v1664
        %v1715 = vmax.f32 %v1713, 1e-12
        %v1716 = vmax.f32 %v1714, 1e-12
        %v1717 = vlog2.pop %v1715
        %v1718 = vmul.f32 %v1717, 0.6931472
        %v1719 = vlog2.pop %v1716
        %v1720 = vmul.f32 %v1719, 0.6931472
        %v1721 = vadd.f32 %v1220, %v1718
        %v1722 = vadd.f32 %v1221, %v1720
        %v1723 = vsub.f32 1.0, %v1665
        %v1724 = vsub.f32 1.0, %v1666
        %v1725 = vmax.f32 %v1723, 1e-12
        %v1726 = vmax.f32 %v1724, 1e-12
        %v1727 = vlog2.pop %v1725
        %v1728 = vmul.f32 %v1727, 0.6931472
        %v1729 = vlog2.pop %v1726
        %v1730 = vmul.f32 %v1729, 0.6931472
        %v1731 = vadd.f32 %v1230, %v1728
        %v1732 = vadd.f32 %v1231, %v1730
        %v1733 = vsub.f32 1.0, %v1667
        %v1734 = vsub.f32 1.0, %v1668
        %v1735 = vmax.f32 %v1733, 1e-12
        %v1736 = vmax.f32 %v1734, 1e-12
        %v1737 = vlog2.pop %v1735
        %v1738 = vmul.f32 %v1737, 0.6931472
        %v1739 = vlog2.pop %v1736
        %v1740 = vmul.f32 %v1739, 0.6931472
        %v1741 = vadd.f32 %v1240, %v1738
        %v1742 = vadd.f32 %v1241, %v1740
        %v1743 = vsub.f32 1.0, %v1669
        %v1744 = vsub.f32 1.0, %v1670
        %v1745 = vmax.f32 %v1743, 1e-12
        %v1746 = vmax.f32 %v1744, 1e-12
        %v1747 = vlog2.pop %v1745
        %v1748 = vmul.f32 %v1747, 0.6931472
        %v1749 = vlog2.pop %v1746
        %v1750 = vmul.f32 %v1749, 0.6931472
        %v1751 = vadd.f32 %v1250, %v1748
        %v1752 = vadd.f32 %v1251, %v1750
        %v1753 = vsub.f32 1.0, %v1671
        %v1754 = vsub.f32 1.0, %v1672
        %v1755 = vmax.f32 %v1753, 1e-12
        %v1756 = vmax.f32 %v1754, 1e-12
        %v1757 = vlog2.pop %v1755
        %v1758 = vmul.f32 %v1757, 0.6931472
        %v1759 = vlog2.pop %v1756
        %v1760 = vmul.f32 %v1759, 0.6931472
        %v1761 = vadd.f32 %v1260, %v1758
        %v1762 = vadd.f32 %v1261, %v1760
        %v1763 = vmul.f32 %v460, %v1655
        %v1764 = vmul.f32 %v461, %v1656
        %v1767 = vrot.slane %v1763, 1
        %v1768 = vrot.slane %v1764, 1
        %v1769 = vsel %vm308, %v1767, %v1768
        %v1771 = vadd.f32 %v1763, %v1769
        %v1772 = vrot.slane %v1763, 2
        %v1773 = vrot.slane %v1764, 2
        %v1774 = vsel %vm316, %v1772, %v1773
        %v1776 = vadd.f32 %v1771, %v1774
        %1777 = vrot.lane.b32.xlu0 %v1776, 1
        %v1778 = vpop.permute.xlu0 %1777
        %v1779 = vadd.f32 %v1778, %v1776
        %1780 = vrot.lane.b32.xlu0 %v1776, 127
        %v1781 = vpop.permute.xlu0 %1780
        %v1782 = vadd.f32 %v1779, %v1781
        %v1783 = vld [vmem:[%s282 + $0x2] sm:$0xff]
        %1784 = vrot.lane.b32.xlu0 %v1783, 1
        %v1785 = vpop.permute.xlu0 %1784
        %v1786 = vmul.f32 %v1785, %v1782
        %v1787 = vld [vmem:[%s1286 + $0x2] sm:$0xff]
        %1788 = vrot.lane.b32.xlu0 %v1787, 1
        %v1789 = vpop.permute.xlu0 %1788
        %v1790 = vmul.f32 %v1789, %v1782
        %v1791 = vld [vmem:[%s1291 + $0x2] sm:$0xff]
        %1792 = vrot.lane.b32.xlu0 %v1791, 1
        %v1793 = vpop.permute.xlu0 %1792
        %v1794 = vmul.f32 %v1793, %v1782
        %v1795 = vld [vmem:[%s1296 + $0x2] sm:$0xff]
        %1796 = vrot.lane.b32.xlu0 %v1795, 1
        %v1797 = vpop.permute.xlu0 %1796
        %v1798 = vmul.f32 %v1797, %v1782
        %v1799 = vmul.f32 %v460, %v1657
        %v1800 = vmul.f32 %v461, %v1658
        %v1803 = vrot.slane %v1799, 1
        %v1804 = vrot.slane %v1800, 1
        %v1805 = vsel %vm308, %v1803, %v1804
        %v1807 = vadd.f32 %v1799, %v1805
        %v1808 = vrot.slane %v1799, 2
        %v1809 = vrot.slane %v1800, 2
        %v1810 = vsel %vm316, %v1808, %v1809
        %v1812 = vadd.f32 %v1807, %v1810
        %1813 = vrot.lane.b32.xlu0 %v1812, 1
        %v1814 = vpop.permute.xlu0 %1813
        %v1815 = vadd.f32 %v1814, %v1812
        %1816 = vrot.lane.b32.xlu0 %v1812, 127
        %v1817 = vpop.permute.xlu0 %1816
        %v1818 = vadd.f32 %v1815, %v1817
        %v1819 = vmul.f32 %v1783, %v1818
        %v1820 = vadd.f32 %v1786, %v1819
        %v1821 = vmul.f32 %v1787, %v1818
        %v1822 = vadd.f32 %v1790, %v1821
        %v1823 = vmul.f32 %v1791, %v1818
        %v1824 = vadd.f32 %v1794, %v1823
        %v1825 = vmul.f32 %v1795, %v1818
        %v1826 = vadd.f32 %v1798, %v1825
        %v1827 = vmul.f32 %v460, %v1659
        %v1828 = vmul.f32 %v461, %v1660
        %v1831 = vrot.slane %v1827, 1
        %v1832 = vrot.slane %v1828, 1
        %v1833 = vsel %vm308, %v1831, %v1832
        %v1835 = vadd.f32 %v1827, %v1833
        %v1836 = vrot.slane %v1827, 2
        %v1837 = vrot.slane %v1828, 2
        %v1838 = vsel %vm316, %v1836, %v1837
        %v1840 = vadd.f32 %v1835, %v1838
        %1841 = vrot.lane.b32.xlu0 %v1840, 1
        %v1842 = vpop.permute.xlu0 %1841
        %v1843 = vadd.f32 %v1842, %v1840
        %1844 = vrot.lane.b32.xlu0 %v1840, 127
        %v1845 = vpop.permute.xlu0 %1844
        %v1846 = vadd.f32 %v1843, %v1845
        %1847 = vrot.lane.b32.xlu0 %v1783, 127
        %v1848 = vpop.permute.xlu0 %1847
        %v1849 = vmul.f32 %v1848, %v1846
        %v1850 = vadd.f32 %v1820, %v1849
        %1851 = vrot.lane.b32.xlu0 %v1787, 127
        %v1852 = vpop.permute.xlu0 %1851
        %v1853 = vmul.f32 %v1852, %v1846
        %v1854 = vadd.f32 %v1822, %v1853
        %1855 = vrot.lane.b32.xlu0 %v1791, 127
        %v1856 = vpop.permute.xlu0 %1855
        %v1857 = vmul.f32 %v1856, %v1846
        %v1858 = vadd.f32 %v1824, %v1857
        %1859 = vrot.lane.b32.xlu0 %v1795, 127
        %v1860 = vpop.permute.xlu0 %1859
        %v1861 = vmul.f32 %v1860, %v1846
        %v1862 = vadd.f32 %v1826, %v1861
        %v1863 = vmul.f32 %v460, %v1661
        %v1864 = vmul.f32 %v461, %v1662
        %v1867 = vrot.slane %v1863, 1
        %v1868 = vrot.slane %v1864, 1
        %v1869 = vsel %vm308, %v1867, %v1868
        %v1871 = vadd.f32 %v1863, %v1869
        %v1872 = vrot.slane %v1863, 2
        %v1873 = vrot.slane %v1864, 2
        %v1874 = vsel %vm316, %v1872, %v1873
        %v1876 = vadd.f32 %v1871, %v1874
        %1877 = vrot.lane.b32.xlu0 %v1876, 1
        %v1878 = vpop.permute.xlu0 %1877
        %v1879 = vadd.f32 %v1878, %v1876
        %1880 = vrot.lane.b32.xlu0 %v1876, 127
        %v1881 = vpop.permute.xlu0 %1880
        %v1882 = vadd.f32 %v1879, %v1881
        %v1883 = vld [vmem:[%s282 + $0x3] sm:$0xff]
        %1884 = vrot.lane.b32.xlu0 %v1883, 1
        %v1885 = vpop.permute.xlu0 %1884
        %v1886 = vmul.f32 %v1885, %v1882
        %v1887 = vadd.f32 %v1850, %v1886
        %v1888 = vld [vmem:[%s1286 + $0x3] sm:$0xff]
        %1889 = vrot.lane.b32.xlu0 %v1888, 1
        %v1890 = vpop.permute.xlu0 %1889
        %v1891 = vmul.f32 %v1890, %v1882
        %v1892 = vadd.f32 %v1854, %v1891
        %v1893 = vld [vmem:[%s1291 + $0x3] sm:$0xff]
        %1894 = vrot.lane.b32.xlu0 %v1893, 1
        %v1895 = vpop.permute.xlu0 %1894
        %v1896 = vmul.f32 %v1895, %v1882
        %v1897 = vadd.f32 %v1858, %v1896
        %v1898 = vld [vmem:[%s1296 + $0x3] sm:$0xff]
        %1899 = vrot.lane.b32.xlu0 %v1898, 1
        %v1900 = vpop.permute.xlu0 %1899
        %v1901 = vmul.f32 %v1900, %v1882
        %v1902 = vadd.f32 %v1862, %v1901
        %v1903 = vmul.f32 %v460, %v1665
        %v1904 = vmul.f32 %v461, %v1666
        %v1907 = vrot.slane %v1903, 1
        %v1908 = vrot.slane %v1904, 1
        %v1909 = vsel %vm308, %v1907, %v1908
        %v1911 = vadd.f32 %v1903, %v1909
        %v1912 = vrot.slane %v1903, 2
        %v1913 = vrot.slane %v1904, 2
        %v1914 = vsel %vm316, %v1912, %v1913
        %v1916 = vadd.f32 %v1911, %v1914
        %1917 = vrot.lane.b32.xlu0 %v1916, 1
        %v1918 = vpop.permute.xlu0 %1917
        %v1919 = vadd.f32 %v1918, %v1916
        %1920 = vrot.lane.b32.xlu0 %v1916, 127
        %v1921 = vpop.permute.xlu0 %1920
        %v1922 = vadd.f32 %v1919, %v1921
        %1923 = vrot.lane.b32.xlu0 %v1883, 127
        %v1924 = vpop.permute.xlu0 %1923
        %v1925 = vmul.f32 %v1924, %v1922
        %v1926 = vadd.f32 %v1887, %v1925
        %1927 = vrot.lane.b32.xlu0 %v1888, 127
        %v1928 = vpop.permute.xlu0 %1927
        %v1929 = vmul.f32 %v1928, %v1922
        %v1930 = vadd.f32 %v1892, %v1929
        %1931 = vrot.lane.b32.xlu0 %v1893, 127
        %v1932 = vpop.permute.xlu0 %1931
        %v1933 = vmul.f32 %v1932, %v1922
        %v1934 = vadd.f32 %v1897, %v1933
        %1935 = vrot.lane.b32.xlu0 %v1898, 127
        %v1936 = vpop.permute.xlu0 %1935
        %v1937 = vmul.f32 %v1936, %v1922
        %v1938 = vadd.f32 %v1902, %v1937
        %v1939 = vmul.f32 %v460, %v1667
        %v1940 = vmul.f32 %v461, %v1668
        %v1943 = vrot.slane %v1939, 1
        %v1944 = vrot.slane %v1940, 1
        %v1945 = vsel %vm308, %v1943, %v1944
        %v1947 = vadd.f32 %v1939, %v1945
        %v1948 = vrot.slane %v1939, 2
        %v1949 = vrot.slane %v1940, 2
        %v1950 = vsel %vm316, %v1948, %v1949
        %v1952 = vadd.f32 %v1947, %v1950
        %1953 = vrot.lane.b32.xlu0 %v1952, 1
        %v1954 = vpop.permute.xlu0 %1953
        %v1955 = vadd.f32 %v1954, %v1952
        %1956 = vrot.lane.b32.xlu0 %v1952, 127
        %v1957 = vpop.permute.xlu0 %1956
        %v1958 = vadd.f32 %v1955, %v1957
        %v1959 = vld [vmem:[%s282 + $0x4] sm:$0xff]
        %1960 = vrot.lane.b32.xlu0 %v1959, 1
        %v1961 = vpop.permute.xlu0 %1960
        %v1962 = vmul.f32 %v1961, %v1958
        %v1963 = vadd.f32 %v1926, %v1962
        %v1964 = vld [vmem:[%s1286 + $0x4] sm:$0xff]
        %1965 = vrot.lane.b32.xlu0 %v1964, 1
        %v1966 = vpop.permute.xlu0 %1965
        %v1967 = vmul.f32 %v1966, %v1958
        %v1968 = vadd.f32 %v1930, %v1967
        %v1969 = vld [vmem:[%s1291 + $0x4] sm:$0xff]
        %1970 = vrot.lane.b32.xlu0 %v1969, 1
        %v1971 = vpop.permute.xlu0 %1970
        %v1972 = vmul.f32 %v1971, %v1958
        %v1973 = vadd.f32 %v1934, %v1972
        %v1974 = vld [vmem:[%s1296 + $0x4] sm:$0xff]
        %1975 = vrot.lane.b32.xlu0 %v1974, 1
        %v1976 = vpop.permute.xlu0 %1975
        %v1977 = vmul.f32 %v1976, %v1958
        %v1978 = vadd.f32 %v1938, %v1977
        %v1979 = vmul.f32 %v460, %v1669
        %v1980 = vmul.f32 %v461, %v1670
        %v1983 = vrot.slane %v1979, 1
        %v1984 = vrot.slane %v1980, 1
        %v1985 = vsel %vm308, %v1983, %v1984
        %v1987 = vadd.f32 %v1979, %v1985
        %v1988 = vrot.slane %v1979, 2
        %v1989 = vrot.slane %v1980, 2
        %v1990 = vsel %vm316, %v1988, %v1989
        %v1992 = vadd.f32 %v1987, %v1990
        %1993 = vrot.lane.b32.xlu0 %v1992, 1
        %v1994 = vpop.permute.xlu0 %1993
        %v1995 = vadd.f32 %v1994, %v1992
        %1996 = vrot.lane.b32.xlu0 %v1992, 127
        %v1997 = vpop.permute.xlu0 %1996
        %v1998 = vadd.f32 %v1995, %v1997
        %v1999 = vmul.f32 %v1959, %v1998
        %v2000 = vadd.f32 %v1963, %v1999
        %v2001 = vmul.f32 %v1964, %v1998
        %v2002 = vadd.f32 %v1968, %v2001
        %v2003 = vmul.f32 %v1969, %v1998
        %v2004 = vadd.f32 %v1973, %v2003
        %v2005 = vmul.f32 %v1974, %v1998
        %v2006 = vadd.f32 %v1978, %v2005
        %v2007 = vmul.f32 %v460, %v1671
        %v2008 = vmul.f32 %v461, %v1672
        %v2011 = vrot.slane %v2007, 1
        %v2012 = vrot.slane %v2008, 1
        %v2013 = vsel %vm308, %v2011, %v2012
        %v2015 = vadd.f32 %v2007, %v2013
        %v2016 = vrot.slane %v2007, 2
        %v2017 = vrot.slane %v2008, 2
        %v2018 = vsel %vm316, %v2016, %v2017
        %v2020 = vadd.f32 %v2015, %v2018
        %2021 = vrot.lane.b32.xlu0 %v2020, 1
        %v2022 = vpop.permute.xlu0 %2021
        %v2023 = vadd.f32 %v2022, %v2020
        %2024 = vrot.lane.b32.xlu0 %v2020, 127
        %v2025 = vpop.permute.xlu0 %2024
        %v2026 = vadd.f32 %v2023, %v2025
        %2027 = vrot.lane.b32.xlu0 %v1959, 127
        %v2028 = vpop.permute.xlu0 %2027
        %v2029 = vmul.f32 %v2028, %v2026
        %v2030 = vadd.f32 %v2000, %v2029
        %2031 = vrot.lane.b32.xlu0 %v1964, 127
        %v2032 = vpop.permute.xlu0 %2031
        %v2033 = vmul.f32 %v2032, %v2026
        %v2034 = vadd.f32 %v2002, %v2033
        %2035 = vrot.lane.b32.xlu0 %v1969, 127
        %v2036 = vpop.permute.xlu0 %2035
        %v2037 = vmul.f32 %v2036, %v2026
        %v2038 = vadd.f32 %v2004, %v2037
        %2039 = vrot.lane.b32.xlu0 %v1974, 127
        %v2040 = vpop.permute.xlu0 %2039
        %v2041 = vmul.f32 %v2040, %v2026
        %v2042 = vadd.f32 %v2006, %v2041
        %v2043 = vmul.f32 %v2030, %v1049
        %v2044 = vld [vmem:[%s302 + $0x3] sm:$0xff]
        %v2045 = vsub.f32 %v2043, %v2044
        %s2046 = scalar_lea.vmem %s277, 64 [#allocation2]
        %2047 = vst [vmem:[%s2046] sm:$0xff] %v2045
        %v2048 = vmul.f32 %v2034, %v1049
        %v2049 = vld [vmem:[%s1052 + $0x3] sm:$0xff]
        %v2050 = vsub.f32 %v2048, %v2049
        %s2051 = scalar_lea.vmem %s277, 72 [#allocation2]
        %2052 = vst [vmem:[%s2051] sm:$0xff] %v2050
        %v2053 = vmul.f32 %v2038, %v1049
        %v2054 = vld [vmem:[%s1056 + $0x3] sm:$0xff]
        %v2055 = vsub.f32 %v2053, %v2054
        %s2056 = scalar_lea.vmem %s277, 80 [#allocation2]
        %2057 = vst [vmem:[%s2056] sm:$0xff] %v2055
        %v2058 = vmul.f32 %v2042, %v1049
        %v2059 = vld [vmem:[%s1060 + $0x3] sm:$0xff]
        %v2060 = vsub.f32 %v2058, %v2059
        %s2061 = scalar_lea.vmem %s277, 88 [#allocation2]
        %2062 = vst [vmem:[%s2061] sm:$0xff] %v2060
        %v2063 = vmax.f32 %v1681, %v1691
        %v2064 = vmax.f32 %v1682, %v1692
        %v2065 = vmax.f32 %v1701, %v1711
        %v2066 = vmax.f32 %v1702, %v1712
        %v2067 = vmax.f32 %v1721, %v1731
        %v2068 = vmax.f32 %v1722, %v1732
        %v2069 = vmax.f32 %v1741, %v1751
        %v2070 = vmax.f32 %v1742, %v1752
        %v2071 = vmax.f32 %v2063, %v2065
        %v2072 = vmax.f32 %v2064, %v2066
        %v2073 = vmax.f32 %v2067, %v2069
        %v2074 = vmax.f32 %v2068, %v2070
        %v2075 = vmax.f32 %v2071, %v2073
        %v2076 = vmax.f32 %v2072, %v2074
        %v2077 = vmax.f32 %v2075, %v1761
        %v2078 = vmax.f32 %v2076, %v1762
        %v2079 = vsub.f32 %v1681, %v2077
        %v2080 = vsub.f32 %v1682, %v2078
        %v2081 = vmul.f32 %v2079, 1.442695
        %v2082 = vpow.pop %v2081
        %v2083 = vmul.f32 %v2080, 1.442695
        %v2084 = vpow.pop %v2083
        %v2085 = vsub.f32 %v1691, %v2077
        %v2086 = vsub.f32 %v1692, %v2078
        %v2087 = vmul.f32 %v2085, 1.442695
        %v2088 = vpow.pop %v2087
        %v2089 = vmul.f32 %v2086, 1.442695
        %v2090 = vpow.pop %v2089
        %v2091 = vsub.f32 %v1701, %v2077
        %v2092 = vsub.f32 %v1702, %v2078
        %v2093 = vmul.f32 %v2091, 1.442695
        %v2094 = vpow.pop %v2093
        %v2095 = vmul.f32 %v2092, 1.442695
        %v2096 = vpow.pop %v2095
        %v2097 = vsub.f32 %v1711, %v2077
        %v2098 = vsub.f32 %v1712, %v2078
        %v2099 = vmul.f32 %v2097, 1.442695
        %v2100 = vpow.pop %v2099
        %v2101 = vmul.f32 %v2098, 1.442695
        %v2102 = vpow.pop %v2101
        %v2103 = vsub.f32 %v1721, %v2077
        %v2104 = vsub.f32 %v1722, %v2078
        %v2105 = vmul.f32 %v2103, 1.442695
        %v2106 = vpow.pop %v2105
        %v2107 = vmul.f32 %v2104, 1.442695
        %v2108 = vpow.pop %v2107
        %v2109 = vsub.f32 %v1731, %v2077
        %v2110 = vsub.f32 %v1732, %v2078
        %v2111 = vmul.f32 %v2109, 1.442695
        %v2112 = vpow.pop %v2111
        %v2113 = vmul.f32 %v2110, 1.442695
        %v2114 = vpow.pop %v2113
        %v2115 = vsub.f32 %v1741, %v2077
        %v2116 = vsub.f32 %v1742, %v2078
        %v2117 = vmul.f32 %v2115, 1.442695
        %v2118 = vpow.pop %v2117
        %v2119 = vmul.f32 %v2116, 1.442695
        %v2120 = vpow.pop %v2119
        %v2121 = vsub.f32 %v1751, %v2077
        %v2122 = vsub.f32 %v1752, %v2078
        %v2123 = vmul.f32 %v2121, 1.442695
        %v2124 = vpow.pop %v2123
        %v2125 = vmul.f32 %v2122, 1.442695
        %v2126 = vpow.pop %v2125
        %v2127 = vsub.f32 %v1761, %v2077
        %v2128 = vsub.f32 %v1762, %v2078
        %v2129 = vmul.f32 %v2127, 1.442695
        %v2130 = vpow.pop %v2129
        %v2131 = vmul.f32 %v2128, 1.442695
        %v2132 = vpow.pop %v2131
        %v2133 = vadd.f32 %v2082, %v2088
        %v2134 = vadd.f32 %v2084, %v2090
        %v2135 = vadd.f32 %v2094, %v2100
        %v2136 = vadd.f32 %v2096, %v2102
        %v2137 = vadd.f32 %v2106, %v2112
        %v2138 = vadd.f32 %v2108, %v2114
        %v2139 = vadd.f32 %v2118, %v2124
        %v2140 = vadd.f32 %v2120, %v2126
        %v2141 = vadd.f32 %v2133, %v2135
        %v2142 = vadd.f32 %v2134, %v2136
        %v2143 = vadd.f32 %v2137, %v2139
        %v2144 = vadd.f32 %v2138, %v2140
        %v2145 = vadd.f32 %v2141, %v2143
        %v2146 = vadd.f32 %v2142, %v2144
        %v2147 = vadd.f32 %v2145, %v2130
        %v2148 = vadd.f32 %v2146, %v2132
        %v2149 = vrcp.pop %v2147
        %v2150 = vmul.f32 1.0, %v2149
        %v2151 = vrcp.pop %v2148
        %v2152 = vmul.f32 1.0, %v2151
        %v2153 = vmul.f32 %v2082, %v2150
        %v2154 = vmul.f32 %v2084, %v2152
        %v2155 = vmul.f32 %v2088, %v2150
        %v2156 = vmul.f32 %v2090, %v2152
        %v2157 = vmul.f32 %v2094, %v2150
        %v2158 = vmul.f32 %v2096, %v2152
        %v2159 = vmul.f32 %v2100, %v2150
        %v2160 = vmul.f32 %v2102, %v2152
        %v2161 = vmul.f32 %v2112, %v2150
        %v2162 = vmul.f32 %v2114, %v2152
        %v2163 = vmul.f32 %v2118, %v2150
        %v2164 = vmul.f32 %v2120, %v2152
        %v2165 = vmul.f32 %v2124, %v2150
        %v2166 = vmul.f32 %v2126, %v2152
        %v2167 = vmul.f32 %v2130, %v2150
        %v2168 = vmul.f32 %v2132, %v2152
        %v2169 = vmul.f32 %v460, %v2153
        %v2170 = vmul.f32 %v461, %v2154
        %v2173 = vrot.slane %v2169, 1
        %v2174 = vrot.slane %v2170, 1
        %v2175 = vsel %vm308, %v2173, %v2174
        %v2177 = vadd.f32 %v2169, %v2175
        %v2178 = vrot.slane %v2169, 2
        %v2179 = vrot.slane %v2170, 2
        %v2180 = vsel %vm316, %v2178, %v2179
        %v2182 = vadd.f32 %v2177, %v2180
        %2183 = vrot.lane.b32.xlu0 %v2182, 1
        %v2184 = vpop.permute.xlu0 %2183
        %v2185 = vadd.f32 %v2184, %v2182
        %2186 = vrot.lane.b32.xlu0 %v2182, 127
        %v2187 = vpop.permute.xlu0 %2186
        %v2188 = vadd.f32 %v2185, %v2187
        %v2189 = vld [vmem:[%s282 + $0x2] sm:$0xff]
        %2190 = vrot.lane.b32.xlu0 %v2189, 1
        %v2191 = vpop.permute.xlu0 %2190
        %v2192 = vmul.f32 %v2191, %v2188
        %v2193 = vld [vmem:[%s1286 + $0x2] sm:$0xff]
        %2194 = vrot.lane.b32.xlu0 %v2193, 1
        %v2195 = vpop.permute.xlu0 %2194
        %v2196 = vmul.f32 %v2195, %v2188
        %v2197 = vld [vmem:[%s1291 + $0x2] sm:$0xff]
        %2198 = vrot.lane.b32.xlu0 %v2197, 1
        %v2199 = vpop.permute.xlu0 %2198
        %v2200 = vmul.f32 %v2199, %v2188
        %v2201 = vld [vmem:[%s1296 + $0x2] sm:$0xff]
        %2202 = vrot.lane.b32.xlu0 %v2201, 1
        %v2203 = vpop.permute.xlu0 %2202
        %v2204 = vmul.f32 %v2203, %v2188
        %v2205 = vmul.f32 %v460, %v2155
        %v2206 = vmul.f32 %v461, %v2156
        %v2209 = vrot.slane %v2205, 1
        %v2210 = vrot.slane %v2206, 1
        %v2211 = vsel %vm308, %v2209, %v2210
        %v2213 = vadd.f32 %v2205, %v2211
        %v2214 = vrot.slane %v2205, 2
        %v2215 = vrot.slane %v2206, 2
        %v2216 = vsel %vm316, %v2214, %v2215
        %v2218 = vadd.f32 %v2213, %v2216
        %2219 = vrot.lane.b32.xlu0 %v2218, 1
        %v2220 = vpop.permute.xlu0 %2219
        %v2221 = vadd.f32 %v2220, %v2218
        %2222 = vrot.lane.b32.xlu0 %v2218, 127
        %v2223 = vpop.permute.xlu0 %2222
        %v2224 = vadd.f32 %v2221, %v2223
        %v2225 = vmul.f32 %v2189, %v2224
        %v2226 = vadd.f32 %v2192, %v2225
        %v2227 = vmul.f32 %v2193, %v2224
        %v2228 = vadd.f32 %v2196, %v2227
        %v2229 = vmul.f32 %v2197, %v2224
        %v2230 = vadd.f32 %v2200, %v2229
        %v2231 = vmul.f32 %v2201, %v2224
        %v2232 = vadd.f32 %v2204, %v2231
        %v2233 = vmul.f32 %v460, %v2157
        %v2234 = vmul.f32 %v461, %v2158
        %v2237 = vrot.slane %v2233, 1
        %v2238 = vrot.slane %v2234, 1
        %v2239 = vsel %vm308, %v2237, %v2238
        %v2241 = vadd.f32 %v2233, %v2239
        %v2242 = vrot.slane %v2233, 2
        %v2243 = vrot.slane %v2234, 2
        %v2244 = vsel %vm316, %v2242, %v2243
        %v2246 = vadd.f32 %v2241, %v2244
        %2247 = vrot.lane.b32.xlu0 %v2246, 1
        %v2248 = vpop.permute.xlu0 %2247
        %v2249 = vadd.f32 %v2248, %v2246
        %2250 = vrot.lane.b32.xlu0 %v2246, 127
        %v2251 = vpop.permute.xlu0 %2250
        %v2252 = vadd.f32 %v2249, %v2251
        %2253 = vrot.lane.b32.xlu0 %v2189, 127
        %v2254 = vpop.permute.xlu0 %2253
        %v2255 = vmul.f32 %v2254, %v2252
        %v2256 = vadd.f32 %v2226, %v2255
        %2257 = vrot.lane.b32.xlu0 %v2193, 127
        %v2258 = vpop.permute.xlu0 %2257
        %v2259 = vmul.f32 %v2258, %v2252
        %v2260 = vadd.f32 %v2228, %v2259
        %2261 = vrot.lane.b32.xlu0 %v2197, 127
        %v2262 = vpop.permute.xlu0 %2261
        %v2263 = vmul.f32 %v2262, %v2252
        %v2264 = vadd.f32 %v2230, %v2263
        %2265 = vrot.lane.b32.xlu0 %v2201, 127
        %v2266 = vpop.permute.xlu0 %2265
        %v2267 = vmul.f32 %v2266, %v2252
        %v2268 = vadd.f32 %v2232, %v2267
        %v2269 = vmul.f32 %v460, %v2159
        %v2270 = vmul.f32 %v461, %v2160
        %v2273 = vrot.slane %v2269, 1
        %v2274 = vrot.slane %v2270, 1
        %v2275 = vsel %vm308, %v2273, %v2274
        %v2277 = vadd.f32 %v2269, %v2275
        %v2278 = vrot.slane %v2269, 2
        %v2279 = vrot.slane %v2270, 2
        %v2280 = vsel %vm316, %v2278, %v2279
        %v2282 = vadd.f32 %v2277, %v2280
        %2283 = vrot.lane.b32.xlu0 %v2282, 1
        %v2284 = vpop.permute.xlu0 %2283
        %v2285 = vadd.f32 %v2284, %v2282
        %2286 = vrot.lane.b32.xlu0 %v2282, 127
        %v2287 = vpop.permute.xlu0 %2286
        %v2288 = vadd.f32 %v2285, %v2287
        %v2289 = vld [vmem:[%s282 + $0x3] sm:$0xff]
        %2290 = vrot.lane.b32.xlu0 %v2289, 1
        %v2291 = vpop.permute.xlu0 %2290
        %v2292 = vmul.f32 %v2291, %v2288
        %v2293 = vadd.f32 %v2256, %v2292
        %v2294 = vld [vmem:[%s1286 + $0x3] sm:$0xff]
        %2295 = vrot.lane.b32.xlu0 %v2294, 1
        %v2296 = vpop.permute.xlu0 %2295
        %v2297 = vmul.f32 %v2296, %v2288
        %v2298 = vadd.f32 %v2260, %v2297
        %v2299 = vld [vmem:[%s1291 + $0x3] sm:$0xff]
        %2300 = vrot.lane.b32.xlu0 %v2299, 1
        %v2301 = vpop.permute.xlu0 %2300
        %v2302 = vmul.f32 %v2301, %v2288
        %v2303 = vadd.f32 %v2264, %v2302
        %v2304 = vld [vmem:[%s1296 + $0x3] sm:$0xff]
        %2305 = vrot.lane.b32.xlu0 %v2304, 1
        %v2306 = vpop.permute.xlu0 %2305
        %v2307 = vmul.f32 %v2306, %v2288
        %v2308 = vadd.f32 %v2268, %v2307
        %v2309 = vmul.f32 %v460, %v2161
        %v2310 = vmul.f32 %v461, %v2162
        %v2313 = vrot.slane %v2309, 1
        %v2314 = vrot.slane %v2310, 1
        %v2315 = vsel %vm308, %v2313, %v2314
        %v2317 = vadd.f32 %v2309, %v2315
        %v2318 = vrot.slane %v2309, 2
        %v2319 = vrot.slane %v2310, 2
        %v2320 = vsel %vm316, %v2318, %v2319
        %v2322 = vadd.f32 %v2317, %v2320
        %2323 = vrot.lane.b32.xlu0 %v2322, 1
        %v2324 = vpop.permute.xlu0 %2323
        %v2325 = vadd.f32 %v2324, %v2322
        %2326 = vrot.lane.b32.xlu0 %v2322, 127
        %v2327 = vpop.permute.xlu0 %2326
        %v2328 = vadd.f32 %v2325, %v2327
        %2329 = vrot.lane.b32.xlu0 %v2289, 127
        %v2330 = vpop.permute.xlu0 %2329
        %v2331 = vmul.f32 %v2330, %v2328
        %v2332 = vadd.f32 %v2293, %v2331
        %2333 = vrot.lane.b32.xlu0 %v2294, 127
        %v2334 = vpop.permute.xlu0 %2333
        %v2335 = vmul.f32 %v2334, %v2328
        %v2336 = vadd.f32 %v2298, %v2335
        %2337 = vrot.lane.b32.xlu0 %v2299, 127
        %v2338 = vpop.permute.xlu0 %2337
        %v2339 = vmul.f32 %v2338, %v2328
        %v2340 = vadd.f32 %v2303, %v2339
        %2341 = vrot.lane.b32.xlu0 %v2304, 127
        %v2342 = vpop.permute.xlu0 %2341
        %v2343 = vmul.f32 %v2342, %v2328
        %v2344 = vadd.f32 %v2308, %v2343
        %v2345 = vmul.f32 %v460, %v2163
        %v2346 = vmul.f32 %v461, %v2164
        %v2349 = vrot.slane %v2345, 1
        %v2350 = vrot.slane %v2346, 1
        %v2351 = vsel %vm308, %v2349, %v2350
        %v2353 = vadd.f32 %v2345, %v2351
        %v2354 = vrot.slane %v2345, 2
        %v2355 = vrot.slane %v2346, 2
        %v2356 = vsel %vm316, %v2354, %v2355
        %v2358 = vadd.f32 %v2353, %v2356
        %2359 = vrot.lane.b32.xlu0 %v2358, 1
        %v2360 = vpop.permute.xlu0 %2359
        %v2361 = vadd.f32 %v2360, %v2358
        %2362 = vrot.lane.b32.xlu0 %v2358, 127
        %v2363 = vpop.permute.xlu0 %2362
        %v2364 = vadd.f32 %v2361, %v2363
        %v2365 = vld [vmem:[%s282 + $0x4] sm:$0xff]
        %2366 = vrot.lane.b32.xlu0 %v2365, 1
        %v2367 = vpop.permute.xlu0 %2366
        %v2368 = vmul.f32 %v2367, %v2364
        %v2369 = vadd.f32 %v2332, %v2368
        %v2370 = vld [vmem:[%s1286 + $0x4] sm:$0xff]
        %2371 = vrot.lane.b32.xlu0 %v2370, 1
        %v2372 = vpop.permute.xlu0 %2371
        %v2373 = vmul.f32 %v2372, %v2364
        %v2374 = vadd.f32 %v2336, %v2373
        %v2375 = vld [vmem:[%s1291 + $0x4] sm:$0xff]
        %2376 = vrot.lane.b32.xlu0 %v2375, 1
        %v2377 = vpop.permute.xlu0 %2376
        %v2378 = vmul.f32 %v2377, %v2364
        %v2379 = vadd.f32 %v2340, %v2378
        %v2380 = vld [vmem:[%s1296 + $0x4] sm:$0xff]
        %2381 = vrot.lane.b32.xlu0 %v2380, 1
        %v2382 = vpop.permute.xlu0 %2381
        %v2383 = vmul.f32 %v2382, %v2364
        %v2384 = vadd.f32 %v2344, %v2383
        %v2385 = vmul.f32 %v460, %v2165
        %v2386 = vmul.f32 %v461, %v2166
        %v2389 = vrot.slane %v2385, 1
        %v2390 = vrot.slane %v2386, 1
        %v2391 = vsel %vm308, %v2389, %v2390
        %v2393 = vadd.f32 %v2385, %v2391
        %v2394 = vrot.slane %v2385, 2
        %v2395 = vrot.slane %v2386, 2
        %v2396 = vsel %vm316, %v2394, %v2395
        %v2398 = vadd.f32 %v2393, %v2396
        %2399 = vrot.lane.b32.xlu0 %v2398, 1
        %v2400 = vpop.permute.xlu0 %2399
        %v2401 = vadd.f32 %v2400, %v2398
        %2402 = vrot.lane.b32.xlu0 %v2398, 127
        %v2403 = vpop.permute.xlu0 %2402
        %v2404 = vadd.f32 %v2401, %v2403
        %v2405 = vmul.f32 %v2365, %v2404
        %v2406 = vadd.f32 %v2369, %v2405
        %v2407 = vmul.f32 %v2370, %v2404
        %v2408 = vadd.f32 %v2374, %v2407
        %v2409 = vmul.f32 %v2375, %v2404
        %v2410 = vadd.f32 %v2379, %v2409
        %v2411 = vmul.f32 %v2380, %v2404
        %v2412 = vadd.f32 %v2384, %v2411
        %v2413 = vmul.f32 %v460, %v2167
        %v2414 = vmul.f32 %v461, %v2168
        %v2417 = vrot.slane %v2413, 1
        %v2418 = vrot.slane %v2414, 1
        %v2419 = vsel %vm308, %v2417, %v2418
        %v2421 = vadd.f32 %v2413, %v2419
        %v2422 = vrot.slane %v2413, 2
        %v2423 = vrot.slane %v2414, 2
        %v2424 = vsel %vm316, %v2422, %v2423
        %v2426 = vadd.f32 %v2421, %v2424
        %2427 = vrot.lane.b32.xlu0 %v2426, 1
        %v2428 = vpop.permute.xlu0 %2427
        %v2429 = vadd.f32 %v2428, %v2426
        %2430 = vrot.lane.b32.xlu0 %v2426, 127
        %v2431 = vpop.permute.xlu0 %2430
        %v2432 = vadd.f32 %v2429, %v2431
        %2433 = vrot.lane.b32.xlu0 %v2365, 127
        %v2434 = vpop.permute.xlu0 %2433
        %v2435 = vmul.f32 %v2434, %v2432
        %v2436 = vadd.f32 %v2406, %v2435
        %2437 = vrot.lane.b32.xlu0 %v2370, 127
        %v2438 = vpop.permute.xlu0 %2437
        %v2439 = vmul.f32 %v2438, %v2432
        %v2440 = vadd.f32 %v2408, %v2439
        %2441 = vrot.lane.b32.xlu0 %v2375, 127
        %v2442 = vpop.permute.xlu0 %2441
        %v2443 = vmul.f32 %v2442, %v2432
        %v2444 = vadd.f32 %v2410, %v2443
        %2445 = vrot.lane.b32.xlu0 %v2380, 127
        %v2446 = vpop.permute.xlu0 %2445
        %v2447 = vmul.f32 %v2446, %v2432
        %v2448 = vadd.f32 %v2412, %v2447
        %v2449 = vmul.f32 %v2436, %v1049
        %v2450 = vld [vmem:[%s302 + $0x3] sm:$0xff]
        %v2451 = vsub.f32 %v2449, %v2450
        %s2452 = scalar_lea.vmem %s277, 96 [#allocation2]
        %2453 = vst [vmem:[%s2452] sm:$0xff] %v2451
        %v2454 = vmul.f32 %v2440, %v1049
        %v2455 = vld [vmem:[%s1052 + $0x3] sm:$0xff]
        %v2456 = vsub.f32 %v2454, %v2455
        %s2457 = scalar_lea.vmem %s277, 104 [#allocation2]
        %2458 = vst [vmem:[%s2457] sm:$0xff] %v2456
        %v2459 = vmul.f32 %v2444, %v1049
        %v2460 = vld [vmem:[%s1056 + $0x3] sm:$0xff]
        %v2461 = vsub.f32 %v2459, %v2460
        %s2462 = scalar_lea.vmem %s277, 112 [#allocation2]
        %2463 = vst [vmem:[%s2462] sm:$0xff] %v2461
        %v2464 = vmul.f32 %v2448, %v1049
        %v2465 = vld [vmem:[%s1060 + $0x3] sm:$0xff]
        %v2466 = vsub.f32 %v2464, %v2465
        %s2467 = scalar_lea.vmem %s277, 120 [#allocation2]
        %2468 = vst [vmem:[%s2467] sm:$0xff] %v2466
        %s2469 = sand.u32 %s157, 1
        %s2470 = scalar_lea.sflag [#allocation3], %s2469
        %s2471 = sand.u32 %s157, 1
        %s2472 = smul.addr %s2471, 128
        %s2473 = scalar_lea.vmem [#allocation2], %s2472
        // Predicated region
        $region41: #{tpu_custom_call.1} parent=39 // pred_check
          %p2474 = pneg %p167
        $region42: #{tpu_custom_call.1} parent=39 // pred_check_branch
          %2476 = sbr.rel (%p2474) target = $region44
        $region43: #{tpu_custom_call.1} parent=39 // pred_region
          %s2478 = ssub.s32 2048, 2048
          %2479 = vsyncadd %s2470, %s2478
          %s2480 = smul.addr %s19, 128
          %s2481 = scalar_lea.hbm %s5, %s2480
          %s2482 = sshll.u32 %s2473, 4
          %s2483 = int_to_ptr.vmem [resolvable:$true] %s2482
          %2488 = dma.vmem_to_hbm [thread:$0]  %s2483, 2048, %s2481, %s2470, 128, 384, 8
        $region44: #{tpu_custom_call.1} parent=39 // pred_fallthru
          _
      $region40: #{tpu_custom_call.1} parent=5 // pred_fallthru
        _
      %p2489 = scmp.le.s32.totalorder 2, %s14
      // Predicated region
      $region45: #{tpu_custom_call.1} parent=5 // pred_check
        %p2490 = pneg %p2489
      $region46: #{tpu_custom_call.1} parent=5 // pred_check_branch
        %2492 = sbr.rel (%p2490) target = $region48
      $region47: #{tpu_custom_call.1} parent=5 // pred_region
        %s2493 = ssub.s32 %s14, 2
        // Predicated region
        $region49: #{tpu_custom_call.1} parent=47 // pred_check
          %p2494 = pneg %p173
        $region50: #{tpu_custom_call.1} parent=47 // pred_check_branch
          %2496 = sbr.rel (%p2494) target = $region52
        $region51: #{tpu_custom_call.1} parent=47 // pred_region
          %s2497 = sand.u32 %s158, 1
          %s2498 = scalar_lea.sflag [#allocation3], %s2497
          %s2499 = sand.u32 %s158, 1
          %s2500 = smul.addr %s2499, 128
          %s2501 = scalar_lea.vmem [#allocation2], %s2500
          %2502 = dma.done %s2498, 2048
        $region52: #{tpu_custom_call.1} parent=47 // pred_fallthru
          _
      $region48: #{tpu_custom_call.1} parent=5 // pred_fallthru
        _
    $region6: #{tpu_custom_call.1} parent=1 // loop_footer
      %s18 = sadd.s32 1, %s14
    $region7: #{tpu_custom_call.1} parent=1 // loop_footer_branch
      %13 = sbr.rel target = $region3
    $region8: #{tpu_custom_call.1} parent=1 // loop_exit
      _
    %2503 = vsyncpa [#allocation3], 1
    %s2504 = scalar_lea.sflag [#allocation3], 1
    %2505 = vsyncpa %s2504, 1

</llo_original>
